<compile_context>
chip_gen: v5e
topology: v5e:2x2
jax: 0.10.0
libtpu: 0.0.40
codegen_flags: <defaults>
</compile_context>

<pallas_src>
import itertools
import numpy as np
import jax
import jax.numpy as jnp
from jax.experimental import pallas as pl
from jax.experimental.pallas import tpu as pltpu

De = 3
Do = 5
PARAMS = ['j1_px', 'j1_py', 'j1_pz', 'j1_e', 'j1_erel', 'j1_pt', 'j1_ptrel',
          'j1_eta', 'j1_etarel', 'j1_etarot', 'j1_phi', 'j1_phirel',
          'j1_phirot', 'j1_deltaR', 'j1_costheta', 'j1_costhetarel']
P = len(PARAMS)  # 16


def _round_up(v, m):
    return (v + m - 1) // m * m


# ----------------------------------------------------------------------------
# Fused forward: edge MLP + aggregation + object MLP + classifier head
# ----------------------------------------------------------------------------
def graphnet_forward(x, prm, n, hidden, n_targets, b_tile=256,
                     mxu_dtype=jnp.float32):
    """x: (batch, P, N) float32 -- same layout as the PyTorch module."""
    batch = x.shape[0]
    assert x.shape == (batch, P, n)
    assert b_tile % 128 == 0, "b_tile must be a multiple of 128 (lane tile)"
    assert batch % b_tile == 0, "pad the batch to a multiple of b_tile"
    do_pad = 8   # fo3 rows padded to one sublane tile -> aligned classifier gather
    cast_mxu = jnp.dtype(mxu_dtype) != jnp.dtype(jnp.float32)

    # ---- coalesce all parameters into two stacked, padded f32 buffers ----
    wo3_pad = jnp.pad(prm['fo3_w'], ((0, do_pad - Do), (0, 0)))          # (8, H/2)
    bo3_pad = jnp.pad(prm['fo3_b'], (0, do_pad - Do))                    # (8,)
    wc1_pad = jnp.pad(prm['fc1_w'].reshape(hidden, n, Do),
                      ((0, 0), (0, 0), (0, do_pad - Do))
                      ).reshape(hidden, n * do_pad)                      # (H, N*8)
    mats = [
        prm['fr1_w'][:, :P], prm['fr1_w'][:, P:],      # 0 w1a   1 w1b
        prm['fr2_w'],        prm['fr3_w'],             # 2 w2    3 w3
        prm['fo1_w'][:, :P], prm['fo1_w'][:, P:],      # 4 wo1a  5 wo1b
        prm['fo2_w'],        wo3_pad,                  # 6 wo2   7 wo3 (padded)
        wc1_pad, prm['fc2_w'], prm['fc3_w'],           # 8 wc1   9 wc2  10 wc3
    ]
    vecs = [
        prm['fr1_b'], prm['fr2_b'], prm['fr3_b'],      # 0..2
        prm['fo1_b'], prm['fo2_b'], bo3_pad,           # 3..5
        prm['fc1_b'], prm['fc2_b'], prm['fc3_b'],      # 6..8
    ]
    mat_shapes = tuple(tuple(int(d) for d in m.shape) for m in mats)
    vec_dims = tuple(int(v.shape[0]) for v in vecs)
    r_pad = _round_up(max(s[0] for s in mat_shapes), 8)
    c_pad = _round_up(max(s[1] for s in mat_shapes), 128)
    w_stack = jnp.zeros((len(mats), r_pad, c_pad), jnp.float32)
    for i, m in enumerate(mats):
        w_stack = w_stack.at[i, :m.shape[0], :m.shape[1]].set(m)
    b_stack = jnp.zeros((len(vecs), _round_up(max(vec_dims), 8), 1), jnp.float32)
    for j, v in enumerate(vecs):
        b_stack = b_stack.at[j, :v.shape[0], 0].set(v)

    # node-major, batch-on-lanes input; see TODO(synk) at top of file.
    x_nm = jnp.transpose(x, (2, 1, 0))                 # (N, P, batch)

    def kernel(x_ref, w_ref, b_ref, out_ref):
        f32 = jnp.float32
        bsz = b_tile
        nb = n * bsz

        def weight(i):
            o, k = mat_shapes[i]
            w = w_ref[i][0:o, 0:k]
            return w.astype(mxu_dtype) if cast_mxu else w

        def bias(j):
            return b_ref[j][0:vec_dims[j], :]          # (d, 1) f32 column

        def mm(w, a):                                  # W(out,K) @ A(K, lanes) on MXU
            if cast_mxu:
                a = a.astype(mxu_dtype)
            return jnp.dot(w, a, preferred_element_type=f32)

        w1a, w1b, w2, w3 = weight(0), weight(1), weight(2), weight(3)
        wo1a, wo1b, wo2, wo3 = weight(4), weight(5), weight(6), weight(7)
        wc1, wc2, wc3 = weight(8), weight(9), weight(10)
        b1, b2, b3, bo1, bo2, bo3, bc1, bc2, bc3 = [bias(j) for j in range(9)]

        # Lane-dense activations: columns ordered (node, batch-in-tile).
        x_cat = jnp.concatenate([x_ref[s] for s in range(n)], axis=1)   # (P, N*B)

        # ---- relational (edge) MLP ----------------------------------------
        t1 = mm(w1a, x_cat) + b1          # receiver projection (+ fr1 bias), (H, N*B)
        t2 = mm(w1b, x_cat)               # sender projection,                (H, N*B)
        b2b = jnp.broadcast_to(b2, (b2.shape[0], nb))   # hoisted out of the r-loop
        b3b = jnp.broadcast_to(b3, (b3.shape[0], nb))

        # Receiver loop (static unroll over N; peak live slab is (H, N*B), not
        # (N*N*B, H)).  Self edge r==s is dropped by skipping its lane block in
        # the sender reduction -- no mask arithmetic needed.
        ebar_parts = []
        for r in range(n):
            t1_r = t1[:, r * bsz:(r + 1) * bsz]                          # (H, B)
            h = jnp.concatenate([t1_r] * n, axis=1) + t2                 # (H, N*B)
            h = jnp.maximum(h, 0.0)
            z = jnp.maximum(mm(w2, h) + b2b, 0.0)                        # (H/2, N*B)
            e = jnp.maximum(mm(w3, z) + b3b, 0.0)                        # (De, N*B)
            acc = None
            for s in range(n):
                if s == r:
                    continue
                blk = e[:, s * bsz:(s + 1) * bsz]
                acc = blk if acc is None else acc + blk
            ebar_parts.append(acc)                                       # (De, B)
        ebar = jnp.concatenate(ebar_parts, axis=1)                       # (De, N*B)

        # ---- object (node) MLP; concat folded into split fo1 weights -------
        c = jnp.maximum(mm(wo1a, x_cat) + mm(wo1b, ebar) + bo1, 0.0)     # (H, N*B)
        c = jnp.maximum(mm(wo2, c) + bo2, 0.0)                           # (H/2, N*B)
        o = jnp.maximum(mm(wo3, c) + bo3, 0.0)                           # (do_pad, N*B)

        # ---- classifier: aligned per-node gather + single K=N*do_pad matmul -
        o_rows = jnp.concatenate(
            [o[:, s * bsz:(s + 1) * bsz] for s in range(n)], axis=0)     # (N*do_pad, B)
        hc = jnp.maximum(mm(wc1, o_rows) + bc1, 0.0)                     # (H, B)
        hc = jnp.maximum(mm(wc2, hc) + bc2, 0.0)                         # (H/2, B)
        out_ref[...] = mm(wc3, hc) + bc3                                 # (T, B), no ReLU

    out_t = pl.pallas_call(
        kernel,
        out_shape=jax.ShapeDtypeStruct((n_targets, batch), jnp.float32),
        grid=(batch // b_tile,),
        in_specs=[
            pl.BlockSpec((n, P, b_tile), lambda i: (0, 0, i)),
            pl.BlockSpec(w_stack.shape, lambda i: (0, 0, 0)),   # grid-invariant
            pl.BlockSpec(b_stack.shape, lambda i: (0, 0, 0)),   # grid-invariant
        ],
        out_specs=pl.BlockSpec((n_targets, b_tile), lambda i: (0, i)),
        compiler_params=pltpu.CompilerParams(
            dimension_semantics=("parallel",)),
    )(x_nm, w_stack, b_stack)
    return out_t.T                                      # (batch, n_targets)


# ----------------------------------------------------------------------------
# Glue: Rr/Rs (reference only), parameter init
# ----------------------------------------------------------------------------
def make_rr_rs(n):
    nr = n * (n - 1)
    rr = np.zeros((n, nr), np.float32)
    rs = np.zeros((n, nr), np.float32)
    rs_list = [pair for pair in itertools.product(range(n), range(n))
               if pair[0] != pair[1]]
    for i, (r, s) in enumerate(rs_list):
        rr[r, i] = 1.0
        rs[s, i] = 1.0
    return jnp.asarray(rr), jnp.asarray(rs)


def init_params(key, n, hidden, n_targets):
    shapes = {
        'fr1_w': (hidden, 2 * P), 'fr1_b': (hidden,),
        'fr2_w': (hidden // 2, hidden), 'fr2_b': (hidden // 2,),
        'fr3_w': (De, hidden // 2), 'fr3_b': (De,),
        'fo1_w': (hidden, P + De), 'fo1_b': (hidden,),
        'fo2_w': (hidden // 2, hidden), 'fo2_b': (hidden // 2,),
        'fo3_w': (Do, hidden // 2), 'fo3_b': (Do,),
        'fc1_w': (hidden, Do * n), 'fc1_b': (hidden,),
        'fc2_w': (hidden // 2, hidden), 'fc2_b': (hidden // 2,),
        'fc3_w': (n_targets, hidden // 2), 'fc3_b': (n_targets,),
    }
    prm = {}
    for i, name in enumerate(sorted(shapes)):
        k = jax.random.fold_in(key, i)
        prm[name] = 0.1 * jax.random.normal(k, shapes[name], jnp.float32)
    return prm


# ----------------------------------------------------------------------------
# Pure-JAX reference (mirrors the PyTorch forward exactly)
# ----------------------------------------------------------------------------
def ref_forward(x, prm, n, hidden, n_targets):
    batch = x.shape[0]
    nr = n * (n - 1)
    rr, rs = make_rr_rs(n)
    relu = jax.nn.relu

    orr = jnp.einsum('bpn,nr->bpr', x, rr)
    ors = jnp.einsum('bpn,nr->bpr', x, rs)
    b = jnp.concatenate([orr, ors], axis=1)
    b = jnp.transpose(b, (0, 2, 1)).reshape(-1, 2 * P)
    b = relu(b @ prm['fr1_w'].T + prm['fr1_b'])
    b = relu(b @ prm['fr2_w'].T + prm['fr2_b'])
    e = relu(b @ prm['fr3_w'].T + prm['fr3_b']).reshape(batch, nr, De)
    e = jnp.transpose(e, (0, 2, 1))
    ebar = jnp.einsum('ber,rn->ben', e, rr.T)
    c = jnp.concatenate([x, ebar], axis=1)
    c = jnp.transpose(c, (0, 2, 1)).reshape(-1, P + De)
    c = relu(c @ prm['fo1_w'].T + prm['fo1_b'])
    c = relu(c @ prm['fo2_w'].T + prm['fo2_b'])
    o = relu(c @ prm['fo3_w'].T + prm['fo3_b']).reshape(batch, n, Do)
    h = relu(o.reshape(batch, Do * n) @ prm['fc1_w'].T + prm['fc1_b'])
    h = relu(h @ prm['fc2_w'].T + prm['fc2_b'])
    return h @ prm['fc3_w'].T + prm['fc3_b']


if __name__ == "__main__":
    # Smoke-test shapes: batch=512 so the lane-dense b_tile=128 gives a 4-step
    # "parallel" grid (both v7x TensorCores busy); total data is still tiny.
    batch, n_const, hidden, n_targets = 512, 8, 32, 4
    b_tile = 128

    key = jax.random.PRNGKey(0)
    kx, kp = jax.random.split(key)
    x = jax.random.normal(kx, (batch, P, n_const), jnp.float32)
    prm = init_params(kp, n_const, hidden, n_targets)

    out = graphnet_forward(x, prm, n_const, hidden, n_targets, b_tile=b_tile)
    out = jax.block_until_ready(out)
    assert out.shape == (batch, n_targets)

    ref = jax.block_until_ready(ref_forward(x, prm, n_const, hidden, n_targets))
    np.testing.assert_allclose(np.asarray(out), np.asarray(ref),
                               rtol=1e-3, atol=1e-3)

    # bf16 MXU-operand variant recommended for v6e/v7x (f32 accumulation and f32
    # VPU math kept).  Checked only for finiteness here; re-verify tolerances
    # against the f32 reference on real weights before deploying (review note).
    out_bf16 = jax.block_until_ready(
        graphnet_forward(x, prm, n_const, hidden, n_targets, b_tile=b_tile,
                         mxu_dtype=jnp.bfloat16))
    assert np.isfinite(np.asarray(out_bf16)).all()

    print("KERNEL_OK")
</pallas_src>

<mosaic_0001>
module attributes {stable_mosaic.version = 11 : i64} {
  func.func @kernel(%arg0: i32, %arg1: memref<8x16x128xf32, #tpu.memory_space<vmem>>, %arg2: memref<11x32x128xf32, #tpu.memory_space<vmem>>, %arg3: memref<9x32x1xf32, #tpu.memory_space<vmem>>, %arg4: memref<4x128xf32, #tpu.memory_space<vmem>>) attributes {dimension_semantics = [#tpu.dimension_semantics<parallel>], iteration_bounds = array<i64: 4>, scalar_prefetch = 0 : i64, scratch_operands = 0 : i64, tpu.core_type = #tpu.core_type<tc>, window_params = [{transform_indices = @transform_0, window_bounds = array<i64: 8, 16, 128>}, {pipeline_mode = #tpu.pipeline_mode<synchronous>, transform_indices = @transform_1, window_bounds = array<i64: 11, 32, 128>}, {pipeline_mode = #tpu.pipeline_mode<synchronous>, transform_indices = @transform_2, window_bounds = array<i64: 9, 32, 1>}, {transform_indices = @transform_3, window_bounds = array<i64: 4, 128>}]} {
    %c0 = arith.constant 0 : index
    %c0_0 = arith.constant 0 : index
    %c0_1 = arith.constant 0 : index
    %0 = vector.load %arg2[%c0, %c0_0, %c0_1] : memref<11x32x128xf32, #tpu.memory_space<vmem>>, vector<1x32x128xf32>
    %1 = vector.shape_cast %0 : vector<1x32x128xf32> to vector<32x128xf32>
    %2 = vector.extract_strided_slice %1 {offsets = [0, 0], sizes = [32, 16], strides = [1, 1]} : vector<32x128xf32> to vector<32x16xf32>
    %c1 = arith.constant 1 : index
    %c0_2 = arith.constant 0 : index
    %c0_3 = arith.constant 0 : index
    %3 = vector.load %arg2[%c1, %c0_2, %c0_3] : memref<11x32x128xf32, #tpu.memory_space<vmem>>, vector<1x32x128xf32>
    %4 = vector.shape_cast %3 : vector<1x32x128xf32> to vector<32x128xf32>
    %5 = vector.extract_strided_slice %4 {offsets = [0, 0], sizes = [32, 16], strides = [1, 1]} : vector<32x128xf32> to vector<32x16xf32>
    %c2 = arith.constant 2 : index
    %c0_4 = arith.constant 0 : index
    %c0_5 = arith.constant 0 : index
    %6 = vector.load %arg2[%c2, %c0_4, %c0_5] : memref<11x32x128xf32, #tpu.memory_space<vmem>>, vector<1x32x128xf32>
    %7 = vector.shape_cast %6 : vector<1x32x128xf32> to vector<32x128xf32>
    %8 = vector.extract_strided_slice %7 {offsets = [0, 0], sizes = [16, 32], strides = [1, 1]} : vector<32x128xf32> to vector<16x32xf32>
    %c3 = arith.constant 3 : index
    %c0_6 = arith.constant 0 : index
    %c0_7 = arith.constant 0 : index
    %9 = vector.load %arg2[%c3, %c0_6, %c0_7] : memref<11x32x128xf32, #tpu.memory_space<vmem>>, vector<1x32x128xf32>
    %10 = vector.shape_cast %9 : vector<1x32x128xf32> to vector<32x128xf32>
    %11 = vector.extract_strided_slice %10 {offsets = [0, 0], sizes = [3, 16], strides = [1, 1]} : vector<32x128xf32> to vector<3x16xf32>
    %c4 = arith.constant 4 : index
    %c0_8 = arith.constant 0 : index
    %c0_9 = arith.constant 0 : index
    %12 = vector.load %arg2[%c4, %c0_8, %c0_9] : memref<11x32x128xf32, #tpu.memory_space<vmem>>, vector<1x32x128xf32>
    %13 = vector.shape_cast %12 : vector<1x32x128xf32> to vector<32x128xf32>
    %14 = vector.extract_strided_slice %13 {offsets = [0, 0], sizes = [32, 16], strides = [1, 1]} : vector<32x128xf32> to vector<32x16xf32>
    %c5 = arith.constant 5 : index
    %c0_10 = arith.constant 0 : index
    %c0_11 = arith.constant 0 : index
    %15 = vector.load %arg2[%c5, %c0_10, %c0_11] : memref<11x32x128xf32, #tpu.memory_space<vmem>>, vector<1x32x128xf32>
    %16 = vector.shape_cast %15 : vector<1x32x128xf32> to vector<32x128xf32>
    %17 = vector.extract_strided_slice %16 {offsets = [0, 0], sizes = [32, 3], strides = [1, 1]} : vector<32x128xf32> to vector<32x3xf32>
    %c6 = arith.constant 6 : index
    %c0_12 = arith.constant 0 : index
    %c0_13 = arith.constant 0 : index
    %18 = vector.load %arg2[%c6, %c0_12, %c0_13] : memref<11x32x128xf32, #tpu.memory_space<vmem>>, vector<1x32x128xf32>
    %19 = vector.shape_cast %18 : vector<1x32x128xf32> to vector<32x128xf32>
    %20 = vector.extract_strided_slice %19 {offsets = [0, 0], sizes = [16, 32], strides = [1, 1]} : vector<32x128xf32> to vector<16x32xf32>
    %c7 = arith.constant 7 : index
    %c0_14 = arith.constant 0 : index
    %c0_15 = arith.constant 0 : index
    %21 = vector.load %arg2[%c7, %c0_14, %c0_15] : memref<11x32x128xf32, #tpu.memory_space<vmem>>, vector<1x32x128xf32>
    %22 = vector.shape_cast %21 : vector<1x32x128xf32> to vector<32x128xf32>
    %23 = vector.extract_strided_slice %22 {offsets = [0, 0], sizes = [8, 16], strides = [1, 1]} : vector<32x128xf32> to vector<8x16xf32>
    %c8 = arith.constant 8 : index
    %c0_16 = arith.constant 0 : index
    %c0_17 = arith.constant 0 : index
    %24 = vector.load %arg2[%c8, %c0_16, %c0_17] : memref<11x32x128xf32, #tpu.memory_space<vmem>>, vector<1x32x128xf32>
    %25 = vector.shape_cast %24 : vector<1x32x128xf32> to vector<32x128xf32>
    %26 = vector.extract_strided_slice %25 {offsets = [0, 0], sizes = [32, 64], strides = [1, 1]} : vector<32x128xf32> to vector<32x64xf32>
    %c9 = arith.constant 9 : index
    %c0_18 = arith.constant 0 : index
    %c0_19 = arith.constant 0 : index
    %27 = vector.load %arg2[%c9, %c0_18, %c0_19] : memref<11x32x128xf32, #tpu.memory_space<vmem>>, vector<1x32x128xf32>
    %28 = vector.shape_cast %27 : vector<1x32x128xf32> to vector<32x128xf32>
    %29 = vector.extract_strided_slice %28 {offsets = [0, 0], sizes = [16, 32], strides = [1, 1]} : vector<32x128xf32> to vector<16x32xf32>
    %c10 = arith.constant 10 : index
    %c0_20 = arith.constant 0 : index
    %c0_21 = arith.constant 0 : index
    %30 = vector.load %arg2[%c10, %c0_20, %c0_21] : memref<11x32x128xf32, #tpu.memory_space<vmem>>, vector<1x32x128xf32>
    %31 = vector.shape_cast %30 : vector<1x32x128xf32> to vector<32x128xf32>
    %32 = vector.extract_strided_slice %31 {offsets = [0, 0], sizes = [4, 16], strides = [1, 1]} : vector<32x128xf32> to vector<4x16xf32>
    %c0_22 = arith.constant 0 : index
    %c0_23 = arith.constant 0 : index
    %c0_24 = arith.constant 0 : index
    %33 = vector.load %arg3[%c0_22, %c0_23, %c0_24] : memref<9x32x1xf32, #tpu.memory_space<vmem>>, vector<1x32x1xf32>
    %34 = vector.shape_cast %33 : vector<1x32x1xf32> to vector<32x1xf32>
    %c1_25 = arith.constant 1 : index
    %c0_26 = arith.constant 0 : index
    %c0_27 = arith.constant 0 : index
    %35 = vector.load %arg3[%c1_25, %c0_26, %c0_27] : memref<9x32x1xf32, #tpu.memory_space<vmem>>, vector<1x32x1xf32>
    %36 = vector.shape_cast %35 : vector<1x32x1xf32> to vector<32x1xf32>
    %37 = vector.extract_strided_slice %36 {offsets = [0, 0], sizes = [16, 1], strides = [1, 1]} : vector<32x1xf32> to vector<16x1xf32>
    %c2_28 = arith.constant 2 : index
    %c0_29 = arith.constant 0 : index
    %c0_30 = arith.constant 0 : index
    %38 = vector.load %arg3[%c2_28, %c0_29, %c0_30] : memref<9x32x1xf32, #tpu.memory_space<vmem>>, vector<1x32x1xf32>
    %39 = vector.shape_cast %38 : vector<1x32x1xf32> to vector<32x1xf32>
    %40 = vector.extract_strided_slice %39 {offsets = [0, 0], sizes = [3, 1], strides = [1, 1]} : vector<32x1xf32> to vector<3x1xf32>
    %c3_31 = arith.constant 3 : index
    %c0_32 = arith.constant 0 : index
    %c0_33 = arith.constant 0 : index
    %41 = vector.load %arg3[%c3_31, %c0_32, %c0_33] : memref<9x32x1xf32, #tpu.memory_space<vmem>>, vector<1x32x1xf32>
    %42 = vector.shape_cast %41 : vector<1x32x1xf32> to vector<32x1xf32>
    %c4_34 = arith.constant 4 : index
    %c0_35 = arith.constant 0 : index
    %c0_36 = arith.constant 0 : index
    %43 = vector.load %arg3[%c4_34, %c0_35, %c0_36] : memref<9x32x1xf32, #tpu.memory_space<vmem>>, vector<1x32x1xf32>
    %44 = vector.shape_cast %43 : vector<1x32x1xf32> to vector<32x1xf32>
    %45 = vector.extract_strided_slice %44 {offsets = [0, 0], sizes = [16, 1], strides = [1, 1]} : vector<32x1xf32> to vector<16x1xf32>
    %c5_37 = arith.constant 5 : index
    %c0_38 = arith.constant 0 : index
    %c0_39 = arith.constant 0 : index
    %46 = vector.load %arg3[%c5_37, %c0_38, %c0_39] : memref<9x32x1xf32, #tpu.memory_space<vmem>>, vector<1x32x1xf32>
    %47 = vector.shape_cast %46 : vector<1x32x1xf32> to vector<32x1xf32>
    %48 = vector.extract_strided_slice %47 {offsets = [0, 0], sizes = [8, 1], strides = [1, 1]} : vector<32x1xf32> to vector<8x1xf32>
    %c6_40 = arith.constant 6 : index
    %c0_41 = arith.constant 0 : index
    %c0_42 = arith.constant 0 : index
    %49 = vector.load %arg3[%c6_40, %c0_41, %c0_42] : memref<9x32x1xf32, #tpu.memory_space<vmem>>, vector<1x32x1xf32>
    %50 = vector.shape_cast %49 : vector<1x32x1xf32> to vector<32x1xf32>
    %c7_43 = arith.constant 7 : index
    %c0_44 = arith.constant 0 : index
    %c0_45 = arith.constant 0 : index
    %51 = vector.load %arg3[%c7_43, %c0_44, %c0_45] : memref<9x32x1xf32, #tpu.memory_space<vmem>>, vector<1x32x1xf32>
    %52 = vector.shape_cast %51 : vector<1x32x1xf32> to vector<32x1xf32>
    %53 = vector.extract_strided_slice %52 {offsets = [0, 0], sizes = [16, 1], strides = [1, 1]} : vector<32x1xf32> to vector<16x1xf32>
    %c8_46 = arith.constant 8 : index
    %c0_47 = arith.constant 0 : index
    %c0_48 = arith.constant 0 : index
    %54 = vector.load %arg3[%c8_46, %c0_47, %c0_48] : memref<9x32x1xf32, #tpu.memory_space<vmem>>, vector<1x32x1xf32>
    %55 = vector.shape_cast %54 : vector<1x32x1xf32> to vector<32x1xf32>
    %56 = vector.extract_strided_slice %55 {offsets = [0, 0], sizes = [4, 1], strides = [1, 1]} : vector<32x1xf32> to vector<4x1xf32>
    %c0_49 = arith.constant 0 : index
    %c0_50 = arith.constant 0 : index
    %c0_51 = arith.constant 0 : index
    %57 = vector.load %arg1[%c0_49, %c0_50, %c0_51] : memref<8x16x128xf32, #tpu.memory_space<vmem>>, vector<1x16x128xf32>
    %58 = vector.shape_cast %57 : vector<1x16x128xf32> to vector<16x128xf32>
    %c1_52 = arith.constant 1 : index
    %c0_53 = arith.constant 0 : index
    %c0_54 = arith.constant 0 : index
    %59 = vector.load %arg1[%c1_52, %c0_53, %c0_54] : memref<8x16x128xf32, #tpu.memory_space<vmem>>, vector<1x16x128xf32>
    %60 = vector.shape_cast %59 : vector<1x16x128xf32> to vector<16x128xf32>
    %c2_55 = arith.constant 2 : index
    %c0_56 = arith.constant 0 : index
    %c0_57 = arith.constant 0 : index
    %61 = vector.load %arg1[%c2_55, %c0_56, %c0_57] : memref<8x16x128xf32, #tpu.memory_space<vmem>>, vector<1x16x128xf32>
    %62 = vector.shape_cast %61 : vector<1x16x128xf32> to vector<16x128xf32>
    %c3_58 = arith.constant 3 : index
    %c0_59 = arith.constant 0 : index
    %c0_60 = arith.constant 0 : index
    %63 = vector.load %arg1[%c3_58, %c0_59, %c0_60] : memref<8x16x128xf32, #tpu.memory_space<vmem>>, vector<1x16x128xf32>
    %64 = vector.shape_cast %63 : vector<1x16x128xf32> to vector<16x128xf32>
    %c4_61 = arith.constant 4 : index
    %c0_62 = arith.constant 0 : index
    %c0_63 = arith.constant 0 : index
    %65 = vector.load %arg1[%c4_61, %c0_62, %c0_63] : memref<8x16x128xf32, #tpu.memory_space<vmem>>, vector<1x16x128xf32>
    %66 = vector.shape_cast %65 : vector<1x16x128xf32> to vector<16x128xf32>
    %c5_64 = arith.constant 5 : index
    %c0_65 = arith.constant 0 : index
    %c0_66 = arith.constant 0 : index
    %67 = vector.load %arg1[%c5_64, %c0_65, %c0_66] : memref<8x16x128xf32, #tpu.memory_space<vmem>>, vector<1x16x128xf32>
    %68 = vector.shape_cast %67 : vector<1x16x128xf32> to vector<16x128xf32>
    %c6_67 = arith.constant 6 : index
    %c0_68 = arith.constant 0 : index
    %c0_69 = arith.constant 0 : index
    %69 = vector.load %arg1[%c6_67, %c0_68, %c0_69] : memref<8x16x128xf32, #tpu.memory_space<vmem>>, vector<1x16x128xf32>
    %70 = vector.shape_cast %69 : vector<1x16x128xf32> to vector<16x128xf32>
    %c7_70 = arith.constant 7 : index
    %c0_71 = arith.constant 0 : index
    %c0_72 = arith.constant 0 : index
    %71 = vector.load %arg1[%c7_70, %c0_71, %c0_72] : memref<8x16x128xf32, #tpu.memory_space<vmem>>, vector<1x16x128xf32>
    %72 = vector.shape_cast %71 : vector<1x16x128xf32> to vector<16x128xf32>
    %73 = tpu.concatenate %58, %60, %62, %64, %66, %68, %70, %72 in 1 : vector<16x128xf32>, vector<16x128xf32>, vector<16x128xf32>, vector<16x128xf32>, vector<16x128xf32>, vector<16x128xf32>, vector<16x128xf32>, vector<16x128xf32> -> vector<16x1024xf32>
    %cst = arith.constant dense<0.000000e+00> : vector<32x1024xf32>
    %74 = tpu.matmul %2, %73, %cst {dimension_numbers = #tpu.dot_dimension_numbers<[1], [0], [0], [1], [0, 0, 1, 1], [], []>} : vector<32x16xf32>, vector<16x1024xf32>, vector<32x1024xf32> -> vector<32x1024xf32>
    %75 = vector.broadcast %34 : vector<32x1xf32> to vector<32x1024xf32>
    %76 = arith.addf %74, %75 : vector<32x1024xf32>
    %cst_73 = arith.constant dense<0.000000e+00> : vector<32x1024xf32>
    %77 = tpu.matmul %5, %73, %cst_73 {dimension_numbers = #tpu.dot_dimension_numbers<[1], [0], [0], [1], [0, 0, 1, 1], [], []>} : vector<32x16xf32>, vector<16x1024xf32>, vector<32x1024xf32> -> vector<32x1024xf32>
    %78 = vector.shape_cast %37 : vector<16x1xf32> to vector<16x1xf32>
    %79 = vector.broadcast %78 : vector<16x1xf32> to vector<16x1024xf32>
    %80 = vector.shape_cast %40 : vector<3x1xf32> to vector<3x1xf32>
    %81 = vector.broadcast %80 : vector<3x1xf32> to vector<3x1024xf32>
    %82 = vector.extract_strided_slice %76 {offsets = [0, 0], sizes = [32, 128], strides = [1, 1]} : vector<32x1024xf32> to vector<32x128xf32>
    %83 = tpu.concatenate %82, %82, %82, %82, %82, %82, %82, %82 in 1 : vector<32x128xf32>, vector<32x128xf32>, vector<32x128xf32>, vector<32x128xf32>, vector<32x128xf32>, vector<32x128xf32>, vector<32x128xf32>, vector<32x128xf32> -> vector<32x1024xf32>
    %84 = arith.addf %83, %77 : vector<32x1024xf32>
    %cst_74 = arith.constant 0.000000e+00 : f32
    %85 = vector.broadcast %cst_74 : f32 to vector<32x1024xf32>
    %86 = arith.maximumf %84, %85 : vector<32x1024xf32>
    %cst_75 = arith.constant dense<0.000000e+00> : vector<16x1024xf32>
    %87 = tpu.matmul %8, %86, %cst_75 {dimension_numbers = #tpu.dot_dimension_numbers<[1], [0], [0], [1], [0, 0, 1, 1], [], []>} : vector<16x32xf32>, vector<32x1024xf32>, vector<16x1024xf32> -> vector<16x1024xf32>
    %88 = arith.addf %87, %79 : vector<16x1024xf32>
    %cst_76 = arith.constant 0.000000e+00 : f32
    %89 = vector.broadcast %cst_76 : f32 to vector<16x1024xf32>
    %90 = arith.maximumf %88, %89 : vector<16x1024xf32>
    %cst_77 = arith.constant dense<0.000000e+00> : vector<3x1024xf32>
    %91 = tpu.matmul %11, %90, %cst_77 {dimension_numbers = #tpu.dot_dimension_numbers<[1], [0], [0], [1], [0, 0, 1, 1], [], []>} : vector<3x16xf32>, vector<16x1024xf32>, vector<3x1024xf32> -> vector<3x1024xf32>
    %92 = arith.addf %91, %81 : vector<3x1024xf32>
    %cst_78 = arith.constant 0.000000e+00 : f32
    %93 = vector.broadcast %cst_78 : f32 to vector<3x1024xf32>
    %94 = arith.maximumf %92, %93 : vector<3x1024xf32>
    %95 = vector.extract_strided_slice %94 {offsets = [0, 128], sizes = [3, 128], strides = [1, 1]} : vector<3x1024xf32> to vector<3x128xf32>
    %96 = vector.extract_strided_slice %94 {offsets = [0, 256], sizes = [3, 128], strides = [1, 1]} : vector<3x1024xf32> to vector<3x128xf32>
    %97 = arith.addf %95, %96 : vector<3x128xf32>
    %98 = vector.extract_strided_slice %94 {offsets = [0, 384], sizes = [3, 128], strides = [1, 1]} : vector<3x1024xf32> to vector<3x128xf32>
    %99 = arith.addf %97, %98 : vector<3x128xf32>
    %100 = vector.extract_strided_slice %94 {offsets = [0, 512], sizes = [3, 128], strides = [1, 1]} : vector<3x1024xf32> to vector<3x128xf32>
    %101 = arith.addf %99, %100 : vector<3x128xf32>
    %102 = vector.extract_strided_slice %94 {offsets = [0, 640], sizes = [3, 128], strides = [1, 1]} : vector<3x1024xf32> to vector<3x128xf32>
    %103 = arith.addf %101, %102 : vector<3x128xf32>
    %104 = vector.extract_strided_slice %94 {offsets = [0, 768], sizes = [3, 128], strides = [1, 1]} : vector<3x1024xf32> to vector<3x128xf32>
    %105 = arith.addf %103, %104 : vector<3x128xf32>
    %106 = vector.extract_strided_slice %94 {offsets = [0, 896], sizes = [3, 128], strides = [1, 1]} : vector<3x1024xf32> to vector<3x128xf32>
    %107 = arith.addf %105, %106 : vector<3x128xf32>
    %108 = vector.extract_strided_slice %76 {offsets = [0, 128], sizes = [32, 128], strides = [1, 1]} : vector<32x1024xf32> to vector<32x128xf32>
    %109 = tpu.concatenate %108, %108, %108, %108, %108, %108, %108, %108 in 1 : vector<32x128xf32>, vector<32x128xf32>, vector<32x128xf32>, vector<32x128xf32>, vector<32x128xf32>, vector<32x128xf32>, vector<32x128xf32>, vector<32x128xf32> -> vector<32x1024xf32>
    %110 = arith.addf %109, %77 : vector<32x1024xf32>
    %cst_79 = arith.constant 0.000000e+00 : f32
    %111 = vector.broadcast %cst_79 : f32 to vector<32x1024xf32>
    %112 = arith.maximumf %110, %111 : vector<32x1024xf32>
    %cst_80 = arith.constant dense<0.000000e+00> : vector<16x1024xf32>
    %113 = tpu.matmul %8, %112, %cst_80 {dimension_numbers = #tpu.dot_dimension_numbers<[1], [0], [0], [1], [0, 0, 1, 1], [], []>} : vector<16x32xf32>, vector<32x1024xf32>, vector<16x1024xf32> -> vector<16x1024xf32>
    %114 = arith.addf %113, %79 : vector<16x1024xf32>
    %cst_81 = arith.constant 0.000000e+00 : f32
    %115 = vector.broadcast %cst_81 : f32 to vector<16x1024xf32>
    %116 = arith.maximumf %114, %115 : vector<16x1024xf32>
    %cst_82 = arith.constant dense<0.000000e+00> : vector<3x1024xf32>
    %117 = tpu.matmul %11, %116, %cst_82 {dimension_numbers = #tpu.dot_dimension_numbers<[1], [0], [0], [1], [0, 0, 1, 1], [], []>} : vector<3x16xf32>, vector<16x1024xf32>, vector<3x1024xf32> -> vector<3x1024xf32>
    %118 = arith.addf %117, %81 : vector<3x1024xf32>
    %cst_83 = arith.constant 0.000000e+00 : f32
    %119 = vector.broadcast %cst_83 : f32 to vector<3x1024xf32>
    %120 = arith.maximumf %118, %119 : vector<3x1024xf32>
    %121 = vector.extract_strided_slice %120 {offsets = [0, 0], sizes = [3, 128], strides = [1, 1]} : vector<3x1024xf32> to vector<3x128xf32>
    %122 = vector.extract_strided_slice %120 {offsets = [0, 256], sizes = [3, 128], strides = [1, 1]} : vector<3x1024xf32> to vector<3x128xf32>
    %123 = arith.addf %121, %122 : vector<3x128xf32>
    %124 = vector.extract_strided_slice %120 {offsets = [0, 384], sizes = [3, 128], strides = [1, 1]} : vector<3x1024xf32> to vector<3x128xf32>
    %125 = arith.addf %123, %124 : vector<3x128xf32>
    %126 = vector.extract_strided_slice %120 {offsets = [0, 512], sizes = [3, 128], strides = [1, 1]} : vector<3x1024xf32> to vector<3x128xf32>
    %127 = arith.addf %125, %126 : vector<3x128xf32>
    %128 = vector.extract_strided_slice %120 {offsets = [0, 640], sizes = [3, 128], strides = [1, 1]} : vector<3x1024xf32> to vector<3x128xf32>
    %129 = arith.addf %127, %128 : vector<3x128xf32>
    %130 = vector.extract_strided_slice %120 {offsets = [0, 768], sizes = [3, 128], strides = [1, 1]} : vector<3x1024xf32> to vector<3x128xf32>
    %131 = arith.addf %129, %130 : vector<3x128xf32>
    %132 = vector.extract_strided_slice %120 {offsets = [0, 896], sizes = [3, 128], strides = [1, 1]} : vector<3x1024xf32> to vector<3x128xf32>
    %133 = arith.addf %131, %132 : vector<3x128xf32>
    %134 = vector.extract_strided_slice %76 {offsets = [0, 256], sizes = [32, 128], strides = [1, 1]} : vector<32x1024xf32> to vector<32x128xf32>
    %135 = tpu.concatenate %134, %134, %134, %134, %134, %134, %134, %134 in 1 : vector<32x128xf32>, vector<32x128xf32>, vector<32x128xf32>, vector<32x128xf32>, vector<32x128xf32>, vector<32x128xf32>, vector<32x128xf32>, vector<32x128xf32> -> vector<32x1024xf32>
    %136 = arith.addf %135, %77 : vector<32x1024xf32>
    %cst_84 = arith.constant 0.000000e+00 : f32
    %137 = vector.broadcast %cst_84 : f32 to vector<32x1024xf32>
    %138 = arith.maximumf %136, %137 : vector<32x1024xf32>
    %cst_85 = arith.constant dense<0.000000e+00> : vector<16x1024xf32>
    %139 = tpu.matmul %8, %138, %cst_85 {dimension_numbers = #tpu.dot_dimension_numbers<[1], [0], [0], [1], [0, 0, 1, 1], [], []>} : vector<16x32xf32>, vector<32x1024xf32>, vector<16x1024xf32> -> vector<16x1024xf32>
    %140 = arith.addf %139, %79 : vector<16x1024xf32>
    %cst_86 = arith.constant 0.000000e+00 : f32
    %141 = vector.broadcast %cst_86 : f32 to vector<16x1024xf32>
    %142 = arith.maximumf %140, %141 : vector<16x1024xf32>
    %cst_87 = arith.constant dense<0.000000e+00> : vector<3x1024xf32>
    %143 = tpu.matmul %11, %142, %cst_87 {dimension_numbers = #tpu.dot_dimension_numbers<[1], [0], [0], [1], [0, 0, 1, 1], [], []>} : vector<3x16xf32>, vector<16x1024xf32>, vector<3x1024xf32> -> vector<3x1024xf32>
    %144 = arith.addf %143, %81 : vector<3x1024xf32>
    %cst_88 = arith.constant 0.000000e+00 : f32
    %145 = vector.broadcast %cst_88 : f32 to vector<3x1024xf32>
    %146 = arith.maximumf %144, %145 : vector<3x1024xf32>
    %147 = vector.extract_strided_slice %146 {offsets = [0, 0], sizes = [3, 128], strides = [1, 1]} : vector<3x1024xf32> to vector<3x128xf32>
    %148 = vector.extract_strided_slice %146 {offsets = [0, 128], sizes = [3, 128], strides = [1, 1]} : vector<3x1024xf32> to vector<3x128xf32>
    %149 = arith.addf %147, %148 : vector<3x128xf32>
    %150 = vector.extract_strided_slice %146 {offsets = [0, 384], sizes = [3, 128], strides = [1, 1]} : vector<3x1024xf32> to vector<3x128xf32>
    %151 = arith.addf %149, %150 : vector<3x128xf32>
    %152 = vector.extract_strided_slice %146 {offsets = [0, 512], sizes = [3, 128], strides = [1, 1]} : vector<3x1024xf32> to vector<3x128xf32>
    %153 = arith.addf %151, %152 : vector<3x128xf32>
    %154 = vector.extract_strided_slice %146 {offsets = [0, 640], sizes = [3, 128], strides = [1, 1]} : vector<3x1024xf32> to vector<3x128xf32>
    %155 = arith.addf %153, %154 : vector<3x128xf32>
    %156 = vector.extract_strided_slice %146 {offsets = [0, 768], sizes = [3, 128], strides = [1, 1]} : vector<3x1024xf32> to vector<3x128xf32>
    %157 = arith.addf %155, %156 : vector<3x128xf32>
    %158 = vector.extract_strided_slice %146 {offsets = [0, 896], sizes = [3, 128], strides = [1, 1]} : vector<3x1024xf32> to vector<3x128xf32>
    %159 = arith.addf %157, %158 : vector<3x128xf32>
    %160 = vector.extract_strided_slice %76 {offsets = [0, 384], sizes = [32, 128], strides = [1, 1]} : vector<32x1024xf32> to vector<32x128xf32>
    %161 = tpu.concatenate %160, %160, %160, %160, %160, %160, %160, %160 in 1 : vector<32x128xf32>, vector<32x128xf32>, vector<32x128xf32>, vector<32x128xf32>, vector<32x128xf32>, vector<32x128xf32>, vector<32x128xf32>, vector<32x128xf32> -> vector<32x1024xf32>
    %162 = arith.addf %161, %77 : vector<32x1024xf32>
    %cst_89 = arith.constant 0.000000e+00 : f32
    %163 = vector.broadcast %cst_89 : f32 to vector<32x1024xf32>
    %164 = arith.maximumf %162, %163 : vector<32x1024xf32>
    %cst_90 = arith.constant dense<0.000000e+00> : vector<16x1024xf32>
    %165 = tpu.matmul %8, %164, %cst_90 {dimension_numbers = #tpu.dot_dimension_numbers<[1], [0], [0], [1], [0, 0, 1, 1], [], []>} : vector<16x32xf32>, vector<32x1024xf32>, vector<16x1024xf32> -> vector<16x1024xf32>
    %166 = arith.addf %165, %79 : vector<16x1024xf32>
    %cst_91 = arith.constant 0.000000e+00 : f32
    %167 = vector.broadcast %cst_91 : f32 to vector<16x1024xf32>
    %168 = arith.maximumf %166, %167 : vector<16x1024xf32>
    %cst_92 = arith.constant dense<0.000000e+00> : vector<3x1024xf32>
    %169 = tpu.matmul %11, %168, %cst_92 {dimension_numbers = #tpu.dot_dimension_numbers<[1], [0], [0], [1], [0, 0, 1, 1], [], []>} : vector<3x16xf32>, vector<16x1024xf32>, vector<3x1024xf32> -> vector<3x1024xf32>
    %170 = arith.addf %169, %81 : vector<3x1024xf32>
    %cst_93 = arith.constant 0.000000e+00 : f32
    %171 = vector.broadcast %cst_93 : f32 to vector<3x1024xf32>
    %172 = arith.maximumf %170, %171 : vector<3x1024xf32>
    %173 = vector.extract_strided_slice %172 {offsets = [0, 0], sizes = [3, 128], strides = [1, 1]} : vector<3x1024xf32> to vector<3x128xf32>
    %174 = vector.extract_strided_slice %172 {offsets = [0, 128], sizes = [3, 128], strides = [1, 1]} : vector<3x1024xf32> to vector<3x128xf32>
    %175 = arith.addf %173, %174 : vector<3x128xf32>
    %176 = vector.extract_strided_slice %172 {offsets = [0, 256], sizes = [3, 128], strides = [1, 1]} : vector<3x1024xf32> to vector<3x128xf32>
    %177 = arith.addf %175, %176 : vector<3x128xf32>
    %178 = vector.extract_strided_slice %172 {offsets = [0, 512], sizes = [3, 128], strides = [1, 1]} : vector<3x1024xf32> to vector<3x128xf32>
    %179 = arith.addf %177, %178 : vector<3x128xf32>
    %180 = vector.extract_strided_slice %172 {offsets = [0, 640], sizes = [3, 128], strides = [1, 1]} : vector<3x1024xf32> to vector<3x128xf32>
    %181 = arith.addf %179, %180 : vector<3x128xf32>
    %182 = vector.extract_strided_slice %172 {offsets = [0, 768], sizes = [3, 128], strides = [1, 1]} : vector<3x1024xf32> to vector<3x128xf32>
    %183 = arith.addf %181, %182 : vector<3x128xf32>
    %184 = vector.extract_strided_slice %172 {offsets = [0, 896], sizes = [3, 128], strides = [1, 1]} : vector<3x1024xf32> to vector<3x128xf32>
    %185 = arith.addf %183, %184 : vector<3x128xf32>
    %186 = vector.extract_strided_slice %76 {offsets = [0, 512], sizes = [32, 128], strides = [1, 1]} : vector<32x1024xf32> to vector<32x128xf32>
    %187 = tpu.concatenate %186, %186, %186, %186, %186, %186, %186, %186 in 1 : vector<32x128xf32>, vector<32x128xf32>, vector<32x128xf32>, vector<32x128xf32>, vector<32x128xf32>, vector<32x128xf32>, vector<32x128xf32>, vector<32x128xf32> -> vector<32x1024xf32>
    %188 = arith.addf %187, %77 : vector<32x1024xf32>
    %cst_94 = arith.constant 0.000000e+00 : f32
    %189 = vector.broadcast %cst_94 : f32 to vector<32x1024xf32>
    %190 = arith.maximumf %188, %189 : vector<32x1024xf32>
    %cst_95 = arith.constant dense<0.000000e+00> : vector<16x1024xf32>
    %191 = tpu.matmul %8, %190, %cst_95 {dimension_numbers = #tpu.dot_dimension_numbers<[1], [0], [0], [1], [0, 0, 1, 1], [], []>} : vector<16x32xf32>, vector<32x1024xf32>, vector<16x1024xf32> -> vector<16x1024xf32>
    %192 = arith.addf %191, %79 : vector<16x1024xf32>
    %cst_96 = arith.constant 0.000000e+00 : f32
    %193 = vector.broadcast %cst_96 : f32 to vector<16x1024xf32>
    %194 = arith.maximumf %192, %193 : vector<16x1024xf32>
    %cst_97 = arith.constant dense<0.000000e+00> : vector<3x1024xf32>
    %195 = tpu.matmul %11, %194, %cst_97 {dimension_numbers = #tpu.dot_dimension_numbers<[1], [0], [0], [1], [0, 0, 1, 1], [], []>} : vector<3x16xf32>, vector<16x1024xf32>, vector<3x1024xf32> -> vector<3x1024xf32>
    %196 = arith.addf %195, %81 : vector<3x1024xf32>
    %cst_98 = arith.constant 0.000000e+00 : f32
    %197 = vector.broadcast %cst_98 : f32 to vector<3x1024xf32>
    %198 = arith.maximumf %196, %197 : vector<3x1024xf32>
    %199 = vector.extract_strided_slice %198 {offsets = [0, 0], sizes = [3, 128], strides = [1, 1]} : vector<3x1024xf32> to vector<3x128xf32>
    %200 = vector.extract_strided_slice %198 {offsets = [0, 128], sizes = [3, 128], strides = [1, 1]} : vector<3x1024xf32> to vector<3x128xf32>
    %201 = arith.addf %199, %200 : vector<3x128xf32>
    %202 = vector.extract_strided_slice %198 {offsets = [0, 256], sizes = [3, 128], strides = [1, 1]} : vector<3x1024xf32> to vector<3x128xf32>
    %203 = arith.addf %201, %202 : vector<3x128xf32>
    %204 = vector.extract_strided_slice %198 {offsets = [0, 384], sizes = [3, 128], strides = [1, 1]} : vector<3x1024xf32> to vector<3x128xf32>
    %205 = arith.addf %203, %204 : vector<3x128xf32>
    %206 = vector.extract_strided_slice %198 {offsets = [0, 640], sizes = [3, 128], strides = [1, 1]} : vector<3x1024xf32> to vector<3x128xf32>
    %207 = arith.addf %205, %206 : vector<3x128xf32>
    %208 = vector.extract_strided_slice %198 {offsets = [0, 768], sizes = [3, 128], strides = [1, 1]} : vector<3x1024xf32> to vector<3x128xf32>
    %209 = arith.addf %207, %208 : vector<3x128xf32>
    %210 = vector.extract_strided_slice %198 {offsets = [0, 896], sizes = [3, 128], strides = [1, 1]} : vector<3x1024xf32> to vector<3x128xf32>
    %211 = arith.addf %209, %210 : vector<3x128xf32>
    %212 = vector.extract_strided_slice %76 {offsets = [0, 640], sizes = [32, 128], strides = [1, 1]} : vector<32x1024xf32> to vector<32x128xf32>
    %213 = tpu.concatenate %212, %212, %212, %212, %212, %212, %212, %212 in 1 : vector<32x128xf32>, vector<32x128xf32>, vector<32x128xf32>, vector<32x128xf32>, vector<32x128xf32>, vector<32x128xf32>, vector<32x128xf32>, vector<32x128xf32> -> vector<32x1024xf32>
    %214 = arith.addf %213, %77 : vector<32x1024xf32>
    %cst_99 = arith.constant 0.000000e+00 : f32
    %215 = vector.broadcast %cst_99 : f32 to vector<32x1024xf32>
    %216 = arith.maximumf %214, %215 : vector<32x1024xf32>
    %cst_100 = arith.constant dense<0.000000e+00> : vector<16x1024xf32>
    %217 = tpu.matmul %8, %216, %cst_100 {dimension_numbers = #tpu.dot_dimension_numbers<[1], [0], [0], [1], [0, 0, 1, 1], [], []>} : vector<16x32xf32>, vector<32x1024xf32>, vector<16x1024xf32> -> vector<16x1024xf32>
    %218 = arith.addf %217, %79 : vector<16x1024xf32>
    %cst_101 = arith.constant 0.000000e+00 : f32
    %219 = vector.broadcast %cst_101 : f32 to vector<16x1024xf32>
    %220 = arith.maximumf %218, %219 : vector<16x1024xf32>
    %cst_102 = arith.constant dense<0.000000e+00> : vector<3x1024xf32>
    %221 = tpu.matmul %11, %220, %cst_102 {dimension_numbers = #tpu.dot_dimension_numbers<[1], [0], [0], [1], [0, 0, 1, 1], [], []>} : vector<3x16xf32>, vector<16x1024xf32>, vector<3x1024xf32> -> vector<3x1024xf32>
    %222 = arith.addf %221, %81 : vector<3x1024xf32>
    %cst_103 = arith.constant 0.000000e+00 : f32
    %223 = vector.broadcast %cst_103 : f32 to vector<3x1024xf32>
    %224 = arith.maximumf %222, %223 : vector<3x1024xf32>
    %225 = vector.extract_strided_slice %224 {offsets = [0, 0], sizes = [3, 128], strides = [1, 1]} : vector<3x1024xf32> to vector<3x128xf32>
    %226 = vector.extract_strided_slice %224 {offsets = [0, 128], sizes = [3, 128], strides = [1, 1]} : vector<3x1024xf32> to vector<3x128xf32>
    %227 = arith.addf %225, %226 : vector<3x128xf32>
    %228 = vector.extract_strided_slice %224 {offsets = [0, 256], sizes = [3, 128], strides = [1, 1]} : vector<3x1024xf32> to vector<3x128xf32>
    %229 = arith.addf %227, %228 : vector<3x128xf32>
    %230 = vector.extract_strided_slice %224 {offsets = [0, 384], sizes = [3, 128], strides = [1, 1]} : vector<3x1024xf32> to vector<3x128xf32>
    %231 = arith.addf %229, %230 : vector<3x128xf32>
    %232 = vector.extract_strided_slice %224 {offsets = [0, 512], sizes = [3, 128], strides = [1, 1]} : vector<3x1024xf32> to vector<3x128xf32>
    %233 = arith.addf %231, %232 : vector<3x128xf32>
    %234 = vector.extract_strided_slice %224 {offsets = [0, 768], sizes = [3, 128], strides = [1, 1]} : vector<3x1024xf32> to vector<3x128xf32>
    %235 = arith.addf %233, %234 : vector<3x128xf32>
    %236 = vector.extract_strided_slice %224 {offsets = [0, 896], sizes = [3, 128], strides = [1, 1]} : vector<3x1024xf32> to vector<3x128xf32>
    %237 = arith.addf %235, %236 : vector<3x128xf32>
    %238 = vector.extract_strided_slice %76 {offsets = [0, 768], sizes = [32, 128], strides = [1, 1]} : vector<32x1024xf32> to vector<32x128xf32>
    %239 = tpu.concatenate %238, %238, %238, %238, %238, %238, %238, %238 in 1 : vector<32x128xf32>, vector<32x128xf32>, vector<32x128xf32>, vector<32x128xf32>, vector<32x128xf32>, vector<32x128xf32>, vector<32x128xf32>, vector<32x128xf32> -> vector<32x1024xf32>
    %240 = arith.addf %239, %77 : vector<32x1024xf32>
    %cst_104 = arith.constant 0.000000e+00 : f32
    %241 = vector.broadcast %cst_104 : f32 to vector<32x1024xf32>
    %242 = arith.maximumf %240, %241 : vector<32x1024xf32>
    %cst_105 = arith.constant dense<0.000000e+00> : vector<16x1024xf32>
    %243 = tpu.matmul %8, %242, %cst_105 {dimension_numbers = #tpu.dot_dimension_numbers<[1], [0], [0], [1], [0, 0, 1, 1], [], []>} : vector<16x32xf32>, vector<32x1024xf32>, vector<16x1024xf32> -> vector<16x1024xf32>
    %244 = arith.addf %243, %79 : vector<16x1024xf32>
    %cst_106 = arith.constant 0.000000e+00 : f32
    %245 = vector.broadcast %cst_106 : f32 to vector<16x1024xf32>
    %246 = arith.maximumf %244, %245 : vector<16x1024xf32>
    %cst_107 = arith.constant dense<0.000000e+00> : vector<3x1024xf32>
    %247 = tpu.matmul %11, %246, %cst_107 {dimension_numbers = #tpu.dot_dimension_numbers<[1], [0], [0], [1], [0, 0, 1, 1], [], []>} : vector<3x16xf32>, vector<16x1024xf32>, vector<3x1024xf32> -> vector<3x1024xf32>
    %248 = arith.addf %247, %81 : vector<3x1024xf32>
    %cst_108 = arith.constant 0.000000e+00 : f32
    %249 = vector.broadcast %cst_108 : f32 to vector<3x1024xf32>
    %250 = arith.maximumf %248, %249 : vector<3x1024xf32>
    %251 = vector.extract_strided_slice %250 {offsets = [0, 0], sizes = [3, 128], strides = [1, 1]} : vector<3x1024xf32> to vector<3x128xf32>
    %252 = vector.extract_strided_slice %250 {offsets = [0, 128], sizes = [3, 128], strides = [1, 1]} : vector<3x1024xf32> to vector<3x128xf32>
    %253 = arith.addf %251, %252 : vector<3x128xf32>
    %254 = vector.extract_strided_slice %250 {offsets = [0, 256], sizes = [3, 128], strides = [1, 1]} : vector<3x1024xf32> to vector<3x128xf32>
    %255 = arith.addf %253, %254 : vector<3x128xf32>
    %256 = vector.extract_strided_slice %250 {offsets = [0, 384], sizes = [3, 128], strides = [1, 1]} : vector<3x1024xf32> to vector<3x128xf32>
    %257 = arith.addf %255, %256 : vector<3x128xf32>
    %258 = vector.extract_strided_slice %250 {offsets = [0, 512], sizes = [3, 128], strides = [1, 1]} : vector<3x1024xf32> to vector<3x128xf32>
    %259 = arith.addf %257, %258 : vector<3x128xf32>
    %260 = vector.extract_strided_slice %250 {offsets = [0, 640], sizes = [3, 128], strides = [1, 1]} : vector<3x1024xf32> to vector<3x128xf32>
    %261 = arith.addf %259, %260 : vector<3x128xf32>
    %262 = vector.extract_strided_slice %250 {offsets = [0, 896], sizes = [3, 128], strides = [1, 1]} : vector<3x1024xf32> to vector<3x128xf32>
    %263 = arith.addf %261, %262 : vector<3x128xf32>
    %264 = vector.extract_strided_slice %76 {offsets = [0, 896], sizes = [32, 128], strides = [1, 1]} : vector<32x1024xf32> to vector<32x128xf32>
    %265 = tpu.concatenate %264, %264, %264, %264, %264, %264, %264, %264 in 1 : vector<32x128xf32>, vector<32x128xf32>, vector<32x128xf32>, vector<32x128xf32>, vector<32x128xf32>, vector<32x128xf32>, vector<32x128xf32>, vector<32x128xf32> -> vector<32x1024xf32>
    %266 = arith.addf %265, %77 : vector<32x1024xf32>
    %cst_109 = arith.constant 0.000000e+00 : f32
    %267 = vector.broadcast %cst_109 : f32 to vector<32x1024xf32>
    %268 = arith.maximumf %266, %267 : vector<32x1024xf32>
    %cst_110 = arith.constant dense<0.000000e+00> : vector<16x1024xf32>
    %269 = tpu.matmul %8, %268, %cst_110 {dimension_numbers = #tpu.dot_dimension_numbers<[1], [0], [0], [1], [0, 0, 1, 1], [], []>} : vector<16x32xf32>, vector<32x1024xf32>, vector<16x1024xf32> -> vector<16x1024xf32>
    %270 = arith.addf %269, %79 : vector<16x1024xf32>
    %cst_111 = arith.constant 0.000000e+00 : f32
    %271 = vector.broadcast %cst_111 : f32 to vector<16x1024xf32>
    %272 = arith.maximumf %270, %271 : vector<16x1024xf32>
    %cst_112 = arith.constant dense<0.000000e+00> : vector<3x1024xf32>
    %273 = tpu.matmul %11, %272, %cst_112 {dimension_numbers = #tpu.dot_dimension_numbers<[1], [0], [0], [1], [0, 0, 1, 1], [], []>} : vector<3x16xf32>, vector<16x1024xf32>, vector<3x1024xf32> -> vector<3x1024xf32>
    %274 = arith.addf %273, %81 : vector<3x1024xf32>
    %cst_113 = arith.constant 0.000000e+00 : f32
    %275 = vector.broadcast %cst_113 : f32 to vector<3x1024xf32>
    %276 = arith.maximumf %274, %275 : vector<3x1024xf32>
    %277 = vector.extract_strided_slice %276 {offsets = [0, 0], sizes = [3, 128], strides = [1, 1]} : vector<3x1024xf32> to vector<3x128xf32>
    %278 = vector.extract_strided_slice %276 {offsets = [0, 128], sizes = [3, 128], strides = [1, 1]} : vector<3x1024xf32> to vector<3x128xf32>
    %279 = arith.addf %277, %278 : vector<3x128xf32>
    %280 = vector.extract_strided_slice %276 {offsets = [0, 256], sizes = [3, 128], strides = [1, 1]} : vector<3x1024xf32> to vector<3x128xf32>
    %281 = arith.addf %279, %280 : vector<3x128xf32>
    %282 = vector.extract_strided_slice %276 {offsets = [0, 384], sizes = [3, 128], strides = [1, 1]} : vector<3x1024xf32> to vector<3x128xf32>
    %283 = arith.addf %281, %282 : vector<3x128xf32>
    %284 = vector.extract_strided_slice %276 {offsets = [0, 512], sizes = [3, 128], strides = [1, 1]} : vector<3x1024xf32> to vector<3x128xf32>
    %285 = arith.addf %283, %284 : vector<3x128xf32>
    %286 = vector.extract_strided_slice %276 {offsets = [0, 640], sizes = [3, 128], strides = [1, 1]} : vector<3x1024xf32> to vector<3x128xf32>
    %287 = arith.addf %285, %286 : vector<3x128xf32>
    %288 = vector.extract_strided_slice %276 {offsets = [0, 768], sizes = [3, 128], strides = [1, 1]} : vector<3x1024xf32> to vector<3x128xf32>
    %289 = arith.addf %287, %288 : vector<3x128xf32>
    %290 = tpu.concatenate %107, %133, %159, %185, %211, %237, %263, %289 in 1 : vector<3x128xf32>, vector<3x128xf32>, vector<3x128xf32>, vector<3x128xf32>, vector<3x128xf32>, vector<3x128xf32>, vector<3x128xf32>, vector<3x128xf32> -> vector<3x1024xf32>
    %cst_114 = arith.constant dense<0.000000e+00> : vector<32x1024xf32>
    %291 = tpu.matmul %14, %73, %cst_114 {dimension_numbers = #tpu.dot_dimension_numbers<[1], [0], [0], [1], [0, 0, 1, 1], [], []>} : vector<32x16xf32>, vector<16x1024xf32>, vector<32x1024xf32> -> vector<32x1024xf32>
    %cst_115 = arith.constant dense<0.000000e+00> : vector<32x1024xf32>
    %292 = tpu.matmul %17, %290, %cst_115 {dimension_numbers = #tpu.dot_dimension_numbers<[1], [0], [0], [1], [0, 0, 1, 1], [], []>} : vector<32x3xf32>, vector<3x1024xf32>, vector<32x1024xf32> -> vector<32x1024xf32>
    %293 = arith.addf %291, %292 : vector<32x1024xf32>
    %294 = vector.broadcast %42 : vector<32x1xf32> to vector<32x1024xf32>
    %295 = arith.addf %293, %294 : vector<32x1024xf32>
    %cst_116 = arith.constant 0.000000e+00 : f32
    %296 = vector.broadcast %cst_116 : f32 to vector<32x1024xf32>
    %297 = arith.maximumf %295, %296 : vector<32x1024xf32>
    %cst_117 = arith.constant dense<0.000000e+00> : vector<16x1024xf32>
    %298 = tpu.matmul %20, %297, %cst_117 {dimension_numbers = #tpu.dot_dimension_numbers<[1], [0], [0], [1], [0, 0, 1, 1], [], []>} : vector<16x32xf32>, vector<32x1024xf32>, vector<16x1024xf32> -> vector<16x1024xf32>
    %299 = vector.broadcast %45 : vector<16x1xf32> to vector<16x1024xf32>
    %300 = arith.addf %298, %299 : vector<16x1024xf32>
    %cst_118 = arith.constant 0.000000e+00 : f32
    %301 = vector.broadcast %cst_118 : f32 to vector<16x1024xf32>
    %302 = arith.maximumf %300, %301 : vector<16x1024xf32>
    %cst_119 = arith.constant dense<0.000000e+00> : vector<8x1024xf32>
    %303 = tpu.matmul %23, %302, %cst_119 {dimension_numbers = #tpu.dot_dimension_numbers<[1], [0], [0], [1], [0, 0, 1, 1], [], []>} : vector<8x16xf32>, vector<16x1024xf32>, vector<8x1024xf32> -> vector<8x1024xf32>
    %304 = vector.broadcast %48 : vector<8x1xf32> to vector<8x1024xf32>
    %305 = arith.addf %303, %304 : vector<8x1024xf32>
    %cst_120 = arith.constant 0.000000e+00 : f32
    %306 = vector.broadcast %cst_120 : f32 to vector<8x1024xf32>
    %307 = arith.maximumf %305, %306 : vector<8x1024xf32>
    %308 = vector.extract_strided_slice %307 {offsets = [0, 0], sizes = [8, 128], strides = [1, 1]} : vector<8x1024xf32> to vector<8x128xf32>
    %309 = vector.extract_strided_slice %307 {offsets = [0, 128], sizes = [8, 128], strides = [1, 1]} : vector<8x1024xf32> to vector<8x128xf32>
    %310 = vector.extract_strided_slice %307 {offsets = [0, 256], sizes = [8, 128], strides = [1, 1]} : vector<8x1024xf32> to vector<8x128xf32>
    %311 = vector.extract_strided_slice %307 {offsets = [0, 384], sizes = [8, 128], strides = [1, 1]} : vector<8x1024xf32> to vector<8x128xf32>
    %312 = vector.extract_strided_slice %307 {offsets = [0, 512], sizes = [8, 128], strides = [1, 1]} : vector<8x1024xf32> to vector<8x128xf32>
    %313 = vector.extract_strided_slice %307 {offsets = [0, 640], sizes = [8, 128], strides = [1, 1]} : vector<8x1024xf32> to vector<8x128xf32>
    %314 = vector.extract_strided_slice %307 {offsets = [0, 768], sizes = [8, 128], strides = [1, 1]} : vector<8x1024xf32> to vector<8x128xf32>
    %315 = vector.extract_strided_slice %307 {offsets = [0, 896], sizes = [8, 128], strides = [1, 1]} : vector<8x1024xf32> to vector<8x128xf32>
    %316 = tpu.concatenate %308, %309, %310, %311, %312, %313, %314, %315 in 0 : vector<8x128xf32>, vector<8x128xf32>, vector<8x128xf32>, vector<8x128xf32>, vector<8x128xf32>, vector<8x128xf32>, vector<8x128xf32>, vector<8x128xf32> -> vector<64x128xf32>
    %cst_121 = arith.constant dense<0.000000e+00> : vector<32x128xf32>
    %317 = tpu.matmul %26, %316, %cst_121 {dimension_numbers = #tpu.dot_dimension_numbers<[1], [0], [0], [1], [0, 0, 1, 1], [], []>} : vector<32x64xf32>, vector<64x128xf32>, vector<32x128xf32> -> vector<32x128xf32>
    %318 = vector.broadcast %50 : vector<32x1xf32> to vector<32x128xf32>
    %319 = arith.addf %317, %318 : vector<32x128xf32>
    %cst_122 = arith.constant 0.000000e+00 : f32
    %320 = vector.broadcast %cst_122 : f32 to vector<32x128xf32>
    %321 = arith.maximumf %319, %320 : vector<32x128xf32>
    %cst_123 = arith.constant dense<0.000000e+00> : vector<16x128xf32>
    %322 = tpu.matmul %29, %321, %cst_123 {dimension_numbers = #tpu.dot_dimension_numbers<[1], [0], [0], [1], [0, 0, 1, 1], [], []>} : vector<16x32xf32>, vector<32x128xf32>, vector<16x128xf32> -> vector<16x128xf32>
    %323 = vector.broadcast %53 : vector<16x1xf32> to vector<16x128xf32>
    %324 = arith.addf %322, %323 : vector<16x128xf32>
    %cst_124 = arith.constant 0.000000e+00 : f32
    %325 = vector.broadcast %cst_124 : f32 to vector<16x128xf32>
    %326 = arith.maximumf %324, %325 : vector<16x128xf32>
    %cst_125 = arith.constant dense<0.000000e+00> : vector<4x128xf32>
    %327 = tpu.matmul %32, %326, %cst_125 {dimension_numbers = #tpu.dot_dimension_numbers<[1], [0], [0], [1], [0, 0, 1, 1], [], []>} : vector<4x16xf32>, vector<16x128xf32>, vector<4x128xf32> -> vector<4x128xf32>
    %328 = vector.broadcast %56 : vector<4x1xf32> to vector<4x128xf32>
    %329 = arith.addf %327, %328 : vector<4x128xf32>
    %c0_126 = arith.constant 0 : index
    %c0_127 = arith.constant 0 : index
    %330 = vector.load %arg4[%c0_126, %c0_127] : memref<4x128xf32, #tpu.memory_space<vmem>>, vector<4x128xf32>
    tpu.vector_store %arg4[%c0_126, %c0_127], %329 {strides = array<i32>} : memref<4x128xf32, #tpu.memory_space<vmem>>, vector<4x128xf32>,
    return
  }
  func.func @transform_0(%arg0: i32) -> (i32, i32, i32) {
    %c0_i32 = arith.constant 0 : i32
    %c0_i32_0 = arith.constant 0 : i32
    %c0_i32_1 = arith.constant 0 : i32
    return %c0_i32, %c0_i32_0, %arg0 : i32, i32, i32
  }
  func.func @transform_1(%arg0: i32) -> (i32, i32, i32) {
    %c0_i32 = arith.constant 0 : i32
    %c0_i32_0 = arith.constant 0 : i32
    %c0_i32_1 = arith.constant 0 : i32
    %c0_i32_2 = arith.constant 0 : i32
    return %c0_i32, %c0_i32_0, %c0_i32_1 : i32, i32, i32
  }
  func.func @transform_2(%arg0: i32) -> (i32, i32, i32) {
    %c0_i32 = arith.constant 0 : i32
    %c0_i32_0 = arith.constant 0 : i32
    %c0_i32_1 = arith.constant 0 : i32
    %c0_i32_2 = arith.constant 0 : i32
    return %c0_i32, %c0_i32_0, %c0_i32_1 : i32, i32, i32
  }
  func.func @transform_3(%arg0: i32) -> (i32, i32) {
    %c0_i32 = arith.constant 0 : i32
    %c0_i32_0 = arith.constant 0 : i32
    return %c0_i32, %arg0 : i32, i32
  }
}

</mosaic_0001>

<llo_original>
// kernel: tpu_custom_call.1
$region0: #{tpu_custom_call.1}
  #allocation0 [shape = 'u32[]', space=smem, size = 0x4, offset = 0x4, fixed_abs, tag = 'smem constant byte address 0x4 - core index']
  #allocation1 [shape = 'u32[72,128]{1,0:T(1,128)}', space=vmem, size = 0x9000, scoped, tag = 'internal scratch']
  %s0 = inlined_call_operand.hbm [shape: f32[8,16,512], index: 0, kind: input, shape index: {}]
  %s1 = inlined_call_operand.hbm [shape: f32[11,32,128], index: 1, kind: input, shape index: {}]
  %s2 = inlined_call_operand.vmem [shape: f32[9,32,1], index: 2, kind: input, shape index: {}]
  %s3 = inlined_call_operand.hbm [shape: f32[4,512], index: 3, kind: output, shape index: {}]
  %s4 = sld [smem:[#allocation0]]
  $region53: #{tpu_custom_call.1} parent=0
    _
  %s6 = ssub.s32 1, %s4
  %s7 = scalar_select 0, %s6, %s4
  $region1: #{tpu_custom_call.1} parent=0
    #allocation2 [shape = 'u8[131072]{0}', space=vmem, size = 0x20000, scoped, tag = 'input window, operand 0']
    #allocation3 [shape = 's32[2]{0}', space=sflag, size = 0x8, scoped, tag = 'scoped memory for tpu_custom_call.1']
    #allocation4 [shape = 's32[2]{0}', space=sflag, size = 0x8, scoped, tag = 'scoped memory for tpu_custom_call.1']
    #allocation5 [shape = 'u8[180224]{0}', space=vmem, size = 0x2c000, scoped, tag = 'input window, operand 1, single buffered']
    #allocation6 [shape = 's32[1]{0}', space=sflag, size = 0x4, scoped, tag = 'scoped memory for tpu_custom_call.1']
    #allocation7 [shape = 'u8[4096]{0}', space=vmem, size = 0x1000, scoped, tag = 'output window, operand 0']
    %8 = vsyncpa [#allocation3], 0
    %s9 = scalar_lea.sflag [#allocation3], 1
    %10 = vsyncpa %s9, 0
    %11 = vsyncpa [#allocation6], 0
    %12 = vsyncpa [#allocation4], 0
    %s13 = scalar_lea.sflag [#allocation4], 1
    %14 = vsyncpa %s13, 0
    loop: start=0, step=1, limit=6
    $region2: #{tpu_custom_call.1} parent=1 // loop_pre_header
      _
    $region3: #{tpu_custom_call.1} parent=1 // loop_header
      %s16 = sphi 0, %s20
      %p17 = scmp.ge.s32.totalorder %s16, 6
      %s26 = sphi 0, %s28
      %s29 = sphi 0, %s26
      %s30 = sphi 0, %s29
      %s46 = sphi 0, %s30
      %s50 = sphi 0, %s50
      %s52 = sphi 0, %s50
      %s53 = sphi 0, %s52
      %s67 = sphi 0, %s53
      %s71 = sphi 0, %s71
      %s73 = sphi 0, %s71
      %s74 = sphi 0, %s73
      %s88 = sphi 0, %s74
      %s94 = sphi 0, %s96
      %s97 = sphi 0, %s94
      %s98 = sphi 0, %s97
      %s114 = sphi 0, %s98
    $region4: #{tpu_custom_call.1} parent=1 // loop_header_branch
      %19 = sbr.rel (%p17) target = $region8
    $region5: #{tpu_custom_call.1} parent=1 // loop_body
      %s21 = ssub.s32 %s16, 1
      %s22 = ssub.s32 %s16, 2
      %s23 = sadd.s32 %s16, 1
      %s24 = ssub.s32 %s16, %s23
      %p25 = scmp.eq.s32.totalorder %s24, 0
      %s27 = sadd.s32 %s26, 1
      %s28 = scalar_select %p25, %s26, %s27
      %p31 = pneg %p25
      %p32 = scmp.eq.s32.totalorder %s16, 3
      %p33 = por %p31, %p32
      %p34 = scmp.ne.s32.totalorder %s26, %s29
      %p35 = scmp.eq.s32.totalorder %s16, 0
      %p36 = por %p34, %p35
      %p37 = scmp.ne.s32.totalorder %s26, %s29
      %p38 = scmp.eq.s32.totalorder %s21, 3
      %p39 = por %p37, %p38
      %p40 = scmp.ne.s32.totalorder %s29, %s30
      %p41 = scmp.eq.s32.totalorder %s21, 0
      %p42 = por %p40, %p41
      %p43 = scmp.ne.s32.totalorder %s29, %s30
      %p44 = scmp.eq.s32.totalorder %s22, 3
      %p45 = por %p43, %p44
      %p47 = scmp.ne.s32.totalorder %s30, %s46
      %p48 = scmp.eq.s32.totalorder %s22, 0
      %p49 = por %p47, %p48
      %s51 = sadd.s32 %s50, 1
      %p54 = scmp.eq.s32.totalorder %s16, 3
      %p55 = scmp.ne.s32.totalorder %s50, %s52
      %p56 = scmp.eq.s32.totalorder %s16, 0
      %p57 = por %p55, %p56
      %p58 = scmp.ne.s32.totalorder %s50, %s52
      %p59 = scmp.eq.s32.totalorder %s21, 3
      %p60 = por %p58, %p59
      %p61 = scmp.ne.s32.totalorder %s52, %s53
      %p62 = scmp.eq.s32.totalorder %s21, 0
      %p63 = por %p61, %p62
      %p64 = scmp.ne.s32.totalorder %s52, %s53
      %p65 = scmp.eq.s32.totalorder %s22, 3
      %p66 = por %p64, %p65
      %p68 = scmp.ne.s32.totalorder %s53, %s67
      %p69 = scmp.eq.s32.totalorder %s22, 0
      %p70 = por %p68, %p69
      %s72 = sadd.s32 %s71, 1
      %p75 = scmp.eq.s32.totalorder %s16, 3
      %p76 = scmp.ne.s32.totalorder %s71, %s73
      %p77 = scmp.eq.s32.totalorder %s16, 0
      %p78 = por %p76, %p77
      %p79 = scmp.ne.s32.totalorder %s71, %s73
      %p80 = scmp.eq.s32.totalorder %s21, 3
      %p81 = por %p79, %p80
      %p82 = scmp.ne.s32.totalorder %s73, %s74
      %p83 = scmp.eq.s32.totalorder %s21, 0
      %p84 = por %p82, %p83
      %p85 = scmp.ne.s32.totalorder %s73, %s74
      %p86 = scmp.eq.s32.totalorder %s22, 3
      %p87 = por %p85, %p86
      %p89 = scmp.ne.s32.totalorder %s74, %s88
      %p90 = scmp.eq.s32.totalorder %s22, 0
      %p91 = por %p89, %p90
      %s92 = ssub.s32 %s16, %s23
      %p93 = scmp.eq.s32.totalorder %s92, 0
      %s95 = sadd.s32 %s94, 1
      %s96 = scalar_select %p93, %s94, %s95
      %p99 = pneg %p93
      %p100 = scmp.eq.s32.totalorder %s16, 3
      %p101 = por %p99, %p100
      %p102 = scmp.ne.s32.totalorder %s94, %s97
      %p103 = scmp.eq.s32.totalorder %s16, 0
      %p104 = por %p102, %p103
      %p105 = scmp.ne.s32.totalorder %s94, %s97
      %p106 = scmp.eq.s32.totalorder %s21, 3
      %p107 = por %p105, %p106
      %p108 = scmp.ne.s32.totalorder %s97, %s98
      %p109 = scmp.eq.s32.totalorder %s21, 0
      %p110 = por %p108, %p109
      %p111 = scmp.ne.s32.totalorder %s97, %s98
      %p112 = scmp.eq.s32.totalorder %s22, 3
      %p113 = por %p111, %p112
      %p115 = scmp.ne.s32.totalorder %s98, %s114
      %p116 = scmp.eq.s32.totalorder %s22, 0
      %p117 = por %p115, %p116
      %p118 = scmp.le.s32.totalorder 1, %s16
      %p119 = scmp.lt.s32.totalorder %s16, 5
      %p120 = pnand %p118, %p119
      %p121 = pneg %p120
      // Predicated region
      $region9: #{tpu_custom_call.1} parent=5 // pred_check
        _
      $region10: #{tpu_custom_call.1} parent=5 // pred_check_branch
        %123 = sbr.rel (%p120) target = $region12
      $region11: #{tpu_custom_call.1} parent=5 // pred_region
        %s124 = ssub.s32 %s16, 1
        // Predicated region
        $region13: #{tpu_custom_call.1} parent=11 // pred_check
          %p125 = pneg %p63
        $region14: #{tpu_custom_call.1} parent=11 // pred_check_branch
          %127 = sbr.rel (%p125) target = $region16
        $region15: #{tpu_custom_call.1} parent=11 // pred_region
          %129 = vsyncadd [#allocation6], 0
          %s130 = sshll.u32 %s1, 4
          %s131 = int_to_ptr.hbm [resolvable:$true] %s130
          %s132 = sshll.u32 [#allocation5], 4
          %s133 = int_to_ptr.vmem [resolvable:$true] %s132
          %138 = dma.hbm_to_vmem [thread:$0]  %s131, 5632, %s133, [#allocation6], 128, 128, 8
        $region16: #{tpu_custom_call.1} parent=11 // pred_fallthru
          _
        // Predicated region
        $region17: #{tpu_custom_call.1} parent=11 // pred_check
          %p139 = pneg %p84
        $region18: #{tpu_custom_call.1} parent=11 // pred_check_branch
          %141 = sbr.rel (%p139) target = $region20
        $region19: #{tpu_custom_call.1} parent=11 // pred_region
          _
        $region20: #{tpu_custom_call.1} parent=11 // pred_fallthru
          _
      $region12: #{tpu_custom_call.1} parent=5 // pred_fallthru
        _
      %p142 = scmp.lt.s32.totalorder %s16, 4
      // Predicated region
      $region21: #{tpu_custom_call.1} parent=5 // pred_check
        %p143 = pneg %p142
      $region22: #{tpu_custom_call.1} parent=5 // pred_check_branch
        %145 = sbr.rel (%p143) target = $region24
      $region23: #{tpu_custom_call.1} parent=5 // pred_region
        // Predicated region
        $region25: #{tpu_custom_call.1} parent=23 // pred_check
          %p146 = pneg %p36
        $region26: #{tpu_custom_call.1} parent=23 // pred_check_branch
          %148 = sbr.rel (%p146) target = $region28
        $region27: #{tpu_custom_call.1} parent=23 // pred_region
          %s149 = sand.u32 %s26, 1
          %s150 = scalar_lea.sflag [#allocation3], %s149
          %s151 = sand.u32 %s26, 1
          %s152 = smul.addr %s151, 128
          %s153 = scalar_lea.vmem [#allocation2], %s152
          %155 = vsyncadd %s150, 0
          %s156 = smul.addr %s16, 8
          %s157 = scalar_lea.hbm %s0, %s156
          %s158 = sshll.u32 %s157, 4
          %s159 = int_to_ptr.hbm [resolvable:$true] %s158
          %s160 = sshll.u32 %s153, 4
          %s161 = int_to_ptr.vmem [resolvable:$true] %s160
          %166 = dma.hbm_to_vmem [thread:$0]  %s159, 2048, %s161, %s150, 512, 128, 8
        $region28: #{tpu_custom_call.1} parent=23 // pred_fallthru
          _
      $region24: #{tpu_custom_call.1} parent=5 // pred_fallthru
        _
      %p167 = scmp.le.s32.totalorder 1, %s16
      %p168 = scmp.lt.s32.totalorder %s16, 5
      %p169 = pnand %p167, %p168
      %p170 = pneg %p169
      // Predicated region
      $region29: #{tpu_custom_call.1} parent=5 // pred_check
        _
      $region30: #{tpu_custom_call.1} parent=5 // pred_check_branch
        %172 = sbr.rel (%p169) target = $region32
      $region31: #{tpu_custom_call.1} parent=5 // pred_region
        %s173 = ssub.s32 %s16, 1
        %s174 = sand.u32 %s29, 1
        %s175 = scalar_lea.sflag [#allocation3], %s174
        %s176 = sand.u32 %s29, 1
        %s177 = smul.addr %s176, 128
        %s178 = scalar_lea.vmem [#allocation2], %s177
        // Predicated region
        $region33: #{tpu_custom_call.1} parent=31 // pred_check
          %p179 = pneg %p42
        $region34: #{tpu_custom_call.1} parent=31 // pred_check_branch
          %181 = sbr.rel (%p179) target = $region36
        $region35: #{tpu_custom_call.1} parent=31 // pred_region
          %183 = dma.done %s175, 2048
        $region36: #{tpu_custom_call.1} parent=31 // pred_fallthru
          _
        // Predicated region
        $region37: #{tpu_custom_call.1} parent=31 // pred_check
          %p184 = pneg %p63
        $region38: #{tpu_custom_call.1} parent=31 // pred_check_branch
          %186 = sbr.rel (%p184) target = $region40
        $region39: #{tpu_custom_call.1} parent=31 // pred_region
          %188 = dma.done [#allocation6], 5632
        $region40: #{tpu_custom_call.1} parent=31 // pred_fallthru
          _
        %s189 = sand.u32 %s29, 1
        %s190 = scalar_lea.sflag [#allocation3], %s189
        %s191 = sand.u32 %s29, 1
        %s192 = smul.addr %s191, 128
        %s193 = scalar_lea.vmem [#allocation2], %s192
        %p194 = pneg %p42
        %p195 = pneg %p39
        %p196 = pneg %p63
        %p197 = pneg %p60
        %p198 = pneg %p84
        %p199 = pneg %p81
        %p200 = pneg %p110
        %p201 = pneg %p107
        %s202 = sand.u32 %s97, 1
        %s203 = scalar_lea.sflag [#allocation4], %s202
        %s204 = sand.u32 %s97, 1
        %s205 = smul.addr %s204, 4
        %s206 = scalar_lea.vmem [#allocation7], %s205
        %v207 = vld [vmem:[#allocation5] sm:$0xff]
        %v208 = vld [vmem:[#allocation5 + $0x8] sm:$0xff]
        %v209 = vld [vmem:[#allocation5 + $0x10] sm:$0xff]
        %v210 = vld [vmem:[#allocation5 + $0x18] sm:$0xff]
        %s211 = scalar_lea.vmem [#allocation5], 32
        %v212 = vld [vmem:[%s211] sm:$0xff]
        %v213 = vld [vmem:[%s211 + $0x8] sm:$0xff]
        %v214 = vld [vmem:[%s211 + $0x10] sm:$0xff]
        %v215 = vld [vmem:[%s211 + $0x18] sm:$0xff]
        %s216 = scalar_lea.vmem [#allocation5], 64
        %v217 = vld [vmem:[%s216] sm:$0xff]
        %v218 = vld [vmem:[%s216 + $0x8] sm:$0xff]
        %s219 = scalar_lea.vmem [#allocation5], 96
        %v220 = vld [vmem:[%s219] sm:$0xff]
        %s221 = scalar_lea.vmem [#allocation5], 128
        %v222 = vld [vmem:[%s221] sm:$0xff]
        %v223 = vld [vmem:[%s221 + $0x8] sm:$0xff]
        %v224 = vld [vmem:[%s221 + $0x10] sm:$0xff]
        %v225 = vld [vmem:[%s221 + $0x18] sm:$0xff]
        %s226 = scalar_lea.vmem [#allocation5], 160
        %v227 = vld [vmem:[%s226] sm:$0xff]
        %v228 = vld [vmem:[%s226 + $0x8] sm:$0xff]
        %v229 = vld [vmem:[%s226 + $0x10] sm:$0xff]
        %v230 = vld [vmem:[%s226 + $0x18] sm:$0xff]
        %s231 = scalar_lea.vmem [#allocation5], 192
        %v232 = vld [vmem:[%s231] sm:$0xff]
        %v233 = vld [vmem:[%s231 + $0x8] sm:$0xff]
        %s234 = scalar_lea.vmem [#allocation5], 224
        %v235 = vld [vmem:[%s234] sm:$0xff]
        %s236 = scalar_lea.vmem [#allocation5], 256
        %v237 = vld [vmem:[%s236] sm:$0xff]
        %v238 = vld [vmem:[%s236 + $0x8] sm:$0xff]
        %v239 = vld [vmem:[%s236 + $0x10] sm:$0xff]
        %v240 = vld [vmem:[%s236 + $0x18] sm:$0xff]
        %s241 = scalar_lea.vmem [#allocation5], 288
        %v242 = vld [vmem:[%s241] sm:$0xff]
        %v243 = vld [vmem:[%s241 + $0x8] sm:$0xff]
        %s244 = scalar_lea.vmem [#allocation5], 320
        %v245 = vld [vmem:[%s244] sm:$0xff]
        %v246 = vld [vmem:[%s2] sm:$0xff]
        %v247 = vld [vmem:[%s2 + $0x8] sm:$0xff]
        %v248 = vld [vmem:[%s2 + $0x10] sm:$0xff]
        %v249 = vld [vmem:[%s2 + $0x18] sm:$0xff]
        %s250 = scalar_lea.vmem %s2, 32
        %v251 = vld [vmem:[%s250] sm:$0xff]
        %v252 = vld [vmem:[%s250 + $0x8] sm:$0xff]
        %s253 = scalar_lea.vmem %s2, 64
        %v254 = vld [vmem:[%s253] sm:$0xff]
        %s255 = scalar_lea.vmem %s2, 96
        %v256 = vld [vmem:[%s255] sm:$0xff]
        %v257 = vld [vmem:[%s255 + $0x8] sm:$0xff]
        %v258 = vld [vmem:[%s255 + $0x10] sm:$0xff]
        %v259 = vld [vmem:[%s255 + $0x18] sm:$0xff]
        %s260 = scalar_lea.vmem %s2, 128
        %v261 = vld [vmem:[%s260] sm:$0xff]
        %v262 = vld [vmem:[%s260 + $0x8] sm:$0xff]
        %s263 = scalar_lea.vmem %s2, 160
        %v264 = vld [vmem:[%s263] sm:$0xff]
        %s265 = scalar_lea.vmem %s2, 192
        %v266 = vld [vmem:[%s265] sm:$0xff]
        %v267 = vld [vmem:[%s265 + $0x8] sm:$0xff]
        %v268 = vld [vmem:[%s265 + $0x10] sm:$0xff]
        %v269 = vld [vmem:[%s265 + $0x18] sm:$0xff]
        %s270 = scalar_lea.vmem %s2, 224
        %v271 = vld [vmem:[%s270] sm:$0xff]
        %v272 = vld [vmem:[%s270 + $0x8] sm:$0xff]
        %s273 = scalar_lea.vmem %s2, 256
        %v274 = vld [vmem:[%s273] sm:$0xff]
        %v275 = vld [vmem:[%s178] sm:$0xff]
        %v276 = vld [vmem:[%s178 + $0x8] sm:$0xff]
        %s277 = scalar_lea.vmem %s178, 16 [#allocation2]
        %v278 = vld [vmem:[%s277] sm:$0xff]
        %v279 = vld [vmem:[%s277 + $0x8] sm:$0xff]
        %s280 = scalar_lea.vmem %s178, 32 [#allocation2]
        %v281 = vld [vmem:[%s280] sm:$0xff]
        %v282 = vld [vmem:[%s280 + $0x8] sm:$0xff]
        %s283 = scalar_lea.vmem %s178, 48 [#allocation2]
        %v284 = vld [vmem:[%s283] sm:$0xff]
        %v285 = vld [vmem:[%s283 + $0x8] sm:$0xff]
        %s286 = scalar_lea.vmem %s178, 64 [#allocation2]
        %v287 = vld [vmem:[%s286] sm:$0xff]
        %v288 = vld [vmem:[%s286 + $0x8] sm:$0xff]
        %s289 = scalar_lea.vmem %s178, 80 [#allocation2]
        %v290 = vld [vmem:[%s289] sm:$0xff]
        %v291 = vld [vmem:[%s289 + $0x8] sm:$0xff]
        %s292 = scalar_lea.vmem %s178, 96 [#allocation2]
        %v293 = vld [vmem:[%s292] sm:$0xff]
        %v294 = vld [vmem:[%s292 + $0x8] sm:$0xff]
        %s295 = scalar_lea.vmem %s178, 112 [#allocation2]
        %v296 = vld [vmem:[%s295] sm:$0xff]
        %v297 = vld [vmem:[%s295 + $0x8] sm:$0xff]
        %299 = vset.pattern.permute.xlu0 0
        %300 = vperm.xlu0 %299, %v246
        %v301 = vpop.permute.xlu0 %300
        %304 = vset.pattern.permute.xlu0 0
        %305 = vperm.xlu0 %304, %v247
        %v306 = vpop.permute.xlu0 %305
        %309 = vset.pattern.permute.xlu0 0
        %310 = vperm.xlu0 %309, %v248
        %v311 = vpop.permute.xlu0 %310
        %314 = vset.pattern.permute.xlu0 0
        %315 = vperm.xlu0 %314, %v249
        %v316 = vpop.permute.xlu0 %315
        %vm318 = vcmask 130048
        %v320 = vsel %vm318, %v207, 0
        %v323 = vsel %vm318, %v208, 0
        %v326 = vsel %vm318, %v209, 0
        %v329 = vsel %vm318, %v210, 0
        %331 = vmatpush.msra.mxu0 0.0
        %332 = vmatpush.msra.mxu0 0.0
        %333 = vmatpush.msra.mxu0 0.0
        %334 = vmatpush.msra.mxu0 0.0
        %335 = vmatpush.msra.mxu0 0.0
        %336 = vmatpush.msra.mxu0 0.0
        %337 = vmatpush.msra.mxu0 0.0
        %338 = vmatpush.msra.mxu0 0.0
        %339 = vmatpush.msra.mxu0 0.0
        %340 = vmatpush.msra.mxu0 0.0
        %341 = vmatpush.msra.mxu0 0.0
        %342 = vmatpush.msra.mxu0 0.0
        %343 = vmatpush.msra.mxu0 0.0
        %344 = vmatpush.msra.mxu0 0.0
        %345 = vmatpush.msra.mxu0 %v276
        %346 = vmatpush.msra.mxu0 %v275
        %347 = vmatmul.f32.gmra.mxu0 %v320
        %v348 = vpop.f32.mrf.mxu0
        %v349 = vadd.f32 %v301, %v348
        %350 = vmatmul.f32.gmra.mxu0 %v323
        %v351 = vpop.f32.mrf.mxu0
        %v352 = vadd.f32 %v306, %v351
        %353 = vmatmul.f32.gmra.mxu0 %v326
        %v354 = vpop.f32.mrf.mxu0
        %v355 = vadd.f32 %v311, %v354
        %356 = vmatmul.f32.gmra.mxu0 %v329
        %v357 = vpop.f32.mrf.mxu0
        %v358 = vadd.f32 %v316, %v357
        %359 = vdwg.mxu0
        %360 = vmatpush.msra.mxu0 0.0
        %361 = vmatpush.msra.mxu0 0.0
        %362 = vmatpush.msra.mxu0 0.0
        %363 = vmatpush.msra.mxu0 0.0
        %364 = vmatpush.msra.mxu0 0.0
        %365 = vmatpush.msra.mxu0 0.0
        %366 = vmatpush.msra.mxu0 0.0
        %367 = vmatpush.msra.mxu0 0.0
        %368 = vmatpush.msra.mxu0 0.0
        %369 = vmatpush.msra.mxu0 0.0
        %370 = vmatpush.msra.mxu0 0.0
        %371 = vmatpush.msra.mxu0 0.0
        %372 = vmatpush.msra.mxu0 0.0
        %373 = vmatpush.msra.mxu0 0.0
        %374 = vmatpush.msra.mxu0 %v279
        %375 = vmatpush.msra.mxu0 %v278
        %376 = vmatmul.f32.gmra.mxu0 %v320
        %v377 = vpop.f32.mrf.mxu0
        %v378 = vadd.f32 %v301, %v377
        %379 = vmatmul.f32.gmra.mxu0 %v323
        %v380 = vpop.f32.mrf.mxu0
        %v381 = vadd.f32 %v306, %v380
        %382 = vmatmul.f32.gmra.mxu0 %v326
        %v383 = vpop.f32.mrf.mxu0
        %v384 = vadd.f32 %v311, %v383
        %385 = vmatmul.f32.gmra.mxu0 %v329
        %v386 = vpop.f32.mrf.mxu0
        %v387 = vadd.f32 %v316, %v386
        %388 = vdwg.mxu0
        %389 = vmatpush.msra.mxu0 0.0
        %390 = vmatpush.msra.mxu0 0.0
        %391 = vmatpush.msra.mxu0 0.0
        %392 = vmatpush.msra.mxu0 0.0
        %393 = vmatpush.msra.mxu0 0.0
        %394 = vmatpush.msra.mxu0 0.0
        %395 = vmatpush.msra.mxu0 0.0
        %396 = vmatpush.msra.mxu0 0.0
        %397 = vmatpush.msra.mxu0 0.0
        %398 = vmatpush.msra.mxu0 0.0
        %399 = vmatpush.msra.mxu0 0.0
        %400 = vmatpush.msra.mxu0 0.0
        %401 = vmatpush.msra.mxu0 0.0
        %402 = vmatpush.msra.mxu0 0.0
        %403 = vmatpush.msra.mxu0 %v282
        %404 = vmatpush.msra.mxu0 %v281
        %405 = vmatmul.f32.gmra.mxu0 %v320
        %v406 = vpop.f32.mrf.mxu0
        %v407 = vadd.f32 %v301, %v406
        %408 = vmatmul.f32.gmra.mxu0 %v323
        %v409 = vpop.f32.mrf.mxu0
        %v410 = vadd.f32 %v306, %v409
        %411 = vmatmul.f32.gmra.mxu0 %v326
        %v412 = vpop.f32.mrf.mxu0
        %v413 = vadd.f32 %v311, %v412
        %414 = vmatmul.f32.gmra.mxu0 %v329
        %v415 = vpop.f32.mrf.mxu0
        %v416 = vadd.f32 %v316, %v415
        %417 = vdwg.mxu0
        %418 = vmatpush.msra.mxu0 0.0
        %419 = vmatpush.msra.mxu0 0.0
        %420 = vmatpush.msra.mxu0 0.0
        %421 = vmatpush.msra.mxu0 0.0
        %422 = vmatpush.msra.mxu0 0.0
        %423 = vmatpush.msra.mxu0 0.0
        %424 = vmatpush.msra.mxu0 0.0
        %425 = vmatpush.msra.mxu0 0.0
        %426 = vmatpush.msra.mxu0 0.0
        %427 = vmatpush.msra.mxu0 0.0
        %428 = vmatpush.msra.mxu0 0.0
        %429 = vmatpush.msra.mxu0 0.0
        %430 = vmatpush.msra.mxu0 0.0
        %431 = vmatpush.msra.mxu0 0.0
        %432 = vmatpush.msra.mxu0 %v285
        %433 = vmatpush.msra.mxu0 %v284
        %434 = vmatmul.f32.gmra.mxu0 %v320
        %v435 = vpop.f32.mrf.mxu0
        %v436 = vadd.f32 %v301, %v435
        %437 = vmatmul.f32.gmra.mxu0 %v323
        %v438 = vpop.f32.mrf.mxu0
        %v439 = vadd.f32 %v306, %v438
        %440 = vmatmul.f32.gmra.mxu0 %v326
        %v441 = vpop.f32.mrf.mxu0
        %v442 = vadd.f32 %v311, %v441
        %443 = vmatmul.f32.gmra.mxu0 %v329
        %v444 = vpop.f32.mrf.mxu0
        %v445 = vadd.f32 %v316, %v444
        %446 = vdwg.mxu0
        %447 = vmatpush.msra.mxu0 0.0
        %448 = vmatpush.msra.mxu0 0.0
        %449 = vmatpush.msra.mxu0 0.0
        %450 = vmatpush.msra.mxu0 0.0
        %451 = vmatpush.msra.mxu0 0.0
        %452 = vmatpush.msra.mxu0 0.0
        %453 = vmatpush.msra.mxu0 0.0
        %454 = vmatpush.msra.mxu0 0.0
        %455 = vmatpush.msra.mxu0 0.0
        %456 = vmatpush.msra.mxu0 0.0
        %457 = vmatpush.msra.mxu0 0.0
        %458 = vmatpush.msra.mxu0 0.0
        %459 = vmatpush.msra.mxu0 0.0
        %460 = vmatpush.msra.mxu0 0.0
        %461 = vmatpush.msra.mxu0 %v288
        %462 = vmatpush.msra.mxu0 %v287
        %463 = vmatmul.f32.gmra.mxu0 %v320
        %v464 = vpop.f32.mrf.mxu0
        %v465 = vadd.f32 %v301, %v464
        %466 = vmatmul.f32.gmra.mxu0 %v323
        %v467 = vpop.f32.mrf.mxu0
        %v468 = vadd.f32 %v306, %v467
        %469 = vmatmul.f32.gmra.mxu0 %v326
        %v470 = vpop.f32.mrf.mxu0
        %v471 = vadd.f32 %v311, %v470
        %472 = vmatmul.f32.gmra.mxu0 %v329
        %v473 = vpop.f32.mrf.mxu0
        %v474 = vadd.f32 %v316, %v473
        %475 = vdwg.mxu0
        %476 = vmatpush.msra.mxu0 0.0
        %477 = vmatpush.msra.mxu0 0.0
        %478 = vmatpush.msra.mxu0 0.0
        %479 = vmatpush.msra.mxu0 0.0
        %480 = vmatpush.msra.mxu0 0.0
        %481 = vmatpush.msra.mxu0 0.0
        %482 = vmatpush.msra.mxu0 0.0
        %483 = vmatpush.msra.mxu0 0.0
        %484 = vmatpush.msra.mxu0 0.0
        %485 = vmatpush.msra.mxu0 0.0
        %486 = vmatpush.msra.mxu0 0.0
        %487 = vmatpush.msra.mxu0 0.0
        %488 = vmatpush.msra.mxu0 0.0
        %489 = vmatpush.msra.mxu0 0.0
        %490 = vmatpush.msra.mxu0 %v291
        %491 = vmatpush.msra.mxu0 %v290
        %492 = vmatmul.f32.gmra.mxu0 %v320
        %v493 = vpop.f32.mrf.mxu0
        %v494 = vadd.f32 %v301, %v493
        %495 = vmatmul.f32.gmra.mxu0 %v323
        %v496 = vpop.f32.mrf.mxu0
        %v497 = vadd.f32 %v306, %v496
        %498 = vmatmul.f32.gmra.mxu0 %v326
        %v499 = vpop.f32.mrf.mxu0
        %v500 = vadd.f32 %v311, %v499
        %501 = vmatmul.f32.gmra.mxu0 %v329
        %v502 = vpop.f32.mrf.mxu0
        %v503 = vadd.f32 %v316, %v502
        %504 = vdwg.mxu0
        %505 = vmatpush.msra.mxu0 0.0
        %506 = vmatpush.msra.mxu0 0.0
        %507 = vmatpush.msra.mxu0 0.0
        %508 = vmatpush.msra.mxu0 0.0
        %509 = vmatpush.msra.mxu0 0.0
        %510 = vmatpush.msra.mxu0 0.0
        %511 = vmatpush.msra.mxu0 0.0
        %512 = vmatpush.msra.mxu0 0.0
        %513 = vmatpush.msra.mxu0 0.0
        %514 = vmatpush.msra.mxu0 0.0
        %515 = vmatpush.msra.mxu0 0.0
        %516 = vmatpush.msra.mxu0 0.0
        %517 = vmatpush.msra.mxu0 0.0
        %518 = vmatpush.msra.mxu0 0.0
        %519 = vmatpush.msra.mxu0 %v294
        %520 = vmatpush.msra.mxu0 %v293
        %521 = vmatmul.f32.gmra.mxu0 %v320
        %v522 = vpop.f32.mrf.mxu0
        %v523 = vadd.f32 %v301, %v522
        %524 = vmatmul.f32.gmra.mxu0 %v323
        %v525 = vpop.f32.mrf.mxu0
        %v526 = vadd.f32 %v306, %v525
        %527 = vmatmul.f32.gmra.mxu0 %v326
        %v528 = vpop.f32.mrf.mxu0
        %v529 = vadd.f32 %v311, %v528
        %530 = vmatmul.f32.gmra.mxu0 %v329
        %v531 = vpop.f32.mrf.mxu0
        %v532 = vadd.f32 %v316, %v531
        %533 = vdwg.mxu0
        %534 = vmatpush.msra.mxu0 0.0
        %535 = vmatpush.msra.mxu0 0.0
        %536 = vmatpush.msra.mxu0 0.0
        %537 = vmatpush.msra.mxu0 0.0
        %538 = vmatpush.msra.mxu0 0.0
        %539 = vmatpush.msra.mxu0 0.0
        %540 = vmatpush.msra.mxu0 0.0
        %541 = vmatpush.msra.mxu0 0.0
        %542 = vmatpush.msra.mxu0 0.0
        %543 = vmatpush.msra.mxu0 0.0
        %544 = vmatpush.msra.mxu0 0.0
        %545 = vmatpush.msra.mxu0 0.0
        %546 = vmatpush.msra.mxu0 0.0
        %547 = vmatpush.msra.mxu0 0.0
        %548 = vmatpush.msra.mxu0 %v297
        %549 = vmatpush.msra.mxu0 %v296
        %550 = vmatmul.f32.gmra.mxu0 %v320
        %v551 = vpop.f32.mrf.mxu0
        %v552 = vadd.f32 %v301, %v551
        %553 = vmatmul.f32.gmra.mxu0 %v323
        %v554 = vpop.f32.mrf.mxu0
        %v555 = vadd.f32 %v306, %v554
        %556 = vmatmul.f32.gmra.mxu0 %v326
        %v557 = vpop.f32.mrf.mxu0
        %v558 = vadd.f32 %v311, %v557
        %559 = vmatmul.f32.gmra.mxu0 %v329
        %v560 = vpop.f32.mrf.mxu0
        %v561 = vadd.f32 %v316, %v560
        %562 = vdwg.mxu0
        %v564 = vsel %vm318, %v212, 0
        %v567 = vsel %vm318, %v213, 0
        %v570 = vsel %vm318, %v214, 0
        %v573 = vsel %vm318, %v215, 0
        %575 = vmatpush.msra.mxu0 0.0
        %576 = vmatpush.msra.mxu0 0.0
        %577 = vmatpush.msra.mxu0 0.0
        %578 = vmatpush.msra.mxu0 0.0
        %579 = vmatpush.msra.mxu0 0.0
        %580 = vmatpush.msra.mxu0 0.0
        %581 = vmatpush.msra.mxu0 0.0
        %582 = vmatpush.msra.mxu0 0.0
        %583 = vmatpush.msra.mxu0 0.0
        %584 = vmatpush.msra.mxu0 0.0
        %585 = vmatpush.msra.mxu0 0.0
        %586 = vmatpush.msra.mxu0 0.0
        %587 = vmatpush.msra.mxu0 0.0
        %588 = vmatpush.msra.mxu0 0.0
        %589 = vmatpush.msra.mxu0 %v276
        %590 = vmatpush.msra.mxu0 %v275
        %591 = vmatmul.f32.gmra.mxu0 %v564
        %v592 = vpop.f32.mrf.mxu0
        %v593 = vadd.f32 0.0, %v592
        %594 = vmatmul.f32.gmra.mxu0 %v567
        %v595 = vpop.f32.mrf.mxu0
        %v596 = vadd.f32 0.0, %v595
        %597 = vmatmul.f32.gmra.mxu0 %v570
        %v598 = vpop.f32.mrf.mxu0
        %v599 = vadd.f32 0.0, %v598
        %600 = vmatmul.f32.gmra.mxu0 %v573
        %v601 = vpop.f32.mrf.mxu0
        %v602 = vadd.f32 0.0, %v601
        %603 = vdwg.mxu0
        %604 = vmatpush.msra.mxu0 0.0
        %605 = vmatpush.msra.mxu0 0.0
        %606 = vmatpush.msra.mxu0 0.0
        %607 = vmatpush.msra.mxu0 0.0
        %608 = vmatpush.msra.mxu0 0.0
        %609 = vmatpush.msra.mxu0 0.0
        %610 = vmatpush.msra.mxu0 0.0
        %611 = vmatpush.msra.mxu0 0.0
        %612 = vmatpush.msra.mxu0 0.0
        %613 = vmatpush.msra.mxu0 0.0
        %614 = vmatpush.msra.mxu0 0.0
        %615 = vmatpush.msra.mxu0 0.0
        %616 = vmatpush.msra.mxu0 0.0
        %617 = vmatpush.msra.mxu0 0.0
        %618 = vmatpush.msra.mxu0 %v279
        %619 = vmatpush.msra.mxu0 %v278
        %620 = vmatmul.f32.gmra.mxu0 %v564
        %v621 = vpop.f32.mrf.mxu0
        %v622 = vadd.f32 0.0, %v621
        %623 = vmatmul.f32.gmra.mxu0 %v567
        %v624 = vpop.f32.mrf.mxu0
        %v625 = vadd.f32 0.0, %v624
        %626 = vmatmul.f32.gmra.mxu0 %v570
        %v627 = vpop.f32.mrf.mxu0
        %v628 = vadd.f32 0.0, %v627
        %629 = vmatmul.f32.gmra.mxu0 %v573
        %v630 = vpop.f32.mrf.mxu0
        %v631 = vadd.f32 0.0, %v630
        %632 = vdwg.mxu0
        %633 = vmatpush.msra.mxu0 0.0
        %634 = vmatpush.msra.mxu0 0.0
        %635 = vmatpush.msra.mxu0 0.0
        %636 = vmatpush.msra.mxu0 0.0
        %637 = vmatpush.msra.mxu0 0.0
        %638 = vmatpush.msra.mxu0 0.0
        %639 = vmatpush.msra.mxu0 0.0
        %640 = vmatpush.msra.mxu0 0.0
        %641 = vmatpush.msra.mxu0 0.0
        %642 = vmatpush.msra.mxu0 0.0
        %643 = vmatpush.msra.mxu0 0.0
        %644 = vmatpush.msra.mxu0 0.0
        %645 = vmatpush.msra.mxu0 0.0
        %646 = vmatpush.msra.mxu0 0.0
        %647 = vmatpush.msra.mxu0 %v282
        %648 = vmatpush.msra.mxu0 %v281
        %649 = vmatmul.f32.gmra.mxu0 %v564
        %v650 = vpop.f32.mrf.mxu0
        %v651 = vadd.f32 0.0, %v650
        %652 = vmatmul.f32.gmra.mxu0 %v567
        %v653 = vpop.f32.mrf.mxu0
        %v654 = vadd.f32 0.0, %v653
        %655 = vmatmul.f32.gmra.mxu0 %v570
        %v656 = vpop.f32.mrf.mxu0
        %v657 = vadd.f32 0.0, %v656
        %658 = vmatmul.f32.gmra.mxu0 %v573
        %v659 = vpop.f32.mrf.mxu0
        %v660 = vadd.f32 0.0, %v659
        %661 = vdwg.mxu0
        %662 = vmatpush.msra.mxu0 0.0
        %663 = vmatpush.msra.mxu0 0.0
        %664 = vmatpush.msra.mxu0 0.0
        %665 = vmatpush.msra.mxu0 0.0
        %666 = vmatpush.msra.mxu0 0.0
        %667 = vmatpush.msra.mxu0 0.0
        %668 = vmatpush.msra.mxu0 0.0
        %669 = vmatpush.msra.mxu0 0.0
        %670 = vmatpush.msra.mxu0 0.0
        %671 = vmatpush.msra.mxu0 0.0
        %672 = vmatpush.msra.mxu0 0.0
        %673 = vmatpush.msra.mxu0 0.0
        %674 = vmatpush.msra.mxu0 0.0
        %675 = vmatpush.msra.mxu0 0.0
        %676 = vmatpush.msra.mxu0 %v285
        %677 = vmatpush.msra.mxu0 %v284
        %678 = vmatmul.f32.gmra.mxu0 %v564
        %v679 = vpop.f32.mrf.mxu0
        %v680 = vadd.f32 0.0, %v679
        %681 = vmatmul.f32.gmra.mxu0 %v567
        %v682 = vpop.f32.mrf.mxu0
        %v683 = vadd.f32 0.0, %v682
        %684 = vmatmul.f32.gmra.mxu0 %v570
        %v685 = vpop.f32.mrf.mxu0
        %v686 = vadd.f32 0.0, %v685
        %687 = vmatmul.f32.gmra.mxu0 %v573
        %v688 = vpop.f32.mrf.mxu0
        %v689 = vadd.f32 0.0, %v688
        %690 = vdwg.mxu0
        %691 = vmatpush.msra.mxu0 0.0
        %692 = vmatpush.msra.mxu0 0.0
        %693 = vmatpush.msra.mxu0 0.0
        %694 = vmatpush.msra.mxu0 0.0
        %695 = vmatpush.msra.mxu0 0.0
        %696 = vmatpush.msra.mxu0 0.0
        %697 = vmatpush.msra.mxu0 0.0
        %698 = vmatpush.msra.mxu0 0.0
        %699 = vmatpush.msra.mxu0 0.0
        %700 = vmatpush.msra.mxu0 0.0
        %701 = vmatpush.msra.mxu0 0.0
        %702 = vmatpush.msra.mxu0 0.0
        %703 = vmatpush.msra.mxu0 0.0
        %704 = vmatpush.msra.mxu0 0.0
        %705 = vmatpush.msra.mxu0 %v288
        %706 = vmatpush.msra.mxu0 %v287
        %707 = vmatmul.f32.gmra.mxu0 %v564
        %v708 = vpop.f32.mrf.mxu0
        %v709 = vadd.f32 0.0, %v708
        %710 = vmatmul.f32.gmra.mxu0 %v567
        %v711 = vpop.f32.mrf.mxu0
        %v712 = vadd.f32 0.0, %v711
        %713 = vmatmul.f32.gmra.mxu0 %v570
        %v714 = vpop.f32.mrf.mxu0
        %v715 = vadd.f32 0.0, %v714
        %716 = vmatmul.f32.gmra.mxu0 %v573
        %v717 = vpop.f32.mrf.mxu0
        %v718 = vadd.f32 0.0, %v717
        %719 = vdwg.mxu0
        %720 = vmatpush.msra.mxu0 0.0
        %721 = vmatpush.msra.mxu0 0.0
        %722 = vmatpush.msra.mxu0 0.0
        %723 = vmatpush.msra.mxu0 0.0
        %724 = vmatpush.msra.mxu0 0.0
        %725 = vmatpush.msra.mxu0 0.0
        %726 = vmatpush.msra.mxu0 0.0
        %727 = vmatpush.msra.mxu0 0.0
        %728 = vmatpush.msra.mxu0 0.0
        %729 = vmatpush.msra.mxu0 0.0
        %730 = vmatpush.msra.mxu0 0.0
        %731 = vmatpush.msra.mxu0 0.0
        %732 = vmatpush.msra.mxu0 0.0
        %733 = vmatpush.msra.mxu0 0.0
        %734 = vmatpush.msra.mxu0 %v291
        %735 = vmatpush.msra.mxu0 %v290
        %736 = vmatmul.f32.gmra.mxu0 %v564
        %v737 = vpop.f32.mrf.mxu0
        %v738 = vadd.f32 0.0, %v737
        %739 = vmatmul.f32.gmra.mxu0 %v567
        %v740 = vpop.f32.mrf.mxu0
        %v741 = vadd.f32 0.0, %v740
        %742 = vmatmul.f32.gmra.mxu0 %v570
        %v743 = vpop.f32.mrf.mxu0
        %v744 = vadd.f32 0.0, %v743
        %745 = vmatmul.f32.gmra.mxu0 %v573
        %v746 = vpop.f32.mrf.mxu0
        %v747 = vadd.f32 0.0, %v746
        %748 = vdwg.mxu0
        %749 = vmatpush.msra.mxu0 0.0
        %750 = vmatpush.msra.mxu0 0.0
        %751 = vmatpush.msra.mxu0 0.0
        %752 = vmatpush.msra.mxu0 0.0
        %753 = vmatpush.msra.mxu0 0.0
        %754 = vmatpush.msra.mxu0 0.0
        %755 = vmatpush.msra.mxu0 0.0
        %756 = vmatpush.msra.mxu0 0.0
        %757 = vmatpush.msra.mxu0 0.0
        %758 = vmatpush.msra.mxu0 0.0
        %759 = vmatpush.msra.mxu0 0.0
        %760 = vmatpush.msra.mxu0 0.0
        %761 = vmatpush.msra.mxu0 0.0
        %762 = vmatpush.msra.mxu0 0.0
        %763 = vmatpush.msra.mxu0 %v294
        %764 = vmatpush.msra.mxu0 %v293
        %765 = vmatmul.f32.gmra.mxu0 %v564
        %v766 = vpop.f32.mrf.mxu0
        %v767 = vadd.f32 0.0, %v766
        %768 = vmatmul.f32.gmra.mxu0 %v567
        %v769 = vpop.f32.mrf.mxu0
        %v770 = vadd.f32 0.0, %v769
        %771 = vmatmul.f32.gmra.mxu0 %v570
        %v772 = vpop.f32.mrf.mxu0
        %v773 = vadd.f32 0.0, %v772
        %774 = vmatmul.f32.gmra.mxu0 %v573
        %v775 = vpop.f32.mrf.mxu0
        %v776 = vadd.f32 0.0, %v775
        %777 = vdwg.mxu0
        %778 = vmatpush.msra.mxu0 0.0
        %779 = vmatpush.msra.mxu0 0.0
        %780 = vmatpush.msra.mxu0 0.0
        %781 = vmatpush.msra.mxu0 0.0
        %782 = vmatpush.msra.mxu0 0.0
        %783 = vmatpush.msra.mxu0 0.0
        %784 = vmatpush.msra.mxu0 0.0
        %785 = vmatpush.msra.mxu0 0.0
        %786 = vmatpush.msra.mxu0 0.0
        %787 = vmatpush.msra.mxu0 0.0
        %788 = vmatpush.msra.mxu0 0.0
        %789 = vmatpush.msra.mxu0 0.0
        %790 = vmatpush.msra.mxu0 0.0
        %791 = vmatpush.msra.mxu0 0.0
        %792 = vmatpush.msra.mxu0 %v297
        %793 = vmatpush.msra.mxu0 %v296
        %794 = vmatmul.f32.gmra.mxu0 %v564
        %v795 = vpop.f32.mrf.mxu0
        %v796 = vadd.f32 0.0, %v795
        %797 = vmatmul.f32.gmra.mxu0 %v567
        %v798 = vpop.f32.mrf.mxu0
        %v799 = vadd.f32 0.0, %v798
        %800 = vmatmul.f32.gmra.mxu0 %v570
        %v801 = vpop.f32.mrf.mxu0
        %v802 = vadd.f32 0.0, %v801
        %803 = vmatmul.f32.gmra.mxu0 %v573
        %v804 = vpop.f32.mrf.mxu0
        %v805 = vadd.f32 0.0, %v804
        %806 = vdwg.mxu0
        %808 = vset.pattern.permute.xlu0 0
        %809 = vperm.xlu0 %808, %v251
        %v810 = vpop.permute.xlu0 %809
        %813 = vset.pattern.permute.xlu0 0
        %814 = vperm.xlu0 %813, %v252
        %v815 = vpop.permute.xlu0 %814
        %818 = vset.pattern.permute.xlu0 0
        %819 = vperm.xlu0 %818, %v254
        %v820 = vpop.permute.xlu0 %819
        %v822 = vadd.f32 %v349, %v622
        %v823 = vadd.f32 %v349, %v651
        %v824 = vadd.f32 %v349, %v680
        %v825 = vadd.f32 %v349, %v709
        %v826 = vadd.f32 %v349, %v738
        %v827 = vadd.f32 %v349, %v767
        %v828 = vadd.f32 %v349, %v796
        %v829 = vadd.f32 %v352, %v625
        %v830 = vadd.f32 %v352, %v654
        %v831 = vadd.f32 %v352, %v683
        %v832 = vadd.f32 %v352, %v712
        %v833 = vadd.f32 %v352, %v741
        %v834 = vadd.f32 %v352, %v770
        %v835 = vadd.f32 %v352, %v799
        %v836 = vadd.f32 %v355, %v628
        %v837 = vadd.f32 %v355, %v657
        %v838 = vadd.f32 %v355, %v686
        %v839 = vadd.f32 %v355, %v715
        %v840 = vadd.f32 %v355, %v744
        %v841 = vadd.f32 %v355, %v773
        %v842 = vadd.f32 %v355, %v802
        %v843 = vadd.f32 %v358, %v631
        %v844 = vadd.f32 %v358, %v660
        %v845 = vadd.f32 %v358, %v689
        %v846 = vadd.f32 %v358, %v718
        %v847 = vadd.f32 %v358, %v747
        %v848 = vadd.f32 %v358, %v776
        %v849 = vadd.f32 %v358, %v805
        %v850 = vmax.f32 %v822, 0.0
        %v851 = vmax.f32 %v823, 0.0
        %v852 = vmax.f32 %v824, 0.0
        %v853 = vmax.f32 %v825, 0.0
        %v854 = vmax.f32 %v826, 0.0
        %v855 = vmax.f32 %v827, 0.0
        %v856 = vmax.f32 %v828, 0.0
        %v857 = vmax.f32 %v829, 0.0
        %v858 = vmax.f32 %v830, 0.0
        %v859 = vmax.f32 %v831, 0.0
        %v860 = vmax.f32 %v832, 0.0
        %v861 = vmax.f32 %v833, 0.0
        %v862 = vmax.f32 %v834, 0.0
        %v863 = vmax.f32 %v835, 0.0
        %v864 = vmax.f32 %v836, 0.0
        %v865 = vmax.f32 %v837, 0.0
        %v866 = vmax.f32 %v838, 0.0
        %v867 = vmax.f32 %v839, 0.0
        %v868 = vmax.f32 %v840, 0.0
        %v869 = vmax.f32 %v841, 0.0
        %v870 = vmax.f32 %v842, 0.0
        %v871 = vmax.f32 %v843, 0.0
        %v872 = vmax.f32 %v844, 0.0
        %v873 = vmax.f32 %v845, 0.0
        %v874 = vmax.f32 %v846, 0.0
        %v875 = vmax.f32 %v847, 0.0
        %v876 = vmax.f32 %v848, 0.0
        %v877 = vmax.f32 %v849, 0.0
        %vm878 = vcmask 261120
        %v880 = vsel %vm878, %v217, 0
        %v883 = vsel %vm878, %v218, 0
        %885 = vmatpush.msra.mxu0 0.0
        %886 = vmatpush.msra.mxu0 0.0
        %887 = vmatpush.msra.mxu0 0.0
        %888 = vmatpush.msra.mxu0 0.0
        %889 = vmatpush.msra.mxu0 0.0
        %890 = vmatpush.msra.mxu0 0.0
        %891 = vmatpush.msra.mxu0 0.0
        %892 = vmatpush.msra.mxu0 0.0
        %893 = vmatpush.msra.mxu0 0.0
        %894 = vmatpush.msra.mxu0 0.0
        %895 = vmatpush.msra.mxu0 0.0
        %896 = vmatpush.msra.mxu0 0.0
        %897 = vmatpush.msra.mxu0 %v871
        %898 = vmatpush.msra.mxu0 %v864
        %899 = vmatpush.msra.mxu0 %v857
        %900 = vmatpush.msra.mxu0 %v850
        %901 = vmatmul.f32.gmra.mxu0 %v880
        %v902 = vpop.f32.mrf.mxu0
        %v903 = vadd.f32 %v810, %v902
        %904 = vmatmul.f32.gmra.mxu0 %v883
        %v905 = vpop.f32.mrf.mxu0
        %v906 = vadd.f32 %v815, %v905
        %907 = vdwg.mxu0
        %908 = vmatpush.msra.mxu0 0.0
        %909 = vmatpush.msra.mxu0 0.0
        %910 = vmatpush.msra.mxu0 0.0
        %911 = vmatpush.msra.mxu0 0.0
        %912 = vmatpush.msra.mxu0 0.0
        %913 = vmatpush.msra.mxu0 0.0
        %914 = vmatpush.msra.mxu0 0.0
        %915 = vmatpush.msra.mxu0 0.0
        %916 = vmatpush.msra.mxu0 0.0
        %917 = vmatpush.msra.mxu0 0.0
        %918 = vmatpush.msra.mxu0 0.0
        %919 = vmatpush.msra.mxu0 0.0
        %920 = vmatpush.msra.mxu0 %v872
        %921 = vmatpush.msra.mxu0 %v865
        %922 = vmatpush.msra.mxu0 %v858
        %923 = vmatpush.msra.mxu0 %v851
        %924 = vmatmul.f32.gmra.mxu0 %v880
        %v925 = vpop.f32.mrf.mxu0
        %v926 = vadd.f32 %v810, %v925
        %927 = vmatmul.f32.gmra.mxu0 %v883
        %v928 = vpop.f32.mrf.mxu0
        %v929 = vadd.f32 %v815, %v928
        %930 = vdwg.mxu0
        %931 = vmatpush.msra.mxu0 0.0
        %932 = vmatpush.msra.mxu0 0.0
        %933 = vmatpush.msra.mxu0 0.0
        %934 = vmatpush.msra.mxu0 0.0
        %935 = vmatpush.msra.mxu0 0.0
        %936 = vmatpush.msra.mxu0 0.0
        %937 = vmatpush.msra.mxu0 0.0
        %938 = vmatpush.msra.mxu0 0.0
        %939 = vmatpush.msra.mxu0 0.0
        %940 = vmatpush.msra.mxu0 0.0
        %941 = vmatpush.msra.mxu0 0.0
        %942 = vmatpush.msra.mxu0 0.0
        %943 = vmatpush.msra.mxu0 %v873
        %944 = vmatpush.msra.mxu0 %v866
        %945 = vmatpush.msra.mxu0 %v859
        %946 = vmatpush.msra.mxu0 %v852
        %947 = vmatmul.f32.gmra.mxu0 %v880
        %v948 = vpop.f32.mrf.mxu0
        %v949 = vadd.f32 %v810, %v948
        %950 = vmatmul.f32.gmra.mxu0 %v883
        %v951 = vpop.f32.mrf.mxu0
        %v952 = vadd.f32 %v815, %v951
        %953 = vdwg.mxu0
        %954 = vmatpush.msra.mxu0 0.0
        %955 = vmatpush.msra.mxu0 0.0
        %956 = vmatpush.msra.mxu0 0.0
        %957 = vmatpush.msra.mxu0 0.0
        %958 = vmatpush.msra.mxu0 0.0
        %959 = vmatpush.msra.mxu0 0.0
        %960 = vmatpush.msra.mxu0 0.0
        %961 = vmatpush.msra.mxu0 0.0
        %962 = vmatpush.msra.mxu0 0.0
        %963 = vmatpush.msra.mxu0 0.0
        %964 = vmatpush.msra.mxu0 0.0
        %965 = vmatpush.msra.mxu0 0.0
        %966 = vmatpush.msra.mxu0 %v874
        %967 = vmatpush.msra.mxu0 %v867
        %968 = vmatpush.msra.mxu0 %v860
        %969 = vmatpush.msra.mxu0 %v853
        %970 = vmatmul.f32.gmra.mxu0 %v880
        %v971 = vpop.f32.mrf.mxu0
        %v972 = vadd.f32 %v810, %v971
        %973 = vmatmul.f32.gmra.mxu0 %v883
        %v974 = vpop.f32.mrf.mxu0
        %v975 = vadd.f32 %v815, %v974
        %976 = vdwg.mxu0
        %977 = vmatpush.msra.mxu0 0.0
        %978 = vmatpush.msra.mxu0 0.0
        %979 = vmatpush.msra.mxu0 0.0
        %980 = vmatpush.msra.mxu0 0.0
        %981 = vmatpush.msra.mxu0 0.0
        %982 = vmatpush.msra.mxu0 0.0
        %983 = vmatpush.msra.mxu0 0.0
        %984 = vmatpush.msra.mxu0 0.0
        %985 = vmatpush.msra.mxu0 0.0
        %986 = vmatpush.msra.mxu0 0.0
        %987 = vmatpush.msra.mxu0 0.0
        %988 = vmatpush.msra.mxu0 0.0
        %989 = vmatpush.msra.mxu0 %v875
        %990 = vmatpush.msra.mxu0 %v868
        %991 = vmatpush.msra.mxu0 %v861
        %992 = vmatpush.msra.mxu0 %v854
        %993 = vmatmul.f32.gmra.mxu0 %v880
        %v994 = vpop.f32.mrf.mxu0
        %v995 = vadd.f32 %v810, %v994
        %996 = vmatmul.f32.gmra.mxu0 %v883
        %v997 = vpop.f32.mrf.mxu0
        %v998 = vadd.f32 %v815, %v997
        %999 = vdwg.mxu0
        %1000 = vmatpush.msra.mxu0 0.0
        %1001 = vmatpush.msra.mxu0 0.0
        %1002 = vmatpush.msra.mxu0 0.0
        %1003 = vmatpush.msra.mxu0 0.0
        %1004 = vmatpush.msra.mxu0 0.0
        %1005 = vmatpush.msra.mxu0 0.0
        %1006 = vmatpush.msra.mxu0 0.0
        %1007 = vmatpush.msra.mxu0 0.0
        %1008 = vmatpush.msra.mxu0 0.0
        %1009 = vmatpush.msra.mxu0 0.0
        %1010 = vmatpush.msra.mxu0 0.0
        %1011 = vmatpush.msra.mxu0 0.0
        %1012 = vmatpush.msra.mxu0 %v876
        %1013 = vmatpush.msra.mxu0 %v869
        %1014 = vmatpush.msra.mxu0 %v862
        %1015 = vmatpush.msra.mxu0 %v855
        %1016 = vmatmul.f32.gmra.mxu0 %v880
        %v1017 = vpop.f32.mrf.mxu0
        %v1018 = vadd.f32 %v810, %v1017
        %1019 = vmatmul.f32.gmra.mxu0 %v883
        %v1020 = vpop.f32.mrf.mxu0
        %v1021 = vadd.f32 %v815, %v1020
        %1022 = vdwg.mxu0
        %1023 = vmatpush.msra.mxu0 0.0
        %1024 = vmatpush.msra.mxu0 0.0
        %1025 = vmatpush.msra.mxu0 0.0
        %1026 = vmatpush.msra.mxu0 0.0
        %1027 = vmatpush.msra.mxu0 0.0
        %1028 = vmatpush.msra.mxu0 0.0
        %1029 = vmatpush.msra.mxu0 0.0
        %1030 = vmatpush.msra.mxu0 0.0
        %1031 = vmatpush.msra.mxu0 0.0
        %1032 = vmatpush.msra.mxu0 0.0
        %1033 = vmatpush.msra.mxu0 0.0
        %1034 = vmatpush.msra.mxu0 0.0
        %1035 = vmatpush.msra.mxu0 %v877
        %1036 = vmatpush.msra.mxu0 %v870
        %1037 = vmatpush.msra.mxu0 %v863
        %1038 = vmatpush.msra.mxu0 %v856
        %1039 = vmatmul.f32.gmra.mxu0 %v880
        %v1040 = vpop.f32.mrf.mxu0
        %v1041 = vadd.f32 %v810, %v1040
        %1042 = vmatmul.f32.gmra.mxu0 %v883
        %v1043 = vpop.f32.mrf.mxu0
        %v1044 = vadd.f32 %v815, %v1043
        %1045 = vdwg.mxu0
        %v1046 = vmax.f32 %v903, 0.0
        %v1047 = vmax.f32 %v926, 0.0
        %v1048 = vmax.f32 %v949, 0.0
        %v1049 = vmax.f32 %v972, 0.0
        %v1050 = vmax.f32 %v995, 0.0
        %v1051 = vmax.f32 %v1018, 0.0
        %v1052 = vmax.f32 %v1041, 0.0
        %v1053 = vmax.f32 %v906, 0.0
        %v1054 = vmax.f32 %v929, 0.0
        %v1055 = vmax.f32 %v952, 0.0
        %v1056 = vmax.f32 %v975, 0.0
        %v1057 = vmax.f32 %v998, 0.0
        %v1058 = vmax.f32 %v1021, 0.0
        %v1059 = vmax.f32 %v1044, 0.0
        %v1061 = vsel %vm318, %v220, 0
        %1063 = vmatpush.msra.mxu0 0.0
        %1064 = vmatpush.msra.mxu0 0.0
        %1065 = vmatpush.msra.mxu0 0.0
        %1066 = vmatpush.msra.mxu0 0.0
        %1067 = vmatpush.msra.mxu0 0.0
        %1068 = vmatpush.msra.mxu0 0.0
        %1069 = vmatpush.msra.mxu0 0.0
        %1070 = vmatpush.msra.mxu0 0.0
        %1071 = vmatpush.msra.mxu0 0.0
        %1072 = vmatpush.msra.mxu0 0.0
        %1073 = vmatpush.msra.mxu0 0.0
        %1074 = vmatpush.msra.mxu0 0.0
        %1075 = vmatpush.msra.mxu0 0.0
        %1076 = vmatpush.msra.mxu0 0.0
        %1077 = vmatpush.msra.mxu0 %v1053
        %1078 = vmatpush.msra.mxu0 %v1046
        %1079 = vmatmul.f32.gmra.mxu0 %v1061
        %v1080 = vpop.f32.mrf.mxu0
        %v1081 = vadd.f32 %v820, %v1080
        %1082 = vdwg.mxu0
        %1083 = vmatpush.msra.mxu0 0.0
        %1084 = vmatpush.msra.mxu0 0.0
        %1085 = vmatpush.msra.mxu0 0.0
        %1086 = vmatpush.msra.mxu0 0.0
        %1087 = vmatpush.msra.mxu0 0.0
        %1088 = vmatpush.msra.mxu0 0.0
        %1089 = vmatpush.msra.mxu0 0.0
        %1090 = vmatpush.msra.mxu0 0.0
        %1091 = vmatpush.msra.mxu0 0.0
        %1092 = vmatpush.msra.mxu0 0.0
        %1093 = vmatpush.msra.mxu0 0.0
        %1094 = vmatpush.msra.mxu0 0.0
        %1095 = vmatpush.msra.mxu0 0.0
        %1096 = vmatpush.msra.mxu0 0.0
        %1097 = vmatpush.msra.mxu0 %v1054
        %1098 = vmatpush.msra.mxu0 %v1047
        %1099 = vmatmul.f32.gmra.mxu0 %v1061
        %v1100 = vpop.f32.mrf.mxu0
        %v1101 = vadd.f32 %v820, %v1100
        %1102 = vdwg.mxu0
        %1103 = vmatpush.msra.mxu0 0.0
        %1104 = vmatpush.msra.mxu0 0.0
        %1105 = vmatpush.msra.mxu0 0.0
        %1106 = vmatpush.msra.mxu0 0.0
        %1107 = vmatpush.msra.mxu0 0.0
        %1108 = vmatpush.msra.mxu0 0.0
        %1109 = vmatpush.msra.mxu0 0.0
        %1110 = vmatpush.msra.mxu0 0.0
        %1111 = vmatpush.msra.mxu0 0.0
        %1112 = vmatpush.msra.mxu0 0.0
        %1113 = vmatpush.msra.mxu0 0.0
        %1114 = vmatpush.msra.mxu0 0.0
        %1115 = vmatpush.msra.mxu0 0.0
        %1116 = vmatpush.msra.mxu0 0.0
        %1117 = vmatpush.msra.mxu0 %v1055
        %1118 = vmatpush.msra.mxu0 %v1048
        %1119 = vmatmul.f32.gmra.mxu0 %v1061
        %v1120 = vpop.f32.mrf.mxu0
        %v1121 = vadd.f32 %v820, %v1120
        %1122 = vdwg.mxu0
        %1123 = vmatpush.msra.mxu0 0.0
        %1124 = vmatpush.msra.mxu0 0.0
        %1125 = vmatpush.msra.mxu0 0.0
        %1126 = vmatpush.msra.mxu0 0.0
        %1127 = vmatpush.msra.mxu0 0.0
        %1128 = vmatpush.msra.mxu0 0.0
        %1129 = vmatpush.msra.mxu0 0.0
        %1130 = vmatpush.msra.mxu0 0.0
        %1131 = vmatpush.msra.mxu0 0.0
        %1132 = vmatpush.msra.mxu0 0.0
        %1133 = vmatpush.msra.mxu0 0.0
        %1134 = vmatpush.msra.mxu0 0.0
        %1135 = vmatpush.msra.mxu0 0.0
        %1136 = vmatpush.msra.mxu0 0.0
        %1137 = vmatpush.msra.mxu0 %v1056
        %1138 = vmatpush.msra.mxu0 %v1049
        %1139 = vmatmul.f32.gmra.mxu0 %v1061
        %v1140 = vpop.f32.mrf.mxu0
        %v1141 = vadd.f32 %v820, %v1140
        %1142 = vdwg.mxu0
        %1143 = vmatpush.msra.mxu0 0.0
        %1144 = vmatpush.msra.mxu0 0.0
        %1145 = vmatpush.msra.mxu0 0.0
        %1146 = vmatpush.msra.mxu0 0.0
        %1147 = vmatpush.msra.mxu0 0.0
        %1148 = vmatpush.msra.mxu0 0.0
        %1149 = vmatpush.msra.mxu0 0.0
        %1150 = vmatpush.msra.mxu0 0.0
        %1151 = vmatpush.msra.mxu0 0.0
        %1152 = vmatpush.msra.mxu0 0.0
        %1153 = vmatpush.msra.mxu0 0.0
        %1154 = vmatpush.msra.mxu0 0.0
        %1155 = vmatpush.msra.mxu0 0.0
        %1156 = vmatpush.msra.mxu0 0.0
        %1157 = vmatpush.msra.mxu0 %v1057
        %1158 = vmatpush.msra.mxu0 %v1050
        %1159 = vmatmul.f32.gmra.mxu0 %v1061
        %v1160 = vpop.f32.mrf.mxu0
        %v1161 = vadd.f32 %v820, %v1160
        %1162 = vdwg.mxu0
        %1163 = vmatpush.msra.mxu0 0.0
        %1164 = vmatpush.msra.mxu0 0.0
        %1165 = vmatpush.msra.mxu0 0.0
        %1166 = vmatpush.msra.mxu0 0.0
        %1167 = vmatpush.msra.mxu0 0.0
        %1168 = vmatpush.msra.mxu0 0.0
        %1169 = vmatpush.msra.mxu0 0.0
        %1170 = vmatpush.msra.mxu0 0.0
        %1171 = vmatpush.msra.mxu0 0.0
        %1172 = vmatpush.msra.mxu0 0.0
        %1173 = vmatpush.msra.mxu0 0.0
        %1174 = vmatpush.msra.mxu0 0.0
        %1175 = vmatpush.msra.mxu0 0.0
        %1176 = vmatpush.msra.mxu0 0.0
        %1177 = vmatpush.msra.mxu0 %v1058
        %1178 = vmatpush.msra.mxu0 %v1051
        %1179 = vmatmul.f32.gmra.mxu0 %v1061
        %v1180 = vpop.f32.mrf.mxu0
        %v1181 = vadd.f32 %v820, %v1180
        %1182 = vdwg.mxu0
        %1183 = vmatpush.msra.mxu0 0.0
        %1184 = vmatpush.msra.mxu0 0.0
        %1185 = vmatpush.msra.mxu0 0.0
        %1186 = vmatpush.msra.mxu0 0.0
        %1187 = vmatpush.msra.mxu0 0.0
        %1188 = vmatpush.msra.mxu0 0.0
        %1189 = vmatpush.msra.mxu0 0.0
        %1190 = vmatpush.msra.mxu0 0.0
        %1191 = vmatpush.msra.mxu0 0.0
        %1192 = vmatpush.msra.mxu0 0.0
        %1193 = vmatpush.msra.mxu0 0.0
        %1194 = vmatpush.msra.mxu0 0.0
        %1195 = vmatpush.msra.mxu0 0.0
        %1196 = vmatpush.msra.mxu0 0.0
        %1197 = vmatpush.msra.mxu0 %v1059
        %1198 = vmatpush.msra.mxu0 %v1052
        %1199 = vmatmul.f32.gmra.mxu0 %v1061
        %v1200 = vpop.f32.mrf.mxu0
        %v1201 = vadd.f32 %v820, %v1200
        %1202 = vdwg.mxu0
        %v1203 = vmax.f32 %v1081, 0.0
        %v1204 = vmax.f32 %v1101, 0.0
        %v1205 = vmax.f32 %v1121, 0.0
        %v1206 = vmax.f32 %v1141, 0.0
        %v1207 = vmax.f32 %v1161, 0.0
        %v1208 = vmax.f32 %v1181, 0.0
        %v1209 = vmax.f32 %v1201, 0.0
        %v1210 = vadd.f32 %v1203, %v1204
        %v1211 = vadd.f32 %v1210, %v1205
        %v1212 = vadd.f32 %v1211, %v1206
        %v1213 = vadd.f32 %v1212, %v1207
        %v1214 = vadd.f32 %v1213, %v1208
        %v1215 = vadd.f32 %v1214, %v1209
        %v1216 = vadd.f32 %v378, %v593
        %v1217 = vadd.f32 %v378, %v651
        %v1218 = vadd.f32 %v378, %v680
        %v1219 = vadd.f32 %v378, %v709
        %v1220 = vadd.f32 %v378, %v738
        %v1221 = vadd.f32 %v378, %v767
        %v1222 = vadd.f32 %v378, %v796
        %v1223 = vadd.f32 %v381, %v596
        %v1224 = vadd.f32 %v381, %v654
        %v1225 = vadd.f32 %v381, %v683
        %v1226 = vadd.f32 %v381, %v712
        %v1227 = vadd.f32 %v381, %v741
        %v1228 = vadd.f32 %v381, %v770
        %v1229 = vadd.f32 %v381, %v799
        %v1230 = vadd.f32 %v384, %v599
        %v1231 = vadd.f32 %v384, %v657
        %v1232 = vadd.f32 %v384, %v686
        %v1233 = vadd.f32 %v384, %v715
        %v1234 = vadd.f32 %v384, %v744
        %v1235 = vadd.f32 %v384, %v773
        %v1236 = vadd.f32 %v384, %v802
        %v1237 = vadd.f32 %v387, %v602
        %v1238 = vadd.f32 %v387, %v660
        %v1239 = vadd.f32 %v387, %v689
        %v1240 = vadd.f32 %v387, %v718
        %v1241 = vadd.f32 %v387, %v747
        %v1242 = vadd.f32 %v387, %v776
        %v1243 = vadd.f32 %v387, %v805
        %v1244 = vmax.f32 %v1216, 0.0
        %v1245 = vmax.f32 %v1217, 0.0
        %v1246 = vmax.f32 %v1218, 0.0
        %v1247 = vmax.f32 %v1219, 0.0
        %v1248 = vmax.f32 %v1220, 0.0
        %v1249 = vmax.f32 %v1221, 0.0
        %v1250 = vmax.f32 %v1222, 0.0
        %v1251 = vmax.f32 %v1223, 0.0
        %v1252 = vmax.f32 %v1224, 0.0
        %v1253 = vmax.f32 %v1225, 0.0
        %v1254 = vmax.f32 %v1226, 0.0
        %v1255 = vmax.f32 %v1227, 0.0
        %v1256 = vmax.f32 %v1228, 0.0
        %v1257 = vmax.f32 %v1229, 0.0
        %v1258 = vmax.f32 %v1230, 0.0
        %v1259 = vmax.f32 %v1231, 0.0
        %v1260 = vmax.f32 %v1232, 0.0
        %v1261 = vmax.f32 %v1233, 0.0
        %v1262 = vmax.f32 %v1234, 0.0
        %v1263 = vmax.f32 %v1235, 0.0
        %v1264 = vmax.f32 %v1236, 0.0
        %v1265 = vmax.f32 %v1237, 0.0
        %v1266 = vmax.f32 %v1238, 0.0
        %v1267 = vmax.f32 %v1239, 0.0
        %v1268 = vmax.f32 %v1240, 0.0
        %v1269 = vmax.f32 %v1241, 0.0
        %v1270 = vmax.f32 %v1242, 0.0
        %v1271 = vmax.f32 %v1243, 0.0
        %1272 = vmatpush.msra.mxu0 0.0
        %1273 = vmatpush.msra.mxu0 0.0
        %1274 = vmatpush.msra.mxu0 0.0
        %1275 = vmatpush.msra.mxu0 0.0
        %1276 = vmatpush.msra.mxu0 0.0
        %1277 = vmatpush.msra.mxu0 0.0
        %1278 = vmatpush.msra.mxu0 0.0
        %1279 = vmatpush.msra.mxu0 0.0
        %1280 = vmatpush.msra.mxu0 0.0
        %1281 = vmatpush.msra.mxu0 0.0
        %1282 = vmatpush.msra.mxu0 0.0
        %1283 = vmatpush.msra.mxu0 0.0
        %1284 = vmatpush.msra.mxu0 %v1265
        %1285 = vmatpush.msra.mxu0 %v1258
        %1286 = vmatpush.msra.mxu0 %v1251
        %1287 = vmatpush.msra.mxu0 %v1244
        %1288 = vmatmul.f32.gmra.mxu0 %v880
        %v1289 = vpop.f32.mrf.mxu0
        %v1290 = vadd.f32 %v810, %v1289
        %1291 = vmatmul.f32.gmra.mxu0 %v883
        %v1292 = vpop.f32.mrf.mxu0
        %v1293 = vadd.f32 %v815, %v1292
        %1294 = vdwg.mxu0
        %1295 = vmatpush.msra.mxu0 0.0
        %1296 = vmatpush.msra.mxu0 0.0
        %1297 = vmatpush.msra.mxu0 0.0
        %1298 = vmatpush.msra.mxu0 0.0
        %1299 = vmatpush.msra.mxu0 0.0
        %1300 = vmatpush.msra.mxu0 0.0
        %1301 = vmatpush.msra.mxu0 0.0
        %1302 = vmatpush.msra.mxu0 0.0
        %1303 = vmatpush.msra.mxu0 0.0
        %1304 = vmatpush.msra.mxu0 0.0
        %1305 = vmatpush.msra.mxu0 0.0
        %1306 = vmatpush.msra.mxu0 0.0
        %1307 = vmatpush.msra.mxu0 %v1266
        %1308 = vmatpush.msra.mxu0 %v1259
        %1309 = vmatpush.msra.mxu0 %v1252
        %1310 = vmatpush.msra.mxu0 %v1245
        %1311 = vmatmul.f32.gmra.mxu0 %v880
        %v1312 = vpop.f32.mrf.mxu0
        %v1313 = vadd.f32 %v810, %v1312
        %1314 = vmatmul.f32.gmra.mxu0 %v883
        %v1315 = vpop.f32.mrf.mxu0
        %v1316 = vadd.f32 %v815, %v1315
        %1317 = vdwg.mxu0
        %1318 = vmatpush.msra.mxu0 0.0
        %1319 = vmatpush.msra.mxu0 0.0
        %1320 = vmatpush.msra.mxu0 0.0
        %1321 = vmatpush.msra.mxu0 0.0
        %1322 = vmatpush.msra.mxu0 0.0
        %1323 = vmatpush.msra.mxu0 0.0
        %1324 = vmatpush.msra.mxu0 0.0
        %1325 = vmatpush.msra.mxu0 0.0
        %1326 = vmatpush.msra.mxu0 0.0
        %1327 = vmatpush.msra.mxu0 0.0
        %1328 = vmatpush.msra.mxu0 0.0
        %1329 = vmatpush.msra.mxu0 0.0
        %1330 = vmatpush.msra.mxu0 %v1267
        %1331 = vmatpush.msra.mxu0 %v1260
        %1332 = vmatpush.msra.mxu0 %v1253
        %1333 = vmatpush.msra.mxu0 %v1246
        %1334 = vmatmul.f32.gmra.mxu0 %v880
        %v1335 = vpop.f32.mrf.mxu0
        %v1336 = vadd.f32 %v810, %v1335
        %1337 = vmatmul.f32.gmra.mxu0 %v883
        %v1338 = vpop.f32.mrf.mxu0
        %v1339 = vadd.f32 %v815, %v1338
        %1340 = vdwg.mxu0
        %1341 = vmatpush.msra.mxu0 0.0
        %1342 = vmatpush.msra.mxu0 0.0
        %1343 = vmatpush.msra.mxu0 0.0
        %1344 = vmatpush.msra.mxu0 0.0
        %1345 = vmatpush.msra.mxu0 0.0
        %1346 = vmatpush.msra.mxu0 0.0
        %1347 = vmatpush.msra.mxu0 0.0
        %1348 = vmatpush.msra.mxu0 0.0
        %1349 = vmatpush.msra.mxu0 0.0
        %1350 = vmatpush.msra.mxu0 0.0
        %1351 = vmatpush.msra.mxu0 0.0
        %1352 = vmatpush.msra.mxu0 0.0
        %1353 = vmatpush.msra.mxu0 %v1268
        %1354 = vmatpush.msra.mxu0 %v1261
        %1355 = vmatpush.msra.mxu0 %v1254
        %1356 = vmatpush.msra.mxu0 %v1247
        %1357 = vmatmul.f32.gmra.mxu0 %v880
        %v1358 = vpop.f32.mrf.mxu0
        %v1359 = vadd.f32 %v810, %v1358
        %1360 = vmatmul.f32.gmra.mxu0 %v883
        %v1361 = vpop.f32.mrf.mxu0
        %v1362 = vadd.f32 %v815, %v1361
        %1363 = vdwg.mxu0
        %1364 = vmatpush.msra.mxu0 0.0
        %1365 = vmatpush.msra.mxu0 0.0
        %1366 = vmatpush.msra.mxu0 0.0
        %1367 = vmatpush.msra.mxu0 0.0
        %1368 = vmatpush.msra.mxu0 0.0
        %1369 = vmatpush.msra.mxu0 0.0
        %1370 = vmatpush.msra.mxu0 0.0
        %1371 = vmatpush.msra.mxu0 0.0
        %1372 = vmatpush.msra.mxu0 0.0
        %1373 = vmatpush.msra.mxu0 0.0
        %1374 = vmatpush.msra.mxu0 0.0
        %1375 = vmatpush.msra.mxu0 0.0
        %1376 = vmatpush.msra.mxu0 %v1269
        %1377 = vmatpush.msra.mxu0 %v1262
        %1378 = vmatpush.msra.mxu0 %v1255
        %1379 = vmatpush.msra.mxu0 %v1248
        %1380 = vmatmul.f32.gmra.mxu0 %v880
        %v1381 = vpop.f32.mrf.mxu0
        %v1382 = vadd.f32 %v810, %v1381
        %1383 = vmatmul.f32.gmra.mxu0 %v883
        %v1384 = vpop.f32.mrf.mxu0
        %v1385 = vadd.f32 %v815, %v1384
        %1386 = vdwg.mxu0
        %1387 = vmatpush.msra.mxu0 0.0
        %1388 = vmatpush.msra.mxu0 0.0
        %1389 = vmatpush.msra.mxu0 0.0
        %1390 = vmatpush.msra.mxu0 0.0
        %1391 = vmatpush.msra.mxu0 0.0
        %1392 = vmatpush.msra.mxu0 0.0
        %1393 = vmatpush.msra.mxu0 0.0
        %1394 = vmatpush.msra.mxu0 0.0
        %1395 = vmatpush.msra.mxu0 0.0
        %1396 = vmatpush.msra.mxu0 0.0
        %1397 = vmatpush.msra.mxu0 0.0
        %1398 = vmatpush.msra.mxu0 0.0
        %1399 = vmatpush.msra.mxu0 %v1270
        %1400 = vmatpush.msra.mxu0 %v1263
        %1401 = vmatpush.msra.mxu0 %v1256
        %1402 = vmatpush.msra.mxu0 %v1249
        %1403 = vmatmul.f32.gmra.mxu0 %v880
        %v1404 = vpop.f32.mrf.mxu0
        %v1405 = vadd.f32 %v810, %v1404
        %1406 = vmatmul.f32.gmra.mxu0 %v883
        %v1407 = vpop.f32.mrf.mxu0
        %v1408 = vadd.f32 %v815, %v1407
        %1409 = vdwg.mxu0
        %1410 = vmatpush.msra.mxu0 0.0
        %1411 = vmatpush.msra.mxu0 0.0
        %1412 = vmatpush.msra.mxu0 0.0
        %1413 = vmatpush.msra.mxu0 0.0
        %1414 = vmatpush.msra.mxu0 0.0
        %1415 = vmatpush.msra.mxu0 0.0
        %1416 = vmatpush.msra.mxu0 0.0
        %1417 = vmatpush.msra.mxu0 0.0
        %1418 = vmatpush.msra.mxu0 0.0
        %1419 = vmatpush.msra.mxu0 0.0
        %1420 = vmatpush.msra.mxu0 0.0
        %1421 = vmatpush.msra.mxu0 0.0
        %1422 = vmatpush.msra.mxu0 %v1271
        %1423 = vmatpush.msra.mxu0 %v1264
        %1424 = vmatpush.msra.mxu0 %v1257
        %1425 = vmatpush.msra.mxu0 %v1250
        %1426 = vmatmul.f32.gmra.mxu0 %v880
        %v1427 = vpop.f32.mrf.mxu0
        %v1428 = vadd.f32 %v810, %v1427
        %1429 = vmatmul.f32.gmra.mxu0 %v883
        %v1430 = vpop.f32.mrf.mxu0
        %v1431 = vadd.f32 %v815, %v1430
        %1432 = vdwg.mxu0
        %v1433 = vmax.f32 %v1290, 0.0
        %v1434 = vmax.f32 %v1313, 0.0
        %v1435 = vmax.f32 %v1336, 0.0
        %v1436 = vmax.f32 %v1359, 0.0
        %v1437 = vmax.f32 %v1382, 0.0
        %v1438 = vmax.f32 %v1405, 0.0
        %v1439 = vmax.f32 %v1428, 0.0
        %v1440 = vmax.f32 %v1293, 0.0
        %v1441 = vmax.f32 %v1316, 0.0
        %v1442 = vmax.f32 %v1339, 0.0
        %v1443 = vmax.f32 %v1362, 0.0
        %v1444 = vmax.f32 %v1385, 0.0
        %v1445 = vmax.f32 %v1408, 0.0
        %v1446 = vmax.f32 %v1431, 0.0
        %1447 = vmatpush.msra.mxu0 0.0
        %1448 = vmatpush.msra.mxu0 0.0
        %1449 = vmatpush.msra.mxu0 0.0
        %1450 = vmatpush.msra.mxu0 0.0
        %1451 = vmatpush.msra.mxu0 0.0
        %1452 = vmatpush.msra.mxu0 0.0
        %1453 = vmatpush.msra.mxu0 0.0
        %1454 = vmatpush.msra.mxu0 0.0
        %1455 = vmatpush.msra.mxu0 0.0
        %1456 = vmatpush.msra.mxu0 0.0
        %1457 = vmatpush.msra.mxu0 0.0
        %1458 = vmatpush.msra.mxu0 0.0
        %1459 = vmatpush.msra.mxu0 0.0
        %1460 = vmatpush.msra.mxu0 0.0
        %1461 = vmatpush.msra.mxu0 %v1440
        %1462 = vmatpush.msra.mxu0 %v1433
        %1463 = vmatmul.f32.gmra.mxu0 %v1061
        %v1464 = vpop.f32.mrf.mxu0
        %v1465 = vadd.f32 %v820, %v1464
        %1466 = vdwg.mxu0
        %1467 = vmatpush.msra.mxu0 0.0
        %1468 = vmatpush.msra.mxu0 0.0
        %1469 = vmatpush.msra.mxu0 0.0
        %1470 = vmatpush.msra.mxu0 0.0
        %1471 = vmatpush.msra.mxu0 0.0
        %1472 = vmatpush.msra.mxu0 0.0
        %1473 = vmatpush.msra.mxu0 0.0
        %1474 = vmatpush.msra.mxu0 0.0
        %1475 = vmatpush.msra.mxu0 0.0
        %1476 = vmatpush.msra.mxu0 0.0
        %1477 = vmatpush.msra.mxu0 0.0
        %1478 = vmatpush.msra.mxu0 0.0
        %1479 = vmatpush.msra.mxu0 0.0
        %1480 = vmatpush.msra.mxu0 0.0
        %1481 = vmatpush.msra.mxu0 %v1441
        %1482 = vmatpush.msra.mxu0 %v1434
        %1483 = vmatmul.f32.gmra.mxu0 %v1061
        %v1484 = vpop.f32.mrf.mxu0
        %v1485 = vadd.f32 %v820, %v1484
        %1486 = vdwg.mxu0
        %1487 = vmatpush.msra.mxu0 0.0
        %1488 = vmatpush.msra.mxu0 0.0
        %1489 = vmatpush.msra.mxu0 0.0
        %1490 = vmatpush.msra.mxu0 0.0
        %1491 = vmatpush.msra.mxu0 0.0
        %1492 = vmatpush.msra.mxu0 0.0
        %1493 = vmatpush.msra.mxu0 0.0
        %1494 = vmatpush.msra.mxu0 0.0
        %1495 = vmatpush.msra.mxu0 0.0
        %1496 = vmatpush.msra.mxu0 0.0
        %1497 = vmatpush.msra.mxu0 0.0
        %1498 = vmatpush.msra.mxu0 0.0
        %1499 = vmatpush.msra.mxu0 0.0
        %1500 = vmatpush.msra.mxu0 0.0
        %1501 = vmatpush.msra.mxu0 %v1442
        %1502 = vmatpush.msra.mxu0 %v1435
        %1503 = vmatmul.f32.gmra.mxu0 %v1061
        %v1504 = vpop.f32.mrf.mxu0
        %v1505 = vadd.f32 %v820, %v1504
        %1506 = vdwg.mxu0
        %1507 = vmatpush.msra.mxu0 0.0
        %1508 = vmatpush.msra.mxu0 0.0
        %1509 = vmatpush.msra.mxu0 0.0
        %1510 = vmatpush.msra.mxu0 0.0
        %1511 = vmatpush.msra.mxu0 0.0
        %1512 = vmatpush.msra.mxu0 0.0
        %1513 = vmatpush.msra.mxu0 0.0
        %1514 = vmatpush.msra.mxu0 0.0
        %1515 = vmatpush.msra.mxu0 0.0
        %1516 = vmatpush.msra.mxu0 0.0
        %1517 = vmatpush.msra.mxu0 0.0
        %1518 = vmatpush.msra.mxu0 0.0
        %1519 = vmatpush.msra.mxu0 0.0
        %1520 = vmatpush.msra.mxu0 0.0
        %1521 = vmatpush.msra.mxu0 %v1443
        %1522 = vmatpush.msra.mxu0 %v1436
        %1523 = vmatmul.f32.gmra.mxu0 %v1061
        %v1524 = vpop.f32.mrf.mxu0
        %v1525 = vadd.f32 %v820, %v1524
        %1526 = vdwg.mxu0
        %1527 = vmatpush.msra.mxu0 0.0
        %1528 = vmatpush.msra.mxu0 0.0
        %1529 = vmatpush.msra.mxu0 0.0
        %1530 = vmatpush.msra.mxu0 0.0
        %1531 = vmatpush.msra.mxu0 0.0
        %1532 = vmatpush.msra.mxu0 0.0
        %1533 = vmatpush.msra.mxu0 0.0
        %1534 = vmatpush.msra.mxu0 0.0
        %1535 = vmatpush.msra.mxu0 0.0
        %1536 = vmatpush.msra.mxu0 0.0
        %1537 = vmatpush.msra.mxu0 0.0
        %1538 = vmatpush.msra.mxu0 0.0
        %1539 = vmatpush.msra.mxu0 0.0
        %1540 = vmatpush.msra.mxu0 0.0
        %1541 = vmatpush.msra.mxu0 %v1444
        %1542 = vmatpush.msra.mxu0 %v1437
        %1543 = vmatmul.f32.gmra.mxu0 %v1061
        %v1544 = vpop.f32.mrf.mxu0
        %v1545 = vadd.f32 %v820, %v1544
        %1546 = vdwg.mxu0
        %1547 = vmatpush.msra.mxu0 0.0
        %1548 = vmatpush.msra.mxu0 0.0
        %1549 = vmatpush.msra.mxu0 0.0
        %1550 = vmatpush.msra.mxu0 0.0
        %1551 = vmatpush.msra.mxu0 0.0
        %1552 = vmatpush.msra.mxu0 0.0
        %1553 = vmatpush.msra.mxu0 0.0
        %1554 = vmatpush.msra.mxu0 0.0
        %1555 = vmatpush.msra.mxu0 0.0
        %1556 = vmatpush.msra.mxu0 0.0
        %1557 = vmatpush.msra.mxu0 0.0
        %1558 = vmatpush.msra.mxu0 0.0
        %1559 = vmatpush.msra.mxu0 0.0
        %1560 = vmatpush.msra.mxu0 0.0
        %1561 = vmatpush.msra.mxu0 %v1445
        %1562 = vmatpush.msra.mxu0 %v1438
        %1563 = vmatmul.f32.gmra.mxu0 %v1061
        %v1564 = vpop.f32.mrf.mxu0
        %v1565 = vadd.f32 %v820, %v1564
        %1566 = vdwg.mxu0
        %1567 = vmatpush.msra.mxu0 0.0
        %1568 = vmatpush.msra.mxu0 0.0
        %1569 = vmatpush.msra.mxu0 0.0
        %1570 = vmatpush.msra.mxu0 0.0
        %1571 = vmatpush.msra.mxu0 0.0
        %1572 = vmatpush.msra.mxu0 0.0
        %1573 = vmatpush.msra.mxu0 0.0
        %1574 = vmatpush.msra.mxu0 0.0
        %1575 = vmatpush.msra.mxu0 0.0
        %1576 = vmatpush.msra.mxu0 0.0
        %1577 = vmatpush.msra.mxu0 0.0
        %1578 = vmatpush.msra.mxu0 0.0
        %1579 = vmatpush.msra.mxu0 0.0
        %1580 = vmatpush.msra.mxu0 0.0
        %1581 = vmatpush.msra.mxu0 %v1446
        %1582 = vmatpush.msra.mxu0 %v1439
        %1583 = vmatmul.f32.gmra.mxu0 %v1061
        %v1584 = vpop.f32.mrf.mxu0
        %v1585 = vadd.f32 %v820, %v1584
        %1586 = vdwg.mxu0
        %v1587 = vmax.f32 %v1465, 0.0
        %v1588 = vmax.f32 %v1485, 0.0
        %v1589 = vmax.f32 %v1505, 0.0
        %v1590 = vmax.f32 %v1525, 0.0
        %v1591 = vmax.f32 %v1545, 0.0
        %v1592 = vmax.f32 %v1565, 0.0
        %v1593 = vmax.f32 %v1585, 0.0
        %v1594 = vadd.f32 %v1587, %v1588
        %v1595 = vadd.f32 %v1594, %v1589
        %v1596 = vadd.f32 %v1595, %v1590
        %v1597 = vadd.f32 %v1596, %v1591
        %v1598 = vadd.f32 %v1597, %v1592
        %v1599 = vadd.f32 %v1598, %v1593
        %v1600 = vadd.f32 %v407, %v593
        %v1601 = vadd.f32 %v407, %v622
        %v1602 = vadd.f32 %v407, %v680
        %v1603 = vadd.f32 %v407, %v709
        %v1604 = vadd.f32 %v407, %v738
        %v1605 = vadd.f32 %v407, %v767
        %v1606 = vadd.f32 %v407, %v796
        %v1607 = vadd.f32 %v410, %v596
        %v1608 = vadd.f32 %v410, %v625
        %v1609 = vadd.f32 %v410, %v683
        %v1610 = vadd.f32 %v410, %v712
        %v1611 = vadd.f32 %v410, %v741
        %v1612 = vadd.f32 %v410, %v770
        %v1613 = vadd.f32 %v410, %v799
        %v1614 = vadd.f32 %v413, %v599
        %v1615 = vadd.f32 %v413, %v628
        %v1616 = vadd.f32 %v413, %v686
        %v1617 = vadd.f32 %v413, %v715
        %v1618 = vadd.f32 %v413, %v744
        %v1619 = vadd.f32 %v413, %v773
        %v1620 = vadd.f32 %v413, %v802
        %v1621 = vadd.f32 %v416, %v602
        %v1622 = vadd.f32 %v416, %v631
        %v1623 = vadd.f32 %v416, %v689
        %v1624 = vadd.f32 %v416, %v718
        %v1625 = vadd.f32 %v416, %v747
        %v1626 = vadd.f32 %v416, %v776
        %v1627 = vadd.f32 %v416, %v805
        %v1628 = vmax.f32 %v1600, 0.0
        %v1629 = vmax.f32 %v1601, 0.0
        %v1630 = vmax.f32 %v1602, 0.0
        %v1631 = vmax.f32 %v1603, 0.0
        %v1632 = vmax.f32 %v1604, 0.0
        %v1633 = vmax.f32 %v1605, 0.0
        %v1634 = vmax.f32 %v1606, 0.0
        %v1635 = vmax.f32 %v1607, 0.0
        %v1636 = vmax.f32 %v1608, 0.0
        %v1637 = vmax.f32 %v1609, 0.0
        %v1638 = vmax.f32 %v1610, 0.0
        %v1639 = vmax.f32 %v1611, 0.0
        %v1640 = vmax.f32 %v1612, 0.0
        %v1641 = vmax.f32 %v1613, 0.0
        %v1642 = vmax.f32 %v1614, 0.0
        %v1643 = vmax.f32 %v1615, 0.0
        %v1644 = vmax.f32 %v1616, 0.0
        %v1645 = vmax.f32 %v1617, 0.0
        %v1646 = vmax.f32 %v1618, 0.0
        %v1647 = vmax.f32 %v1619, 0.0
        %v1648 = vmax.f32 %v1620, 0.0
        %v1649 = vmax.f32 %v1621, 0.0
        %v1650 = vmax.f32 %v1622, 0.0
        %v1651 = vmax.f32 %v1623, 0.0
        %v1652 = vmax.f32 %v1624, 0.0
        %v1653 = vmax.f32 %v1625, 0.0
        %v1654 = vmax.f32 %v1626, 0.0
        %v1655 = vmax.f32 %v1627, 0.0
        %1656 = vmatpush.msra.mxu0 0.0
        %1657 = vmatpush.msra.mxu0 0.0
        %1658 = vmatpush.msra.mxu0 0.0
        %1659 = vmatpush.msra.mxu0 0.0
        %1660 = vmatpush.msra.mxu0 0.0
        %1661 = vmatpush.msra.mxu0 0.0
        %1662 = vmatpush.msra.mxu0 0.0
        %1663 = vmatpush.msra.mxu0 0.0
        %1664 = vmatpush.msra.mxu0 0.0
        %1665 = vmatpush.msra.mxu0 0.0
        %1666 = vmatpush.msra.mxu0 0.0
        %1667 = vmatpush.msra.mxu0 0.0
        %1668 = vmatpush.msra.mxu0 %v1649
        %1669 = vmatpush.msra.mxu0 %v1642
        %1670 = vmatpush.msra.mxu0 %v1635
        %1671 = vmatpush.msra.mxu0 %v1628
        %1672 = vmatmul.f32.gmra.mxu0 %v880
        %v1673 = vpop.f32.mrf.mxu0
        %v1674 = vadd.f32 %v810, %v1673
        %1675 = vmatmul.f32.gmra.mxu0 %v883
        %v1676 = vpop.f32.mrf.mxu0
        %v1677 = vadd.f32 %v815, %v1676
        %1678 = vdwg.mxu0
        %1679 = vmatpush.msra.mxu0 0.0
        %1680 = vmatpush.msra.mxu0 0.0
        %1681 = vmatpush.msra.mxu0 0.0
        %1682 = vmatpush.msra.mxu0 0.0
        %1683 = vmatpush.msra.mxu0 0.0
        %1684 = vmatpush.msra.mxu0 0.0
        %1685 = vmatpush.msra.mxu0 0.0
        %1686 = vmatpush.msra.mxu0 0.0
        %1687 = vmatpush.msra.mxu0 0.0
        %1688 = vmatpush.msra.mxu0 0.0
        %1689 = vmatpush.msra.mxu0 0.0
        %1690 = vmatpush.msra.mxu0 0.0
        %1691 = vmatpush.msra.mxu0 %v1650
        %1692 = vmatpush.msra.mxu0 %v1643
        %1693 = vmatpush.msra.mxu0 %v1636
        %1694 = vmatpush.msra.mxu0 %v1629
        %1695 = vmatmul.f32.gmra.mxu0 %v880
        %v1696 = vpop.f32.mrf.mxu0
        %v1697 = vadd.f32 %v810, %v1696
        %1698 = vmatmul.f32.gmra.mxu0 %v883
        %v1699 = vpop.f32.mrf.mxu0
        %v1700 = vadd.f32 %v815, %v1699
        %1701 = vdwg.mxu0
        %1702 = vmatpush.msra.mxu0 0.0
        %1703 = vmatpush.msra.mxu0 0.0
        %1704 = vmatpush.msra.mxu0 0.0
        %1705 = vmatpush.msra.mxu0 0.0
        %1706 = vmatpush.msra.mxu0 0.0
        %1707 = vmatpush.msra.mxu0 0.0
        %1708 = vmatpush.msra.mxu0 0.0
        %1709 = vmatpush.msra.mxu0 0.0
        %1710 = vmatpush.msra.mxu0 0.0
        %1711 = vmatpush.msra.mxu0 0.0
        %1712 = vmatpush.msra.mxu0 0.0
        %1713 = vmatpush.msra.mxu0 0.0
        %1714 = vmatpush.msra.mxu0 %v1651
        %1715 = vmatpush.msra.mxu0 %v1644
        %1716 = vmatpush.msra.mxu0 %v1637
        %1717 = vmatpush.msra.mxu0 %v1630
        %1718 = vmatmul.f32.gmra.mxu0 %v880
        %v1719 = vpop.f32.mrf.mxu0
        %v1720 = vadd.f32 %v810, %v1719
        %1721 = vmatmul.f32.gmra.mxu0 %v883
        %v1722 = vpop.f32.mrf.mxu0
        %v1723 = vadd.f32 %v815, %v1722
        %1724 = vdwg.mxu0
        %1725 = vmatpush.msra.mxu0 0.0
        %1726 = vmatpush.msra.mxu0 0.0
        %1727 = vmatpush.msra.mxu0 0.0
        %1728 = vmatpush.msra.mxu0 0.0
        %1729 = vmatpush.msra.mxu0 0.0
        %1730 = vmatpush.msra.mxu0 0.0
        %1731 = vmatpush.msra.mxu0 0.0
        %1732 = vmatpush.msra.mxu0 0.0
        %1733 = vmatpush.msra.mxu0 0.0
        %1734 = vmatpush.msra.mxu0 0.0
        %1735 = vmatpush.msra.mxu0 0.0
        %1736 = vmatpush.msra.mxu0 0.0
        %1737 = vmatpush.msra.mxu0 %v1652
        %1738 = vmatpush.msra.mxu0 %v1645
        %1739 = vmatpush.msra.mxu0 %v1638
        %1740 = vmatpush.msra.mxu0 %v1631
        %1741 = vmatmul.f32.gmra.mxu0 %v880
        %v1742 = vpop.f32.mrf.mxu0
        %v1743 = vadd.f32 %v810, %v1742
        %1744 = vmatmul.f32.gmra.mxu0 %v883
        %v1745 = vpop.f32.mrf.mxu0
        %v1746 = vadd.f32 %v815, %v1745
        %1747 = vdwg.mxu0
        %1748 = vmatpush.msra.mxu0 0.0
        %1749 = vmatpush.msra.mxu0 0.0
        %1750 = vmatpush.msra.mxu0 0.0
        %1751 = vmatpush.msra.mxu0 0.0
        %1752 = vmatpush.msra.mxu0 0.0
        %1753 = vmatpush.msra.mxu0 0.0
        %1754 = vmatpush.msra.mxu0 0.0
        %1755 = vmatpush.msra.mxu0 0.0
        %1756 = vmatpush.msra.mxu0 0.0
        %1757 = vmatpush.msra.mxu0 0.0
        %1758 = vmatpush.msra.mxu0 0.0
        %1759 = vmatpush.msra.mxu0 0.0
        %1760 = vmatpush.msra.mxu0 %v1653
        %1761 = vmatpush.msra.mxu0 %v1646
        %1762 = vmatpush.msra.mxu0 %v1639
        %1763 = vmatpush.msra.mxu0 %v1632
        %1764 = vmatmul.f32.gmra.mxu0 %v880
        %v1765 = vpop.f32.mrf.mxu0
        %v1766 = vadd.f32 %v810, %v1765
        %1767 = vmatmul.f32.gmra.mxu0 %v883
        %v1768 = vpop.f32.mrf.mxu0
        %v1769 = vadd.f32 %v815, %v1768
        %1770 = vdwg.mxu0
        %1771 = vmatpush.msra.mxu0 0.0
        %1772 = vmatpush.msra.mxu0 0.0
        %1773 = vmatpush.msra.mxu0 0.0
        %1774 = vmatpush.msra.mxu0 0.0
        %1775 = vmatpush.msra.mxu0 0.0
        %1776 = vmatpush.msra.mxu0 0.0
        %1777 = vmatpush.msra.mxu0 0.0
        %1778 = vmatpush.msra.mxu0 0.0
        %1779 = vmatpush.msra.mxu0 0.0
        %1780 = vmatpush.msra.mxu0 0.0
        %1781 = vmatpush.msra.mxu0 0.0
        %1782 = vmatpush.msra.mxu0 0.0
        %1783 = vmatpush.msra.mxu0 %v1654
        %1784 = vmatpush.msra.mxu0 %v1647
        %1785 = vmatpush.msra.mxu0 %v1640
        %1786 = vmatpush.msra.mxu0 %v1633
        %1787 = vmatmul.f32.gmra.mxu0 %v880
        %v1788 = vpop.f32.mrf.mxu0
        %v1789 = vadd.f32 %v810, %v1788
        %1790 = vmatmul.f32.gmra.mxu0 %v883
        %v1791 = vpop.f32.mrf.mxu0
        %v1792 = vadd.f32 %v815, %v1791
        %1793 = vdwg.mxu0
        %1794 = vmatpush.msra.mxu0 0.0
        %1795 = vmatpush.msra.mxu0 0.0
        %1796 = vmatpush.msra.mxu0 0.0
        %1797 = vmatpush.msra.mxu0 0.0
        %1798 = vmatpush.msra.mxu0 0.0
        %1799 = vmatpush.msra.mxu0 0.0
        %1800 = vmatpush.msra.mxu0 0.0
        %1801 = vmatpush.msra.mxu0 0.0
        %1802 = vmatpush.msra.mxu0 0.0
        %1803 = vmatpush.msra.mxu0 0.0
        %1804 = vmatpush.msra.mxu0 0.0
        %1805 = vmatpush.msra.mxu0 0.0
        %1806 = vmatpush.msra.mxu0 %v1655
        %1807 = vmatpush.msra.mxu0 %v1648
        %1808 = vmatpush.msra.mxu0 %v1641
        %1809 = vmatpush.msra.mxu0 %v1634
        %1810 = vmatmul.f32.gmra.mxu0 %v880
        %v1811 = vpop.f32.mrf.mxu0
        %v1812 = vadd.f32 %v810, %v1811
        %1813 = vmatmul.f32.gmra.mxu0 %v883
        %v1814 = vpop.f32.mrf.mxu0
        %v1815 = vadd.f32 %v815, %v1814
        %1816 = vdwg.mxu0
        %v1817 = vmax.f32 %v1674, 0.0
        %v1818 = vmax.f32 %v1697, 0.0
        %v1819 = vmax.f32 %v1720, 0.0
        %v1820 = vmax.f32 %v1743, 0.0
        %v1821 = vmax.f32 %v1766, 0.0
        %v1822 = vmax.f32 %v1789, 0.0
        %v1823 = vmax.f32 %v1812, 0.0
        %v1824 = vmax.f32 %v1677, 0.0
        %v1825 = vmax.f32 %v1700, 0.0
        %v1826 = vmax.f32 %v1723, 0.0
        %v1827 = vmax.f32 %v1746, 0.0
        %v1828 = vmax.f32 %v1769, 0.0
        %v1829 = vmax.f32 %v1792, 0.0
        %v1830 = vmax.f32 %v1815, 0.0
        %1831 = vmatpush.msra.mxu0 0.0
        %1832 = vmatpush.msra.mxu0 0.0
        %1833 = vmatpush.msra.mxu0 0.0
        %1834 = vmatpush.msra.mxu0 0.0
        %1835 = vmatpush.msra.mxu0 0.0
        %1836 = vmatpush.msra.mxu0 0.0
        %1837 = vmatpush.msra.mxu0 0.0
        %1838 = vmatpush.msra.mxu0 0.0
        %1839 = vmatpush.msra.mxu0 0.0
        %1840 = vmatpush.msra.mxu0 0.0
        %1841 = vmatpush.msra.mxu0 0.0
        %1842 = vmatpush.msra.mxu0 0.0
        %1843 = vmatpush.msra.mxu0 0.0
        %1844 = vmatpush.msra.mxu0 0.0
        %1845 = vmatpush.msra.mxu0 %v1824
        %1846 = vmatpush.msra.mxu0 %v1817
        %1847 = vmatmul.f32.gmra.mxu0 %v1061
        %v1848 = vpop.f32.mrf.mxu0
        %v1849 = vadd.f32 %v820, %v1848
        %1850 = vdwg.mxu0
        %1851 = vmatpush.msra.mxu0 0.0
        %1852 = vmatpush.msra.mxu0 0.0
        %1853 = vmatpush.msra.mxu0 0.0
        %1854 = vmatpush.msra.mxu0 0.0
        %1855 = vmatpush.msra.mxu0 0.0
        %1856 = vmatpush.msra.mxu0 0.0
        %1857 = vmatpush.msra.mxu0 0.0
        %1858 = vmatpush.msra.mxu0 0.0
        %1859 = vmatpush.msra.mxu0 0.0
        %1860 = vmatpush.msra.mxu0 0.0
        %1861 = vmatpush.msra.mxu0 0.0
        %1862 = vmatpush.msra.mxu0 0.0
        %1863 = vmatpush.msra.mxu0 0.0
        %1864 = vmatpush.msra.mxu0 0.0
        %1865 = vmatpush.msra.mxu0 %v1825
        %1866 = vmatpush.msra.mxu0 %v1818
        %1867 = vmatmul.f32.gmra.mxu0 %v1061
        %v1868 = vpop.f32.mrf.mxu0
        %v1869 = vadd.f32 %v820, %v1868
        %1870 = vdwg.mxu0
        %1871 = vmatpush.msra.mxu0 0.0
        %1872 = vmatpush.msra.mxu0 0.0
        %1873 = vmatpush.msra.mxu0 0.0
        %1874 = vmatpush.msra.mxu0 0.0
        %1875 = vmatpush.msra.mxu0 0.0
        %1876 = vmatpush.msra.mxu0 0.0
        %1877 = vmatpush.msra.mxu0 0.0
        %1878 = vmatpush.msra.mxu0 0.0
        %1879 = vmatpush.msra.mxu0 0.0
        %1880 = vmatpush.msra.mxu0 0.0
        %1881 = vmatpush.msra.mxu0 0.0
        %1882 = vmatpush.msra.mxu0 0.0
        %1883 = vmatpush.msra.mxu0 0.0
        %1884 = vmatpush.msra.mxu0 0.0
        %1885 = vmatpush.msra.mxu0 %v1826
        %1886 = vmatpush.msra.mxu0 %v1819
        %1887 = vmatmul.f32.gmra.mxu0 %v1061
        %v1888 = vpop.f32.mrf.mxu0
        %v1889 = vadd.f32 %v820, %v1888
        %1890 = vdwg.mxu0
        %1891 = vmatpush.msra.mxu0 0.0
        %1892 = vmatpush.msra.mxu0 0.0
        %1893 = vmatpush.msra.mxu0 0.0
        %1894 = vmatpush.msra.mxu0 0.0
        %1895 = vmatpush.msra.mxu0 0.0
        %1896 = vmatpush.msra.mxu0 0.0
        %1897 = vmatpush.msra.mxu0 0.0
        %1898 = vmatpush.msra.mxu0 0.0
        %1899 = vmatpush.msra.mxu0 0.0
        %1900 = vmatpush.msra.mxu0 0.0
        %1901 = vmatpush.msra.mxu0 0.0
        %1902 = vmatpush.msra.mxu0 0.0
        %1903 = vmatpush.msra.mxu0 0.0
        %1904 = vmatpush.msra.mxu0 0.0
        %1905 = vmatpush.msra.mxu0 %v1827
        %1906 = vmatpush.msra.mxu0 %v1820
        %1907 = vmatmul.f32.gmra.mxu0 %v1061
        %v1908 = vpop.f32.mrf.mxu0
        %v1909 = vadd.f32 %v820, %v1908
        %1910 = vdwg.mxu0
        %1911 = vmatpush.msra.mxu0 0.0
        %1912 = vmatpush.msra.mxu0 0.0
        %1913 = vmatpush.msra.mxu0 0.0
        %1914 = vmatpush.msra.mxu0 0.0
        %1915 = vmatpush.msra.mxu0 0.0
        %1916 = vmatpush.msra.mxu0 0.0
        %1917 = vmatpush.msra.mxu0 0.0
        %1918 = vmatpush.msra.mxu0 0.0
        %1919 = vmatpush.msra.mxu0 0.0
        %1920 = vmatpush.msra.mxu0 0.0
        %1921 = vmatpush.msra.mxu0 0.0
        %1922 = vmatpush.msra.mxu0 0.0
        %1923 = vmatpush.msra.mxu0 0.0
        %1924 = vmatpush.msra.mxu0 0.0
        %1925 = vmatpush.msra.mxu0 %v1828
        %1926 = vmatpush.msra.mxu0 %v1821
        %1927 = vmatmul.f32.gmra.mxu0 %v1061
        %v1928 = vpop.f32.mrf.mxu0
        %v1929 = vadd.f32 %v820, %v1928
        %1930 = vdwg.mxu0
        %1931 = vmatpush.msra.mxu0 0.0
        %1932 = vmatpush.msra.mxu0 0.0
        %1933 = vmatpush.msra.mxu0 0.0
        %1934 = vmatpush.msra.mxu0 0.0
        %1935 = vmatpush.msra.mxu0 0.0
        %1936 = vmatpush.msra.mxu0 0.0
        %1937 = vmatpush.msra.mxu0 0.0
        %1938 = vmatpush.msra.mxu0 0.0
        %1939 = vmatpush.msra.mxu0 0.0
        %1940 = vmatpush.msra.mxu0 0.0
        %1941 = vmatpush.msra.mxu0 0.0
        %1942 = vmatpush.msra.mxu0 0.0
        %1943 = vmatpush.msra.mxu0 0.0
        %1944 = vmatpush.msra.mxu0 0.0
        %1945 = vmatpush.msra.mxu0 %v1829
        %1946 = vmatpush.msra.mxu0 %v1822
        %1947 = vmatmul.f32.gmra.mxu0 %v1061
        %v1948 = vpop.f32.mrf.mxu0
        %v1949 = vadd.f32 %v820, %v1948
        %1950 = vdwg.mxu0
        %1951 = vmatpush.msra.mxu0 0.0
        %1952 = vmatpush.msra.mxu0 0.0
        %1953 = vmatpush.msra.mxu0 0.0
        %1954 = vmatpush.msra.mxu0 0.0
        %1955 = vmatpush.msra.mxu0 0.0
        %1956 = vmatpush.msra.mxu0 0.0
        %1957 = vmatpush.msra.mxu0 0.0
        %1958 = vmatpush.msra.mxu0 0.0
        %1959 = vmatpush.msra.mxu0 0.0
        %1960 = vmatpush.msra.mxu0 0.0
        %1961 = vmatpush.msra.mxu0 0.0
        %1962 = vmatpush.msra.mxu0 0.0
        %1963 = vmatpush.msra.mxu0 0.0
        %1964 = vmatpush.msra.mxu0 0.0
        %1965 = vmatpush.msra.mxu0 %v1830
        %1966 = vmatpush.msra.mxu0 %v1823
        %1967 = vmatmul.f32.gmra.mxu0 %v1061
        %v1968 = vpop.f32.mrf.mxu0
        %v1969 = vadd.f32 %v820, %v1968
        %1970 = vdwg.mxu0
        %v1971 = vmax.f32 %v1849, 0.0
        %v1972 = vmax.f32 %v1869, 0.0
        %v1973 = vmax.f32 %v1889, 0.0
        %v1974 = vmax.f32 %v1909, 0.0
        %v1975 = vmax.f32 %v1929, 0.0
        %v1976 = vmax.f32 %v1949, 0.0
        %v1977 = vmax.f32 %v1969, 0.0
        %v1978 = vadd.f32 %v1971, %v1972
        %v1979 = vadd.f32 %v1978, %v1973
        %v1980 = vadd.f32 %v1979, %v1974
        %v1981 = vadd.f32 %v1980, %v1975
        %v1982 = vadd.f32 %v1981, %v1976
        %v1983 = vadd.f32 %v1982, %v1977
        %v1984 = vadd.f32 %v436, %v593
        %v1985 = vadd.f32 %v436, %v622
        %v1986 = vadd.f32 %v436, %v651
        %v1987 = vadd.f32 %v436, %v709
        %v1988 = vadd.f32 %v436, %v738
        %v1989 = vadd.f32 %v436, %v767
        %v1990 = vadd.f32 %v436, %v796
        %v1991 = vadd.f32 %v439, %v596
        %v1992 = vadd.f32 %v439, %v625
        %v1993 = vadd.f32 %v439, %v654
        %v1994 = vadd.f32 %v439, %v712
        %v1995 = vadd.f32 %v439, %v741
        %v1996 = vadd.f32 %v439, %v770
        %v1997 = vadd.f32 %v439, %v799
        %v1998 = vadd.f32 %v442, %v599
        %v1999 = vadd.f32 %v442, %v628
        %v2000 = vadd.f32 %v442, %v657
        %v2001 = vadd.f32 %v442, %v715
        %v2002 = vadd.f32 %v442, %v744
        %v2003 = vadd.f32 %v442, %v773
        %v2004 = vadd.f32 %v442, %v802
        %v2005 = vadd.f32 %v445, %v602
        %v2006 = vadd.f32 %v445, %v631
        %v2007 = vadd.f32 %v445, %v660
        %v2008 = vadd.f32 %v445, %v718
        %v2009 = vadd.f32 %v445, %v747
        %v2010 = vadd.f32 %v445, %v776
        %v2011 = vadd.f32 %v445, %v805
        %v2012 = vmax.f32 %v1984, 0.0
        %v2013 = vmax.f32 %v1985, 0.0
        %v2014 = vmax.f32 %v1986, 0.0
        %v2015 = vmax.f32 %v1987, 0.0
        %v2016 = vmax.f32 %v1988, 0.0
        %v2017 = vmax.f32 %v1989, 0.0
        %v2018 = vmax.f32 %v1990, 0.0
        %v2019 = vmax.f32 %v1991, 0.0
        %v2020 = vmax.f32 %v1992, 0.0
        %v2021 = vmax.f32 %v1993, 0.0
        %v2022 = vmax.f32 %v1994, 0.0
        %v2023 = vmax.f32 %v1995, 0.0
        %v2024 = vmax.f32 %v1996, 0.0
        %v2025 = vmax.f32 %v1997, 0.0
        %v2026 = vmax.f32 %v1998, 0.0
        %v2027 = vmax.f32 %v1999, 0.0
        %v2028 = vmax.f32 %v2000, 0.0
        %v2029 = vmax.f32 %v2001, 0.0
        %v2030 = vmax.f32 %v2002, 0.0
        %v2031 = vmax.f32 %v2003, 0.0
        %v2032 = vmax.f32 %v2004, 0.0
        %v2033 = vmax.f32 %v2005, 0.0
        %v2034 = vmax.f32 %v2006, 0.0
        %v2035 = vmax.f32 %v2007, 0.0
        %v2036 = vmax.f32 %v2008, 0.0
        %v2037 = vmax.f32 %v2009, 0.0
        %v2038 = vmax.f32 %v2010, 0.0
        %v2039 = vmax.f32 %v2011, 0.0
        %2040 = vmatpush.msra.mxu0 0.0
        %2041 = vmatpush.msra.mxu0 0.0
        %2042 = vmatpush.msra.mxu0 0.0
        %2043 = vmatpush.msra.mxu0 0.0
        %2044 = vmatpush.msra.mxu0 0.0
        %2045 = vmatpush.msra.mxu0 0.0
        %2046 = vmatpush.msra.mxu0 0.0
        %2047 = vmatpush.msra.mxu0 0.0
        %2048 = vmatpush.msra.mxu0 0.0
        %2049 = vmatpush.msra.mxu0 0.0
        %2050 = vmatpush.msra.mxu0 0.0
        %2051 = vmatpush.msra.mxu0 0.0
        %2052 = vmatpush.msra.mxu0 %v2033
        %2053 = vmatpush.msra.mxu0 %v2026
        %2054 = vmatpush.msra.mxu0 %v2019
        %2055 = vmatpush.msra.mxu0 %v2012
        %2056 = vmatmul.f32.gmra.mxu0 %v880
        %v2057 = vpop.f32.mrf.mxu0
        %v2058 = vadd.f32 %v810, %v2057
        %2059 = vmatmul.f32.gmra.mxu0 %v883
        %v2060 = vpop.f32.mrf.mxu0
        %v2061 = vadd.f32 %v815, %v2060
        %2062 = vdwg.mxu0
        %2063 = vmatpush.msra.mxu0 0.0
        %2064 = vmatpush.msra.mxu0 0.0
        %2065 = vmatpush.msra.mxu0 0.0
        %2066 = vmatpush.msra.mxu0 0.0
        %2067 = vmatpush.msra.mxu0 0.0
        %2068 = vmatpush.msra.mxu0 0.0
        %2069 = vmatpush.msra.mxu0 0.0
        %2070 = vmatpush.msra.mxu0 0.0
        %2071 = vmatpush.msra.mxu0 0.0
        %2072 = vmatpush.msra.mxu0 0.0
        %2073 = vmatpush.msra.mxu0 0.0
        %2074 = vmatpush.msra.mxu0 0.0
        %2075 = vmatpush.msra.mxu0 %v2034
        %2076 = vmatpush.msra.mxu0 %v2027
        %2077 = vmatpush.msra.mxu0 %v2020
        %2078 = vmatpush.msra.mxu0 %v2013
        %2079 = vmatmul.f32.gmra.mxu0 %v880
        %v2080 = vpop.f32.mrf.mxu0
        %v2081 = vadd.f32 %v810, %v2080
        %2082 = vmatmul.f32.gmra.mxu0 %v883
        %v2083 = vpop.f32.mrf.mxu0
        %v2084 = vadd.f32 %v815, %v2083
        %2085 = vdwg.mxu0
        %2086 = vmatpush.msra.mxu0 0.0
        %2087 = vmatpush.msra.mxu0 0.0
        %2088 = vmatpush.msra.mxu0 0.0
        %2089 = vmatpush.msra.mxu0 0.0
        %2090 = vmatpush.msra.mxu0 0.0
        %2091 = vmatpush.msra.mxu0 0.0
        %2092 = vmatpush.msra.mxu0 0.0
        %2093 = vmatpush.msra.mxu0 0.0
        %2094 = vmatpush.msra.mxu0 0.0
        %2095 = vmatpush.msra.mxu0 0.0
        %2096 = vmatpush.msra.mxu0 0.0
        %2097 = vmatpush.msra.mxu0 0.0
        %2098 = vmatpush.msra.mxu0 %v2035
        %2099 = vmatpush.msra.mxu0 %v2028
        %2100 = vmatpush.msra.mxu0 %v2021
        %2101 = vmatpush.msra.mxu0 %v2014
        %2102 = vmatmul.f32.gmra.mxu0 %v880
        %v2103 = vpop.f32.mrf.mxu0
        %v2104 = vadd.f32 %v810, %v2103
        %2105 = vmatmul.f32.gmra.mxu0 %v883
        %v2106 = vpop.f32.mrf.mxu0
        %v2107 = vadd.f32 %v815, %v2106
        %2108 = vdwg.mxu0
        %2109 = vmatpush.msra.mxu0 0.0
        %2110 = vmatpush.msra.mxu0 0.0
        %2111 = vmatpush.msra.mxu0 0.0
        %2112 = vmatpush.msra.mxu0 0.0
        %2113 = vmatpush.msra.mxu0 0.0
        %2114 = vmatpush.msra.mxu0 0.0
        %2115 = vmatpush.msra.mxu0 0.0
        %2116 = vmatpush.msra.mxu0 0.0
        %2117 = vmatpush.msra.mxu0 0.0
        %2118 = vmatpush.msra.mxu0 0.0
        %2119 = vmatpush.msra.mxu0 0.0
        %2120 = vmatpush.msra.mxu0 0.0
        %2121 = vmatpush.msra.mxu0 %v2036
        %2122 = vmatpush.msra.mxu0 %v2029
        %2123 = vmatpush.msra.mxu0 %v2022
        %2124 = vmatpush.msra.mxu0 %v2015
        %2125 = vmatmul.f32.gmra.mxu0 %v880
        %v2126 = vpop.f32.mrf.mxu0
        %v2127 = vadd.f32 %v810, %v2126
        %2128 = vmatmul.f32.gmra.mxu0 %v883
        %v2129 = vpop.f32.mrf.mxu0
        %v2130 = vadd.f32 %v815, %v2129
        %2131 = vdwg.mxu0
        %2132 = vmatpush.msra.mxu0 0.0
        %2133 = vmatpush.msra.mxu0 0.0
        %2134 = vmatpush.msra.mxu0 0.0
        %2135 = vmatpush.msra.mxu0 0.0
        %2136 = vmatpush.msra.mxu0 0.0
        %2137 = vmatpush.msra.mxu0 0.0
        %2138 = vmatpush.msra.mxu0 0.0
        %2139 = vmatpush.msra.mxu0 0.0
        %2140 = vmatpush.msra.mxu0 0.0
        %2141 = vmatpush.msra.mxu0 0.0
        %2142 = vmatpush.msra.mxu0 0.0
        %2143 = vmatpush.msra.mxu0 0.0
        %2144 = vmatpush.msra.mxu0 %v2037
        %2145 = vmatpush.msra.mxu0 %v2030
        %2146 = vmatpush.msra.mxu0 %v2023
        %2147 = vmatpush.msra.mxu0 %v2016
        %2148 = vmatmul.f32.gmra.mxu0 %v880
        %v2149 = vpop.f32.mrf.mxu0
        %v2150 = vadd.f32 %v810, %v2149
        %2151 = vmatmul.f32.gmra.mxu0 %v883
        %v2152 = vpop.f32.mrf.mxu0
        %v2153 = vadd.f32 %v815, %v2152
        %2154 = vdwg.mxu0
        %2155 = vmatpush.msra.mxu0 0.0
        %2156 = vmatpush.msra.mxu0 0.0
        %2157 = vmatpush.msra.mxu0 0.0
        %2158 = vmatpush.msra.mxu0 0.0
        %2159 = vmatpush.msra.mxu0 0.0
        %2160 = vmatpush.msra.mxu0 0.0
        %2161 = vmatpush.msra.mxu0 0.0
        %2162 = vmatpush.msra.mxu0 0.0
        %2163 = vmatpush.msra.mxu0 0.0
        %2164 = vmatpush.msra.mxu0 0.0
        %2165 = vmatpush.msra.mxu0 0.0
        %2166 = vmatpush.msra.mxu0 0.0
        %2167 = vmatpush.msra.mxu0 %v2038
        %2168 = vmatpush.msra.mxu0 %v2031
        %2169 = vmatpush.msra.mxu0 %v2024
        %2170 = vmatpush.msra.mxu0 %v2017
        %2171 = vmatmul.f32.gmra.mxu0 %v880
        %v2172 = vpop.f32.mrf.mxu0
        %v2173 = vadd.f32 %v810, %v2172
        %2174 = vmatmul.f32.gmra.mxu0 %v883
        %v2175 = vpop.f32.mrf.mxu0
        %v2176 = vadd.f32 %v815, %v2175
        %2177 = vdwg.mxu0
        %2178 = vmatpush.msra.mxu0 0.0
        %2179 = vmatpush.msra.mxu0 0.0
        %2180 = vmatpush.msra.mxu0 0.0
        %2181 = vmatpush.msra.mxu0 0.0
        %2182 = vmatpush.msra.mxu0 0.0
        %2183 = vmatpush.msra.mxu0 0.0
        %2184 = vmatpush.msra.mxu0 0.0
        %2185 = vmatpush.msra.mxu0 0.0
        %2186 = vmatpush.msra.mxu0 0.0
        %2187 = vmatpush.msra.mxu0 0.0
        %2188 = vmatpush.msra.mxu0 0.0
        %2189 = vmatpush.msra.mxu0 0.0
        %2190 = vmatpush.msra.mxu0 %v2039
        %2191 = vmatpush.msra.mxu0 %v2032
        %2192 = vmatpush.msra.mxu0 %v2025
        %2193 = vmatpush.msra.mxu0 %v2018
        %2194 = vmatmul.f32.gmra.mxu0 %v880
        %v2195 = vpop.f32.mrf.mxu0
        %v2196 = vadd.f32 %v810, %v2195
        %2197 = vmatmul.f32.gmra.mxu0 %v883
        %v2198 = vpop.f32.mrf.mxu0
        %v2199 = vadd.f32 %v815, %v2198
        %2200 = vdwg.mxu0
        %v2201 = vmax.f32 %v2058, 0.0
        %v2202 = vmax.f32 %v2081, 0.0
        %v2203 = vmax.f32 %v2104, 0.0
        %v2204 = vmax.f32 %v2127, 0.0
        %v2205 = vmax.f32 %v2150, 0.0
        %v2206 = vmax.f32 %v2173, 0.0
        %v2207 = vmax.f32 %v2196, 0.0
        %v2208 = vmax.f32 %v2061, 0.0
        %v2209 = vmax.f32 %v2084, 0.0
        %v2210 = vmax.f32 %v2107, 0.0
        %v2211 = vmax.f32 %v2130, 0.0
        %v2212 = vmax.f32 %v2153, 0.0
        %v2213 = vmax.f32 %v2176, 0.0
        %v2214 = vmax.f32 %v2199, 0.0
        %2215 = vmatpush.msra.mxu0 0.0
        %2216 = vmatpush.msra.mxu0 0.0
        %2217 = vmatpush.msra.mxu0 0.0
        %2218 = vmatpush.msra.mxu0 0.0
        %2219 = vmatpush.msra.mxu0 0.0
        %2220 = vmatpush.msra.mxu0 0.0
        %2221 = vmatpush.msra.mxu0 0.0
        %2222 = vmatpush.msra.mxu0 0.0
        %2223 = vmatpush.msra.mxu0 0.0
        %2224 = vmatpush.msra.mxu0 0.0
        %2225 = vmatpush.msra.mxu0 0.0
        %2226 = vmatpush.msra.mxu0 0.0
        %2227 = vmatpush.msra.mxu0 0.0
        %2228 = vmatpush.msra.mxu0 0.0
        %2229 = vmatpush.msra.mxu0 %v2208
        %2230 = vmatpush.msra.mxu0 %v2201
        %2231 = vmatmul.f32.gmra.mxu0 %v1061
        %v2232 = vpop.f32.mrf.mxu0
        %v2233 = vadd.f32 %v820, %v2232
        %2234 = vdwg.mxu0
        %2235 = vmatpush.msra.mxu0 0.0
        %2236 = vmatpush.msra.mxu0 0.0
        %2237 = vmatpush.msra.mxu0 0.0
        %2238 = vmatpush.msra.mxu0 0.0
        %2239 = vmatpush.msra.mxu0 0.0
        %2240 = vmatpush.msra.mxu0 0.0
        %2241 = vmatpush.msra.mxu0 0.0
        %2242 = vmatpush.msra.mxu0 0.0
        %2243 = vmatpush.msra.mxu0 0.0
        %2244 = vmatpush.msra.mxu0 0.0
        %2245 = vmatpush.msra.mxu0 0.0
        %2246 = vmatpush.msra.mxu0 0.0
        %2247 = vmatpush.msra.mxu0 0.0
        %2248 = vmatpush.msra.mxu0 0.0
        %2249 = vmatpush.msra.mxu0 %v2209
        %2250 = vmatpush.msra.mxu0 %v2202
        %2251 = vmatmul.f32.gmra.mxu0 %v1061
        %v2252 = vpop.f32.mrf.mxu0
        %v2253 = vadd.f32 %v820, %v2252
        %2254 = vdwg.mxu0
        %2255 = vmatpush.msra.mxu0 0.0
        %2256 = vmatpush.msra.mxu0 0.0
        %2257 = vmatpush.msra.mxu0 0.0
        %2258 = vmatpush.msra.mxu0 0.0
        %2259 = vmatpush.msra.mxu0 0.0
        %2260 = vmatpush.msra.mxu0 0.0
        %2261 = vmatpush.msra.mxu0 0.0
        %2262 = vmatpush.msra.mxu0 0.0
        %2263 = vmatpush.msra.mxu0 0.0
        %2264 = vmatpush.msra.mxu0 0.0
        %2265 = vmatpush.msra.mxu0 0.0
        %2266 = vmatpush.msra.mxu0 0.0
        %2267 = vmatpush.msra.mxu0 0.0
        %2268 = vmatpush.msra.mxu0 0.0
        %2269 = vmatpush.msra.mxu0 %v2210
        %2270 = vmatpush.msra.mxu0 %v2203
        %2271 = vmatmul.f32.gmra.mxu0 %v1061
        %v2272 = vpop.f32.mrf.mxu0
        %v2273 = vadd.f32 %v820, %v2272
        %2274 = vdwg.mxu0
        %2275 = vmatpush.msra.mxu0 0.0
        %2276 = vmatpush.msra.mxu0 0.0
        %2277 = vmatpush.msra.mxu0 0.0
        %2278 = vmatpush.msra.mxu0 0.0
        %2279 = vmatpush.msra.mxu0 0.0
        %2280 = vmatpush.msra.mxu0 0.0
        %2281 = vmatpush.msra.mxu0 0.0
        %2282 = vmatpush.msra.mxu0 0.0
        %2283 = vmatpush.msra.mxu0 0.0
        %2284 = vmatpush.msra.mxu0 0.0
        %2285 = vmatpush.msra.mxu0 0.0
        %2286 = vmatpush.msra.mxu0 0.0
        %2287 = vmatpush.msra.mxu0 0.0
        %2288 = vmatpush.msra.mxu0 0.0
        %2289 = vmatpush.msra.mxu0 %v2211
        %2290 = vmatpush.msra.mxu0 %v2204
        %2291 = vmatmul.f32.gmra.mxu0 %v1061
        %v2292 = vpop.f32.mrf.mxu0
        %v2293 = vadd.f32 %v820, %v2292
        %2294 = vdwg.mxu0
        %2295 = vmatpush.msra.mxu0 0.0
        %2296 = vmatpush.msra.mxu0 0.0
        %2297 = vmatpush.msra.mxu0 0.0
        %2298 = vmatpush.msra.mxu0 0.0
        %2299 = vmatpush.msra.mxu0 0.0
        %2300 = vmatpush.msra.mxu0 0.0
        %2301 = vmatpush.msra.mxu0 0.0
        %2302 = vmatpush.msra.mxu0 0.0
        %2303 = vmatpush.msra.mxu0 0.0
        %2304 = vmatpush.msra.mxu0 0.0
        %2305 = vmatpush.msra.mxu0 0.0
        %2306 = vmatpush.msra.mxu0 0.0
        %2307 = vmatpush.msra.mxu0 0.0
        %2308 = vmatpush.msra.mxu0 0.0
        %2309 = vmatpush.msra.mxu0 %v2212
        %2310 = vmatpush.msra.mxu0 %v2205
        %2311 = vmatmul.f32.gmra.mxu0 %v1061
        %v2312 = vpop.f32.mrf.mxu0
        %v2313 = vadd.f32 %v820, %v2312
        %2314 = vdwg.mxu0
        %2315 = vmatpush.msra.mxu0 0.0
        %2316 = vmatpush.msra.mxu0 0.0
        %2317 = vmatpush.msra.mxu0 0.0
        %2318 = vmatpush.msra.mxu0 0.0
        %2319 = vmatpush.msra.mxu0 0.0
        %2320 = vmatpush.msra.mxu0 0.0
        %2321 = vmatpush.msra.mxu0 0.0
        %2322 = vmatpush.msra.mxu0 0.0
        %2323 = vmatpush.msra.mxu0 0.0
        %2324 = vmatpush.msra.mxu0 0.0
        %2325 = vmatpush.msra.mxu0 0.0
        %2326 = vmatpush.msra.mxu0 0.0
        %2327 = vmatpush.msra.mxu0 0.0
        %2328 = vmatpush.msra.mxu0 0.0
        %2329 = vmatpush.msra.mxu0 %v2213
        %2330 = vmatpush.msra.mxu0 %v2206
        %2331 = vmatmul.f32.gmra.mxu0 %v1061
        %v2332 = vpop.f32.mrf.mxu0
        %v2333 = vadd.f32 %v820, %v2332
        %2334 = vdwg.mxu0
        %2335 = vmatpush.msra.mxu0 0.0
        %2336 = vmatpush.msra.mxu0 0.0
        %2337 = vmatpush.msra.mxu0 0.0
        %2338 = vmatpush.msra.mxu0 0.0
        %2339 = vmatpush.msra.mxu0 0.0
        %2340 = vmatpush.msra.mxu0 0.0
        %2341 = vmatpush.msra.mxu0 0.0
        %2342 = vmatpush.msra.mxu0 0.0
        %2343 = vmatpush.msra.mxu0 0.0
        %2344 = vmatpush.msra.mxu0 0.0
        %2345 = vmatpush.msra.mxu0 0.0
        %2346 = vmatpush.msra.mxu0 0.0
        %2347 = vmatpush.msra.mxu0 0.0
        %2348 = vmatpush.msra.mxu0 0.0
        %2349 = vmatpush.msra.mxu0 %v2214
        %2350 = vmatpush.msra.mxu0 %v2207
        %2351 = vmatmul.f32.gmra.mxu0 %v1061
        %v2352 = vpop.f32.mrf.mxu0
        %v2353 = vadd.f32 %v820, %v2352
        %2354 = vdwg.mxu0
        %v2355 = vmax.f32 %v2233, 0.0
        %v2356 = vmax.f32 %v2253, 0.0
        %v2357 = vmax.f32 %v2273, 0.0
        %v2358 = vmax.f32 %v2293, 0.0
        %v2359 = vmax.f32 %v2313, 0.0
        %v2360 = vmax.f32 %v2333, 0.0
        %v2361 = vmax.f32 %v2353, 0.0
        %v2362 = vadd.f32 %v2355, %v2356
        %v2363 = vadd.f32 %v2362, %v2357
        %v2364 = vadd.f32 %v2363, %v2358
        %v2365 = vadd.f32 %v2364, %v2359
        %v2366 = vadd.f32 %v2365, %v2360
        %v2367 = vadd.f32 %v2366, %v2361
        %v2368 = vadd.f32 %v465, %v593
        %v2369 = vadd.f32 %v465, %v622
        %v2370 = vadd.f32 %v465, %v651
        %v2371 = vadd.f32 %v465, %v680
        %v2372 = vadd.f32 %v465, %v738
        %v2373 = vadd.f32 %v465, %v767
        %v2374 = vadd.f32 %v465, %v796
        %v2375 = vadd.f32 %v468, %v596
        %v2376 = vadd.f32 %v468, %v625
        %v2377 = vadd.f32 %v468, %v654
        %v2378 = vadd.f32 %v468, %v683
        %v2379 = vadd.f32 %v468, %v741
        %v2380 = vadd.f32 %v468, %v770
        %v2381 = vadd.f32 %v468, %v799
        %v2382 = vadd.f32 %v471, %v599
        %v2383 = vadd.f32 %v471, %v628
        %v2384 = vadd.f32 %v471, %v657
        %v2385 = vadd.f32 %v471, %v686
        %v2386 = vadd.f32 %v471, %v744
        %v2387 = vadd.f32 %v471, %v773
        %v2388 = vadd.f32 %v471, %v802
        %v2389 = vadd.f32 %v474, %v602
        %v2390 = vadd.f32 %v474, %v631
        %v2391 = vadd.f32 %v474, %v660
        %v2392 = vadd.f32 %v474, %v689
        %v2393 = vadd.f32 %v474, %v747
        %v2394 = vadd.f32 %v474, %v776
        %v2395 = vadd.f32 %v474, %v805
        %v2396 = vmax.f32 %v2368, 0.0
        %v2397 = vmax.f32 %v2369, 0.0
        %v2398 = vmax.f32 %v2370, 0.0
        %v2399 = vmax.f32 %v2371, 0.0
        %v2400 = vmax.f32 %v2372, 0.0
        %v2401 = vmax.f32 %v2373, 0.0
        %v2402 = vmax.f32 %v2374, 0.0
        %v2403 = vmax.f32 %v2375, 0.0
        %v2404 = vmax.f32 %v2376, 0.0
        %v2405 = vmax.f32 %v2377, 0.0
        %v2406 = vmax.f32 %v2378, 0.0
        %v2407 = vmax.f32 %v2379, 0.0
        %v2408 = vmax.f32 %v2380, 0.0
        %v2409 = vmax.f32 %v2381, 0.0
        %v2410 = vmax.f32 %v2382, 0.0
        %v2411 = vmax.f32 %v2383, 0.0
        %v2412 = vmax.f32 %v2384, 0.0
        %v2413 = vmax.f32 %v2385, 0.0
        %v2414 = vmax.f32 %v2386, 0.0
        %v2415 = vmax.f32 %v2387, 0.0
        %v2416 = vmax.f32 %v2388, 0.0
        %v2417 = vmax.f32 %v2389, 0.0
        %v2418 = vmax.f32 %v2390, 0.0
        %v2419 = vmax.f32 %v2391, 0.0
        %v2420 = vmax.f32 %v2392, 0.0
        %v2421 = vmax.f32 %v2393, 0.0
        %v2422 = vmax.f32 %v2394, 0.0
        %v2423 = vmax.f32 %v2395, 0.0
        %2424 = vmatpush.msra.mxu0 0.0
        %2425 = vmatpush.msra.mxu0 0.0
        %2426 = vmatpush.msra.mxu0 0.0
        %2427 = vmatpush.msra.mxu0 0.0
        %2428 = vmatpush.msra.mxu0 0.0
        %2429 = vmatpush.msra.mxu0 0.0
        %2430 = vmatpush.msra.mxu0 0.0
        %2431 = vmatpush.msra.mxu0 0.0
        %2432 = vmatpush.msra.mxu0 0.0
        %2433 = vmatpush.msra.mxu0 0.0
        %2434 = vmatpush.msra.mxu0 0.0
        %2435 = vmatpush.msra.mxu0 0.0
        %2436 = vmatpush.msra.mxu0 %v2417
        %2437 = vmatpush.msra.mxu0 %v2410
        %2438 = vmatpush.msra.mxu0 %v2403
        %2439 = vmatpush.msra.mxu0 %v2396
        %2440 = vmatmul.f32.gmra.mxu0 %v880
        %v2441 = vpop.f32.mrf.mxu0
        %v2442 = vadd.f32 %v810, %v2441
        %2443 = vmatmul.f32.gmra.mxu0 %v883
        %v2444 = vpop.f32.mrf.mxu0
        %v2445 = vadd.f32 %v815, %v2444
        %2446 = vdwg.mxu0
        %2447 = vmatpush.msra.mxu0 0.0
        %2448 = vmatpush.msra.mxu0 0.0
        %2449 = vmatpush.msra.mxu0 0.0
        %2450 = vmatpush.msra.mxu0 0.0
        %2451 = vmatpush.msra.mxu0 0.0
        %2452 = vmatpush.msra.mxu0 0.0
        %2453 = vmatpush.msra.mxu0 0.0
        %2454 = vmatpush.msra.mxu0 0.0
        %2455 = vmatpush.msra.mxu0 0.0
        %2456 = vmatpush.msra.mxu0 0.0
        %2457 = vmatpush.msra.mxu0 0.0
        %2458 = vmatpush.msra.mxu0 0.0
        %2459 = vmatpush.msra.mxu0 %v2418
        %2460 = vmatpush.msra.mxu0 %v2411
        %2461 = vmatpush.msra.mxu0 %v2404
        %2462 = vmatpush.msra.mxu0 %v2397
        %2463 = vmatmul.f32.gmra.mxu0 %v880
        %v2464 = vpop.f32.mrf.mxu0
        %v2465 = vadd.f32 %v810, %v2464
        %2466 = vmatmul.f32.gmra.mxu0 %v883
        %v2467 = vpop.f32.mrf.mxu0
        %v2468 = vadd.f32 %v815, %v2467
        %2469 = vdwg.mxu0
        %2470 = vmatpush.msra.mxu0 0.0
        %2471 = vmatpush.msra.mxu0 0.0
        %2472 = vmatpush.msra.mxu0 0.0
        %2473 = vmatpush.msra.mxu0 0.0
        %2474 = vmatpush.msra.mxu0 0.0
        %2475 = vmatpush.msra.mxu0 0.0
        %2476 = vmatpush.msra.mxu0 0.0
        %2477 = vmatpush.msra.mxu0 0.0
        %2478 = vmatpush.msra.mxu0 0.0
        %2479 = vmatpush.msra.mxu0 0.0
        %2480 = vmatpush.msra.mxu0 0.0
        %2481 = vmatpush.msra.mxu0 0.0
        %2482 = vmatpush.msra.mxu0 %v2419
        %2483 = vmatpush.msra.mxu0 %v2412
        %2484 = vmatpush.msra.mxu0 %v2405
        %2485 = vmatpush.msra.mxu0 %v2398
        %2486 = vmatmul.f32.gmra.mxu0 %v880
        %v2487 = vpop.f32.mrf.mxu0
        %v2488 = vadd.f32 %v810, %v2487
        %2489 = vmatmul.f32.gmra.mxu0 %v883
        %v2490 = vpop.f32.mrf.mxu0
        %v2491 = vadd.f32 %v815, %v2490
        %2492 = vdwg.mxu0
        %2493 = vmatpush.msra.mxu0 0.0
        %2494 = vmatpush.msra.mxu0 0.0
        %2495 = vmatpush.msra.mxu0 0.0
        %2496 = vmatpush.msra.mxu0 0.0
        %2497 = vmatpush.msra.mxu0 0.0
        %2498 = vmatpush.msra.mxu0 0.0
        %2499 = vmatpush.msra.mxu0 0.0
        %2500 = vmatpush.msra.mxu0 0.0
        %2501 = vmatpush.msra.mxu0 0.0
        %2502 = vmatpush.msra.mxu0 0.0
        %2503 = vmatpush.msra.mxu0 0.0
        %2504 = vmatpush.msra.mxu0 0.0
        %2505 = vmatpush.msra.mxu0 %v2420
        %2506 = vmatpush.msra.mxu0 %v2413
        %2507 = vmatpush.msra.mxu0 %v2406
        %2508 = vmatpush.msra.mxu0 %v2399
        %2509 = vmatmul.f32.gmra.mxu0 %v880
        %v2510 = vpop.f32.mrf.mxu0
        %v2511 = vadd.f32 %v810, %v2510
        %2512 = vmatmul.f32.gmra.mxu0 %v883
        %v2513 = vpop.f32.mrf.mxu0
        %v2514 = vadd.f32 %v815, %v2513
        %2515 = vdwg.mxu0
        %2516 = vmatpush.msra.mxu0 0.0
        %2517 = vmatpush.msra.mxu0 0.0
        %2518 = vmatpush.msra.mxu0 0.0
        %2519 = vmatpush.msra.mxu0 0.0
        %2520 = vmatpush.msra.mxu0 0.0
        %2521 = vmatpush.msra.mxu0 0.0
        %2522 = vmatpush.msra.mxu0 0.0
        %2523 = vmatpush.msra.mxu0 0.0
        %2524 = vmatpush.msra.mxu0 0.0
        %2525 = vmatpush.msra.mxu0 0.0
        %2526 = vmatpush.msra.mxu0 0.0
        %2527 = vmatpush.msra.mxu0 0.0
        %2528 = vmatpush.msra.mxu0 %v2421
        %2529 = vmatpush.msra.mxu0 %v2414
        %2530 = vmatpush.msra.mxu0 %v2407
        %2531 = vmatpush.msra.mxu0 %v2400
        %2532 = vmatmul.f32.gmra.mxu0 %v880
        %v2533 = vpop.f32.mrf.mxu0
        %v2534 = vadd.f32 %v810, %v2533
        %2535 = vmatmul.f32.gmra.mxu0 %v883
        %v2536 = vpop.f32.mrf.mxu0
        %v2537 = vadd.f32 %v815, %v2536
        %2538 = vdwg.mxu0
        %2539 = vmatpush.msra.mxu0 0.0
        %2540 = vmatpush.msra.mxu0 0.0
        %2541 = vmatpush.msra.mxu0 0.0
        %2542 = vmatpush.msra.mxu0 0.0
        %2543 = vmatpush.msra.mxu0 0.0
        %2544 = vmatpush.msra.mxu0 0.0
        %2545 = vmatpush.msra.mxu0 0.0
        %2546 = vmatpush.msra.mxu0 0.0
        %2547 = vmatpush.msra.mxu0 0.0
        %2548 = vmatpush.msra.mxu0 0.0
        %2549 = vmatpush.msra.mxu0 0.0
        %2550 = vmatpush.msra.mxu0 0.0
        %2551 = vmatpush.msra.mxu0 %v2422
        %2552 = vmatpush.msra.mxu0 %v2415
        %2553 = vmatpush.msra.mxu0 %v2408
        %2554 = vmatpush.msra.mxu0 %v2401
        %2555 = vmatmul.f32.gmra.mxu0 %v880
        %v2556 = vpop.f32.mrf.mxu0
        %v2557 = vadd.f32 %v810, %v2556
        %2558 = vmatmul.f32.gmra.mxu0 %v883
        %v2559 = vpop.f32.mrf.mxu0
        %v2560 = vadd.f32 %v815, %v2559
        %2561 = vdwg.mxu0
        %2562 = vmatpush.msra.mxu0 0.0
        %2563 = vmatpush.msra.mxu0 0.0
        %2564 = vmatpush.msra.mxu0 0.0
        %2565 = vmatpush.msra.mxu0 0.0
        %2566 = vmatpush.msra.mxu0 0.0
        %2567 = vmatpush.msra.mxu0 0.0
        %2568 = vmatpush.msra.mxu0 0.0
        %2569 = vmatpush.msra.mxu0 0.0
        %2570 = vmatpush.msra.mxu0 0.0
        %2571 = vmatpush.msra.mxu0 0.0
        %2572 = vmatpush.msra.mxu0 0.0
        %2573 = vmatpush.msra.mxu0 0.0
        %2574 = vmatpush.msra.mxu0 %v2423
        %2575 = vmatpush.msra.mxu0 %v2416
        %2576 = vmatpush.msra.mxu0 %v2409
        %2577 = vmatpush.msra.mxu0 %v2402
        %2578 = vmatmul.f32.gmra.mxu0 %v880
        %v2579 = vpop.f32.mrf.mxu0
        %v2580 = vadd.f32 %v810, %v2579
        %2581 = vmatmul.f32.gmra.mxu0 %v883
        %v2582 = vpop.f32.mrf.mxu0
        %v2583 = vadd.f32 %v815, %v2582
        %2584 = vdwg.mxu0
        %v2585 = vmax.f32 %v2442, 0.0
        %v2586 = vmax.f32 %v2465, 0.0
        %v2587 = vmax.f32 %v2488, 0.0
        %v2588 = vmax.f32 %v2511, 0.0
        %v2589 = vmax.f32 %v2534, 0.0
        %v2590 = vmax.f32 %v2557, 0.0
        %v2591 = vmax.f32 %v2580, 0.0
        %v2592 = vmax.f32 %v2445, 0.0
        %v2593 = vmax.f32 %v2468, 0.0
        %v2594 = vmax.f32 %v2491, 0.0
        %v2595 = vmax.f32 %v2514, 0.0
        %v2596 = vmax.f32 %v2537, 0.0
        %v2597 = vmax.f32 %v2560, 0.0
        %v2598 = vmax.f32 %v2583, 0.0
        %2599 = vmatpush.msra.mxu0 0.0
        %2600 = vmatpush.msra.mxu0 0.0
        %2601 = vmatpush.msra.mxu0 0.0
        %2602 = vmatpush.msra.mxu0 0.0
        %2603 = vmatpush.msra.mxu0 0.0
        %2604 = vmatpush.msra.mxu0 0.0
        %2605 = vmatpush.msra.mxu0 0.0
        %2606 = vmatpush.msra.mxu0 0.0
        %2607 = vmatpush.msra.mxu0 0.0
        %2608 = vmatpush.msra.mxu0 0.0
        %2609 = vmatpush.msra.mxu0 0.0
        %2610 = vmatpush.msra.mxu0 0.0
        %2611 = vmatpush.msra.mxu0 0.0
        %2612 = vmatpush.msra.mxu0 0.0
        %2613 = vmatpush.msra.mxu0 %v2592
        %2614 = vmatpush.msra.mxu0 %v2585
        %2615 = vmatmul.f32.gmra.mxu0 %v1061
        %v2616 = vpop.f32.mrf.mxu0
        %v2617 = vadd.f32 %v820, %v2616
        %2618 = vdwg.mxu0
        %2619 = vmatpush.msra.mxu0 0.0
        %2620 = vmatpush.msra.mxu0 0.0
        %2621 = vmatpush.msra.mxu0 0.0
        %2622 = vmatpush.msra.mxu0 0.0
        %2623 = vmatpush.msra.mxu0 0.0
        %2624 = vmatpush.msra.mxu0 0.0
        %2625 = vmatpush.msra.mxu0 0.0
        %2626 = vmatpush.msra.mxu0 0.0
        %2627 = vmatpush.msra.mxu0 0.0
        %2628 = vmatpush.msra.mxu0 0.0
        %2629 = vmatpush.msra.mxu0 0.0
        %2630 = vmatpush.msra.mxu0 0.0
        %2631 = vmatpush.msra.mxu0 0.0
        %2632 = vmatpush.msra.mxu0 0.0
        %2633 = vmatpush.msra.mxu0 %v2593
        %2634 = vmatpush.msra.mxu0 %v2586
        %2635 = vmatmul.f32.gmra.mxu0 %v1061
        %v2636 = vpop.f32.mrf.mxu0
        %v2637 = vadd.f32 %v820, %v2636
        %2638 = vdwg.mxu0
        %2639 = vmatpush.msra.mxu0 0.0
        %2640 = vmatpush.msra.mxu0 0.0
        %2641 = vmatpush.msra.mxu0 0.0
        %2642 = vmatpush.msra.mxu0 0.0
        %2643 = vmatpush.msra.mxu0 0.0
        %2644 = vmatpush.msra.mxu0 0.0
        %2645 = vmatpush.msra.mxu0 0.0
        %2646 = vmatpush.msra.mxu0 0.0
        %2647 = vmatpush.msra.mxu0 0.0
        %2648 = vmatpush.msra.mxu0 0.0
        %2649 = vmatpush.msra.mxu0 0.0
        %2650 = vmatpush.msra.mxu0 0.0
        %2651 = vmatpush.msra.mxu0 0.0
        %2652 = vmatpush.msra.mxu0 0.0
        %2653 = vmatpush.msra.mxu0 %v2594
        %2654 = vmatpush.msra.mxu0 %v2587
        %2655 = vmatmul.f32.gmra.mxu0 %v1061
        %v2656 = vpop.f32.mrf.mxu0
        %v2657 = vadd.f32 %v820, %v2656
        %2658 = vdwg.mxu0
        %2659 = vmatpush.msra.mxu0 0.0
        %2660 = vmatpush.msra.mxu0 0.0
        %2661 = vmatpush.msra.mxu0 0.0
        %2662 = vmatpush.msra.mxu0 0.0
        %2663 = vmatpush.msra.mxu0 0.0
        %2664 = vmatpush.msra.mxu0 0.0
        %2665 = vmatpush.msra.mxu0 0.0
        %2666 = vmatpush.msra.mxu0 0.0
        %2667 = vmatpush.msra.mxu0 0.0
        %2668 = vmatpush.msra.mxu0 0.0
        %2669 = vmatpush.msra.mxu0 0.0
        %2670 = vmatpush.msra.mxu0 0.0
        %2671 = vmatpush.msra.mxu0 0.0
        %2672 = vmatpush.msra.mxu0 0.0
        %2673 = vmatpush.msra.mxu0 %v2595
        %2674 = vmatpush.msra.mxu0 %v2588
        %2675 = vmatmul.f32.gmra.mxu0 %v1061
        %v2676 = vpop.f32.mrf.mxu0
        %v2677 = vadd.f32 %v820, %v2676
        %2678 = vdwg.mxu0
        %2679 = vmatpush.msra.mxu0 0.0
        %2680 = vmatpush.msra.mxu0 0.0
        %2681 = vmatpush.msra.mxu0 0.0
        %2682 = vmatpush.msra.mxu0 0.0
        %2683 = vmatpush.msra.mxu0 0.0
        %2684 = vmatpush.msra.mxu0 0.0
        %2685 = vmatpush.msra.mxu0 0.0
        %2686 = vmatpush.msra.mxu0 0.0
        %2687 = vmatpush.msra.mxu0 0.0
        %2688 = vmatpush.msra.mxu0 0.0
        %2689 = vmatpush.msra.mxu0 0.0
        %2690 = vmatpush.msra.mxu0 0.0
        %2691 = vmatpush.msra.mxu0 0.0
        %2692 = vmatpush.msra.mxu0 0.0
        %2693 = vmatpush.msra.mxu0 %v2596
        %2694 = vmatpush.msra.mxu0 %v2589
        %2695 = vmatmul.f32.gmra.mxu0 %v1061
        %v2696 = vpop.f32.mrf.mxu0
        %v2697 = vadd.f32 %v820, %v2696
        %2698 = vdwg.mxu0
        %2699 = vmatpush.msra.mxu0 0.0
        %2700 = vmatpush.msra.mxu0 0.0
        %2701 = vmatpush.msra.mxu0 0.0
        %2702 = vmatpush.msra.mxu0 0.0
        %2703 = vmatpush.msra.mxu0 0.0
        %2704 = vmatpush.msra.mxu0 0.0
        %2705 = vmatpush.msra.mxu0 0.0
        %2706 = vmatpush.msra.mxu0 0.0
        %2707 = vmatpush.msra.mxu0 0.0
        %2708 = vmatpush.msra.mxu0 0.0
        %2709 = vmatpush.msra.mxu0 0.0
        %2710 = vmatpush.msra.mxu0 0.0
        %2711 = vmatpush.msra.mxu0 0.0
        %2712 = vmatpush.msra.mxu0 0.0
        %2713 = vmatpush.msra.mxu0 %v2597
        %2714 = vmatpush.msra.mxu0 %v2590
        %2715 = vmatmul.f32.gmra.mxu0 %v1061
        %v2716 = vpop.f32.mrf.mxu0
        %v2717 = vadd.f32 %v820, %v2716
        %2718 = vdwg.mxu0
        %2719 = vmatpush.msra.mxu0 0.0
        %2720 = vmatpush.msra.mxu0 0.0
        %2721 = vmatpush.msra.mxu0 0.0
        %2722 = vmatpush.msra.mxu0 0.0
        %2723 = vmatpush.msra.mxu0 0.0
        %2724 = vmatpush.msra.mxu0 0.0
        %2725 = vmatpush.msra.mxu0 0.0
        %2726 = vmatpush.msra.mxu0 0.0
        %2727 = vmatpush.msra.mxu0 0.0
        %2728 = vmatpush.msra.mxu0 0.0
        %2729 = vmatpush.msra.mxu0 0.0
        %2730 = vmatpush.msra.mxu0 0.0
        %2731 = vmatpush.msra.mxu0 0.0
        %2732 = vmatpush.msra.mxu0 0.0
        %2733 = vmatpush.msra.mxu0 %v2598
        %2734 = vmatpush.msra.mxu0 %v2591
        %2735 = vmatmul.f32.gmra.mxu0 %v1061
        %v2736 = vpop.f32.mrf.mxu0
        %v2737 = vadd.f32 %v820, %v2736
        %2738 = vdwg.mxu0
        %v2739 = vmax.f32 %v2617, 0.0
        %v2740 = vmax.f32 %v2637, 0.0
        %v2741 = vmax.f32 %v2657, 0.0
        %v2742 = vmax.f32 %v2677, 0.0
        %v2743 = vmax.f32 %v2697, 0.0
        %v2744 = vmax.f32 %v2717, 0.0
        %v2745 = vmax.f32 %v2737, 0.0
        %v2746 = vadd.f32 %v2739, %v2740
        %v2747 = vadd.f32 %v2746, %v2741
        %v2748 = vadd.f32 %v2747, %v2742
        %v2749 = vadd.f32 %v2748, %v2743
        %v2750 = vadd.f32 %v2749, %v2744
        %v2751 = vadd.f32 %v2750, %v2745
        %v2752 = vadd.f32 %v494, %v593
        %v2753 = vadd.f32 %v494, %v622
        %v2754 = vadd.f32 %v494, %v651
        %v2755 = vadd.f32 %v494, %v680
        %v2756 = vadd.f32 %v494, %v709
        %v2757 = vadd.f32 %v494, %v767
        %v2758 = vadd.f32 %v494, %v796
        %v2759 = vadd.f32 %v497, %v596
        %v2760 = vadd.f32 %v497, %v625
        %v2761 = vadd.f32 %v497, %v654
        %v2762 = vadd.f32 %v497, %v683
        %v2763 = vadd.f32 %v497, %v712
        %v2764 = vadd.f32 %v497, %v770
        %v2765 = vadd.f32 %v497, %v799
        %v2766 = vadd.f32 %v500, %v599
        %v2767 = vadd.f32 %v500, %v628
        %v2768 = vadd.f32 %v500, %v657
        %v2769 = vadd.f32 %v500, %v686
        %v2770 = vadd.f32 %v500, %v715
        %v2771 = vadd.f32 %v500, %v773
        %v2772 = vadd.f32 %v500, %v802
        %v2773 = vadd.f32 %v503, %v602
        %v2774 = vadd.f32 %v503, %v631
        %v2775 = vadd.f32 %v503, %v660
        %v2776 = vadd.f32 %v503, %v689
        %v2777 = vadd.f32 %v503, %v718
        %v2778 = vadd.f32 %v503, %v776
        %v2779 = vadd.f32 %v503, %v805
        %v2780 = vmax.f32 %v2752, 0.0
        %v2781 = vmax.f32 %v2753, 0.0
        %v2782 = vmax.f32 %v2754, 0.0
        %v2783 = vmax.f32 %v2755, 0.0
        %v2784 = vmax.f32 %v2756, 0.0
        %v2785 = vmax.f32 %v2757, 0.0
        %v2786 = vmax.f32 %v2758, 0.0
        %v2787 = vmax.f32 %v2759, 0.0
        %v2788 = vmax.f32 %v2760, 0.0
        %v2789 = vmax.f32 %v2761, 0.0
        %v2790 = vmax.f32 %v2762, 0.0
        %v2791 = vmax.f32 %v2763, 0.0
        %v2792 = vmax.f32 %v2764, 0.0
        %v2793 = vmax.f32 %v2765, 0.0
        %v2794 = vmax.f32 %v2766, 0.0
        %v2795 = vmax.f32 %v2767, 0.0
        %v2796 = vmax.f32 %v2768, 0.0
        %v2797 = vmax.f32 %v2769, 0.0
        %v2798 = vmax.f32 %v2770, 0.0
        %v2799 = vmax.f32 %v2771, 0.0
        %v2800 = vmax.f32 %v2772, 0.0
        %v2801 = vmax.f32 %v2773, 0.0
        %v2802 = vmax.f32 %v2774, 0.0
        %v2803 = vmax.f32 %v2775, 0.0
        %v2804 = vmax.f32 %v2776, 0.0
        %v2805 = vmax.f32 %v2777, 0.0
        %v2806 = vmax.f32 %v2778, 0.0
        %v2807 = vmax.f32 %v2779, 0.0
        %2808 = vmatpush.msra.mxu0 0.0
        %2809 = vmatpush.msra.mxu0 0.0
        %2810 = vmatpush.msra.mxu0 0.0
        %2811 = vmatpush.msra.mxu0 0.0
        %2812 = vmatpush.msra.mxu0 0.0
        %2813 = vmatpush.msra.mxu0 0.0
        %2814 = vmatpush.msra.mxu0 0.0
        %2815 = vmatpush.msra.mxu0 0.0
        %2816 = vmatpush.msra.mxu0 0.0
        %2817 = vmatpush.msra.mxu0 0.0
        %2818 = vmatpush.msra.mxu0 0.0
        %2819 = vmatpush.msra.mxu0 0.0
        %2820 = vmatpush.msra.mxu0 %v2801
        %2821 = vmatpush.msra.mxu0 %v2794
        %2822 = vmatpush.msra.mxu0 %v2787
        %2823 = vmatpush.msra.mxu0 %v2780
        %2824 = vmatmul.f32.gmra.mxu0 %v880
        %v2825 = vpop.f32.mrf.mxu0
        %v2826 = vadd.f32 %v810, %v2825
        %2827 = vmatmul.f32.gmra.mxu0 %v883
        %v2828 = vpop.f32.mrf.mxu0
        %v2829 = vadd.f32 %v815, %v2828
        %2830 = vdwg.mxu0
        %2831 = vmatpush.msra.mxu0 0.0
        %2832 = vmatpush.msra.mxu0 0.0
        %2833 = vmatpush.msra.mxu0 0.0
        %2834 = vmatpush.msra.mxu0 0.0
        %2835 = vmatpush.msra.mxu0 0.0
        %2836 = vmatpush.msra.mxu0 0.0
        %2837 = vmatpush.msra.mxu0 0.0
        %2838 = vmatpush.msra.mxu0 0.0
        %2839 = vmatpush.msra.mxu0 0.0
        %2840 = vmatpush.msra.mxu0 0.0
        %2841 = vmatpush.msra.mxu0 0.0
        %2842 = vmatpush.msra.mxu0 0.0
        %2843 = vmatpush.msra.mxu0 %v2802
        %2844 = vmatpush.msra.mxu0 %v2795
        %2845 = vmatpush.msra.mxu0 %v2788
        %2846 = vmatpush.msra.mxu0 %v2781
        %2847 = vmatmul.f32.gmra.mxu0 %v880
        %v2848 = vpop.f32.mrf.mxu0
        %v2849 = vadd.f32 %v810, %v2848
        %2850 = vmatmul.f32.gmra.mxu0 %v883
        %v2851 = vpop.f32.mrf.mxu0
        %v2852 = vadd.f32 %v815, %v2851
        %2853 = vdwg.mxu0
        %2854 = vmatpush.msra.mxu0 0.0
        %2855 = vmatpush.msra.mxu0 0.0
        %2856 = vmatpush.msra.mxu0 0.0
        %2857 = vmatpush.msra.mxu0 0.0
        %2858 = vmatpush.msra.mxu0 0.0
        %2859 = vmatpush.msra.mxu0 0.0
        %2860 = vmatpush.msra.mxu0 0.0
        %2861 = vmatpush.msra.mxu0 0.0
        %2862 = vmatpush.msra.mxu0 0.0
        %2863 = vmatpush.msra.mxu0 0.0
        %2864 = vmatpush.msra.mxu0 0.0
        %2865 = vmatpush.msra.mxu0 0.0
        %2866 = vmatpush.msra.mxu0 %v2803
        %2867 = vmatpush.msra.mxu0 %v2796
        %2868 = vmatpush.msra.mxu0 %v2789
        %2869 = vmatpush.msra.mxu0 %v2782
        %2870 = vmatmul.f32.gmra.mxu0 %v880
        %v2871 = vpop.f32.mrf.mxu0
        %v2872 = vadd.f32 %v810, %v2871
        %2873 = vmatmul.f32.gmra.mxu0 %v883
        %v2874 = vpop.f32.mrf.mxu0
        %v2875 = vadd.f32 %v815, %v2874
        %2876 = vdwg.mxu0
        %2877 = vmatpush.msra.mxu0 0.0
        %2878 = vmatpush.msra.mxu0 0.0
        %2879 = vmatpush.msra.mxu0 0.0
        %2880 = vmatpush.msra.mxu0 0.0
        %2881 = vmatpush.msra.mxu0 0.0
        %2882 = vmatpush.msra.mxu0 0.0
        %2883 = vmatpush.msra.mxu0 0.0
        %2884 = vmatpush.msra.mxu0 0.0
        %2885 = vmatpush.msra.mxu0 0.0
        %2886 = vmatpush.msra.mxu0 0.0
        %2887 = vmatpush.msra.mxu0 0.0
        %2888 = vmatpush.msra.mxu0 0.0
        %2889 = vmatpush.msra.mxu0 %v2804
        %2890 = vmatpush.msra.mxu0 %v2797
        %2891 = vmatpush.msra.mxu0 %v2790
        %2892 = vmatpush.msra.mxu0 %v2783
        %2893 = vmatmul.f32.gmra.mxu0 %v880
        %v2894 = vpop.f32.mrf.mxu0
        %v2895 = vadd.f32 %v810, %v2894
        %2896 = vmatmul.f32.gmra.mxu0 %v883
        %v2897 = vpop.f32.mrf.mxu0
        %v2898 = vadd.f32 %v815, %v2897
        %2899 = vdwg.mxu0
        %2900 = vmatpush.msra.mxu0 0.0
        %2901 = vmatpush.msra.mxu0 0.0
        %2902 = vmatpush.msra.mxu0 0.0
        %2903 = vmatpush.msra.mxu0 0.0
        %2904 = vmatpush.msra.mxu0 0.0
        %2905 = vmatpush.msra.mxu0 0.0
        %2906 = vmatpush.msra.mxu0 0.0
        %2907 = vmatpush.msra.mxu0 0.0
        %2908 = vmatpush.msra.mxu0 0.0
        %2909 = vmatpush.msra.mxu0 0.0
        %2910 = vmatpush.msra.mxu0 0.0
        %2911 = vmatpush.msra.mxu0 0.0
        %2912 = vmatpush.msra.mxu0 %v2805
        %2913 = vmatpush.msra.mxu0 %v2798
        %2914 = vmatpush.msra.mxu0 %v2791
        %2915 = vmatpush.msra.mxu0 %v2784
        %2916 = vmatmul.f32.gmra.mxu0 %v880
        %v2917 = vpop.f32.mrf.mxu0
        %v2918 = vadd.f32 %v810, %v2917
        %2919 = vmatmul.f32.gmra.mxu0 %v883
        %v2920 = vpop.f32.mrf.mxu0
        %v2921 = vadd.f32 %v815, %v2920
        %2922 = vdwg.mxu0
        %2923 = vmatpush.msra.mxu0 0.0
        %2924 = vmatpush.msra.mxu0 0.0
        %2925 = vmatpush.msra.mxu0 0.0
        %2926 = vmatpush.msra.mxu0 0.0
        %2927 = vmatpush.msra.mxu0 0.0
        %2928 = vmatpush.msra.mxu0 0.0
        %2929 = vmatpush.msra.mxu0 0.0
        %2930 = vmatpush.msra.mxu0 0.0
        %2931 = vmatpush.msra.mxu0 0.0
        %2932 = vmatpush.msra.mxu0 0.0
        %2933 = vmatpush.msra.mxu0 0.0
        %2934 = vmatpush.msra.mxu0 0.0
        %2935 = vmatpush.msra.mxu0 %v2806
        %2936 = vmatpush.msra.mxu0 %v2799
        %2937 = vmatpush.msra.mxu0 %v2792
        %2938 = vmatpush.msra.mxu0 %v2785
        %2939 = vmatmul.f32.gmra.mxu0 %v880
        %v2940 = vpop.f32.mrf.mxu0
        %v2941 = vadd.f32 %v810, %v2940
        %2942 = vmatmul.f32.gmra.mxu0 %v883
        %v2943 = vpop.f32.mrf.mxu0
        %v2944 = vadd.f32 %v815, %v2943
        %2945 = vdwg.mxu0
        %2946 = vmatpush.msra.mxu0 0.0
        %2947 = vmatpush.msra.mxu0 0.0
        %2948 = vmatpush.msra.mxu0 0.0
        %2949 = vmatpush.msra.mxu0 0.0
        %2950 = vmatpush.msra.mxu0 0.0
        %2951 = vmatpush.msra.mxu0 0.0
        %2952 = vmatpush.msra.mxu0 0.0
        %2953 = vmatpush.msra.mxu0 0.0
        %2954 = vmatpush.msra.mxu0 0.0
        %2955 = vmatpush.msra.mxu0 0.0
        %2956 = vmatpush.msra.mxu0 0.0
        %2957 = vmatpush.msra.mxu0 0.0
        %2958 = vmatpush.msra.mxu0 %v2807
        %2959 = vmatpush.msra.mxu0 %v2800
        %2960 = vmatpush.msra.mxu0 %v2793
        %2961 = vmatpush.msra.mxu0 %v2786
        %2962 = vmatmul.f32.gmra.mxu0 %v880
        %v2963 = vpop.f32.mrf.mxu0
        %v2964 = vadd.f32 %v810, %v2963
        %2965 = vmatmul.f32.gmra.mxu0 %v883
        %v2966 = vpop.f32.mrf.mxu0
        %v2967 = vadd.f32 %v815, %v2966
        %2968 = vdwg.mxu0
        %v2969 = vmax.f32 %v2826, 0.0
        %v2970 = vmax.f32 %v2849, 0.0
        %v2971 = vmax.f32 %v2872, 0.0
        %v2972 = vmax.f32 %v2895, 0.0
        %v2973 = vmax.f32 %v2918, 0.0
        %v2974 = vmax.f32 %v2941, 0.0
        %v2975 = vmax.f32 %v2964, 0.0
        %v2976 = vmax.f32 %v2829, 0.0
        %v2977 = vmax.f32 %v2852, 0.0
        %v2978 = vmax.f32 %v2875, 0.0
        %v2979 = vmax.f32 %v2898, 0.0
        %v2980 = vmax.f32 %v2921, 0.0
        %v2981 = vmax.f32 %v2944, 0.0
        %v2982 = vmax.f32 %v2967, 0.0
        %2983 = vmatpush.msra.mxu0 0.0
        %2984 = vmatpush.msra.mxu0 0.0
        %2985 = vmatpush.msra.mxu0 0.0
        %2986 = vmatpush.msra.mxu0 0.0
        %2987 = vmatpush.msra.mxu0 0.0
        %2988 = vmatpush.msra.mxu0 0.0
        %2989 = vmatpush.msra.mxu0 0.0
        %2990 = vmatpush.msra.mxu0 0.0
        %2991 = vmatpush.msra.mxu0 0.0
        %2992 = vmatpush.msra.mxu0 0.0
        %2993 = vmatpush.msra.mxu0 0.0
        %2994 = vmatpush.msra.mxu0 0.0
        %2995 = vmatpush.msra.mxu0 0.0
        %2996 = vmatpush.msra.mxu0 0.0
        %2997 = vmatpush.msra.mxu0 %v2976
        %2998 = vmatpush.msra.mxu0 %v2969
        %2999 = vmatmul.f32.gmra.mxu0 %v1061
        %v3000 = vpop.f32.mrf.mxu0
        %v3001 = vadd.f32 %v820, %v3000
        %3002 = vdwg.mxu0
        %3003 = vmatpush.msra.mxu0 0.0
        %3004 = vmatpush.msra.mxu0 0.0
        %3005 = vmatpush.msra.mxu0 0.0
        %3006 = vmatpush.msra.mxu0 0.0
        %3007 = vmatpush.msra.mxu0 0.0
        %3008 = vmatpush.msra.mxu0 0.0
        %3009 = vmatpush.msra.mxu0 0.0
        %3010 = vmatpush.msra.mxu0 0.0
        %3011 = vmatpush.msra.mxu0 0.0
        %3012 = vmatpush.msra.mxu0 0.0
        %3013 = vmatpush.msra.mxu0 0.0
        %3014 = vmatpush.msra.mxu0 0.0
        %3015 = vmatpush.msra.mxu0 0.0
        %3016 = vmatpush.msra.mxu0 0.0
        %3017 = vmatpush.msra.mxu0 %v2977
        %3018 = vmatpush.msra.mxu0 %v2970
        %3019 = vmatmul.f32.gmra.mxu0 %v1061
        %v3020 = vpop.f32.mrf.mxu0
        %v3021 = vadd.f32 %v820, %v3020
        %3022 = vdwg.mxu0
        %3023 = vmatpush.msra.mxu0 0.0
        %3024 = vmatpush.msra.mxu0 0.0
        %3025 = vmatpush.msra.mxu0 0.0
        %3026 = vmatpush.msra.mxu0 0.0
        %3027 = vmatpush.msra.mxu0 0.0
        %3028 = vmatpush.msra.mxu0 0.0
        %3029 = vmatpush.msra.mxu0 0.0
        %3030 = vmatpush.msra.mxu0 0.0
        %3031 = vmatpush.msra.mxu0 0.0
        %3032 = vmatpush.msra.mxu0 0.0
        %3033 = vmatpush.msra.mxu0 0.0
        %3034 = vmatpush.msra.mxu0 0.0
        %3035 = vmatpush.msra.mxu0 0.0
        %3036 = vmatpush.msra.mxu0 0.0
        %3037 = vmatpush.msra.mxu0 %v2978
        %3038 = vmatpush.msra.mxu0 %v2971
        %3039 = vmatmul.f32.gmra.mxu0 %v1061
        %v3040 = vpop.f32.mrf.mxu0
        %v3041 = vadd.f32 %v820, %v3040
        %3042 = vdwg.mxu0
        %3043 = vmatpush.msra.mxu0 0.0
        %3044 = vmatpush.msra.mxu0 0.0
        %3045 = vmatpush.msra.mxu0 0.0
        %3046 = vmatpush.msra.mxu0 0.0
        %3047 = vmatpush.msra.mxu0 0.0
        %3048 = vmatpush.msra.mxu0 0.0
        %3049 = vmatpush.msra.mxu0 0.0
        %3050 = vmatpush.msra.mxu0 0.0
        %3051 = vmatpush.msra.mxu0 0.0
        %3052 = vmatpush.msra.mxu0 0.0
        %3053 = vmatpush.msra.mxu0 0.0
        %3054 = vmatpush.msra.mxu0 0.0
        %3055 = vmatpush.msra.mxu0 0.0
        %3056 = vmatpush.msra.mxu0 0.0
        %3057 = vmatpush.msra.mxu0 %v2979
        %3058 = vmatpush.msra.mxu0 %v2972
        %3059 = vmatmul.f32.gmra.mxu0 %v1061
        %v3060 = vpop.f32.mrf.mxu0
        %v3061 = vadd.f32 %v820, %v3060
        %3062 = vdwg.mxu0
        %3063 = vmatpush.msra.mxu0 0.0
        %3064 = vmatpush.msra.mxu0 0.0
        %3065 = vmatpush.msra.mxu0 0.0
        %3066 = vmatpush.msra.mxu0 0.0
        %3067 = vmatpush.msra.mxu0 0.0
        %3068 = vmatpush.msra.mxu0 0.0
        %3069 = vmatpush.msra.mxu0 0.0
        %3070 = vmatpush.msra.mxu0 0.0
        %3071 = vmatpush.msra.mxu0 0.0
        %3072 = vmatpush.msra.mxu0 0.0
        %3073 = vmatpush.msra.mxu0 0.0
        %3074 = vmatpush.msra.mxu0 0.0
        %3075 = vmatpush.msra.mxu0 0.0
        %3076 = vmatpush.msra.mxu0 0.0
        %3077 = vmatpush.msra.mxu0 %v2980
        %3078 = vmatpush.msra.mxu0 %v2973
        %3079 = vmatmul.f32.gmra.mxu0 %v1061
        %v3080 = vpop.f32.mrf.mxu0
        %v3081 = vadd.f32 %v820, %v3080
        %3082 = vdwg.mxu0
        %3083 = vmatpush.msra.mxu0 0.0
        %3084 = vmatpush.msra.mxu0 0.0
        %3085 = vmatpush.msra.mxu0 0.0
        %3086 = vmatpush.msra.mxu0 0.0
        %3087 = vmatpush.msra.mxu0 0.0
        %3088 = vmatpush.msra.mxu0 0.0
        %3089 = vmatpush.msra.mxu0 0.0
        %3090 = vmatpush.msra.mxu0 0.0
        %3091 = vmatpush.msra.mxu0 0.0
        %3092 = vmatpush.msra.mxu0 0.0
        %3093 = vmatpush.msra.mxu0 0.0
        %3094 = vmatpush.msra.mxu0 0.0
        %3095 = vmatpush.msra.mxu0 0.0
        %3096 = vmatpush.msra.mxu0 0.0
        %3097 = vmatpush.msra.mxu0 %v2981
        %3098 = vmatpush.msra.mxu0 %v2974
        %3099 = vmatmul.f32.gmra.mxu0 %v1061
        %v3100 = vpop.f32.mrf.mxu0
        %v3101 = vadd.f32 %v820, %v3100
        %3102 = vdwg.mxu0
        %3103 = vmatpush.msra.mxu0 0.0
        %3104 = vmatpush.msra.mxu0 0.0
        %3105 = vmatpush.msra.mxu0 0.0
        %3106 = vmatpush.msra.mxu0 0.0
        %3107 = vmatpush.msra.mxu0 0.0
        %3108 = vmatpush.msra.mxu0 0.0
        %3109 = vmatpush.msra.mxu0 0.0
        %3110 = vmatpush.msra.mxu0 0.0
        %3111 = vmatpush.msra.mxu0 0.0
        %3112 = vmatpush.msra.mxu0 0.0
        %3113 = vmatpush.msra.mxu0 0.0
        %3114 = vmatpush.msra.mxu0 0.0
        %3115 = vmatpush.msra.mxu0 0.0
        %3116 = vmatpush.msra.mxu0 0.0
        %3117 = vmatpush.msra.mxu0 %v2982
        %3118 = vmatpush.msra.mxu0 %v2975
        %3119 = vmatmul.f32.gmra.mxu0 %v1061
        %v3120 = vpop.f32.mrf.mxu0
        %v3121 = vadd.f32 %v820, %v3120
        %3122 = vdwg.mxu0
        %v3123 = vmax.f32 %v3001, 0.0
        %v3124 = vmax.f32 %v3021, 0.0
        %v3125 = vmax.f32 %v3041, 0.0
        %v3126 = vmax.f32 %v3061, 0.0
        %v3127 = vmax.f32 %v3081, 0.0
        %v3128 = vmax.f32 %v3101, 0.0
        %v3129 = vmax.f32 %v3121, 0.0
        %v3130 = vadd.f32 %v3123, %v3124
        %v3131 = vadd.f32 %v3130, %v3125
        %v3132 = vadd.f32 %v3131, %v3126
        %v3133 = vadd.f32 %v3132, %v3127
        %v3134 = vadd.f32 %v3133, %v3128
        %v3135 = vadd.f32 %v3134, %v3129
        %v3136 = vadd.f32 %v523, %v593
        %v3137 = vadd.f32 %v523, %v622
        %v3138 = vadd.f32 %v523, %v651
        %v3139 = vadd.f32 %v523, %v680
        %v3140 = vadd.f32 %v523, %v709
        %v3141 = vadd.f32 %v523, %v738
        %v3142 = vadd.f32 %v523, %v796
        %v3143 = vadd.f32 %v526, %v596
        %v3144 = vadd.f32 %v526, %v625
        %v3145 = vadd.f32 %v526, %v654
        %v3146 = vadd.f32 %v526, %v683
        %v3147 = vadd.f32 %v526, %v712
        %v3148 = vadd.f32 %v526, %v741
        %v3149 = vadd.f32 %v526, %v799
        %v3150 = vadd.f32 %v529, %v599
        %v3151 = vadd.f32 %v529, %v628
        %v3152 = vadd.f32 %v529, %v657
        %v3153 = vadd.f32 %v529, %v686
        %v3154 = vadd.f32 %v529, %v715
        %v3155 = vadd.f32 %v529, %v744
        %v3156 = vadd.f32 %v529, %v802
        %v3157 = vadd.f32 %v532, %v602
        %v3158 = vadd.f32 %v532, %v631
        %v3159 = vadd.f32 %v532, %v660
        %v3160 = vadd.f32 %v532, %v689
        %v3161 = vadd.f32 %v532, %v718
        %v3162 = vadd.f32 %v532, %v747
        %v3163 = vadd.f32 %v532, %v805
        %v3164 = vmax.f32 %v3136, 0.0
        %v3165 = vmax.f32 %v3137, 0.0
        %v3166 = vmax.f32 %v3138, 0.0
        %v3167 = vmax.f32 %v3139, 0.0
        %v3168 = vmax.f32 %v3140, 0.0
        %v3169 = vmax.f32 %v3141, 0.0
        %v3170 = vmax.f32 %v3142, 0.0
        %v3171 = vmax.f32 %v3143, 0.0
        %v3172 = vmax.f32 %v3144, 0.0
        %v3173 = vmax.f32 %v3145, 0.0
        %v3174 = vmax.f32 %v3146, 0.0
        %v3175 = vmax.f32 %v3147, 0.0
        %v3176 = vmax.f32 %v3148, 0.0
        %v3177 = vmax.f32 %v3149, 0.0
        %v3178 = vmax.f32 %v3150, 0.0
        %v3179 = vmax.f32 %v3151, 0.0
        %v3180 = vmax.f32 %v3152, 0.0
        %v3181 = vmax.f32 %v3153, 0.0
        %v3182 = vmax.f32 %v3154, 0.0
        %v3183 = vmax.f32 %v3155, 0.0
        %v3184 = vmax.f32 %v3156, 0.0
        %v3185 = vmax.f32 %v3157, 0.0
        %v3186 = vmax.f32 %v3158, 0.0
        %v3187 = vmax.f32 %v3159, 0.0
        %v3188 = vmax.f32 %v3160, 0.0
        %v3189 = vmax.f32 %v3161, 0.0
        %v3190 = vmax.f32 %v3162, 0.0
        %v3191 = vmax.f32 %v3163, 0.0
        %3192 = vmatpush.msra.mxu0 0.0
        %3193 = vmatpush.msra.mxu0 0.0
        %3194 = vmatpush.msra.mxu0 0.0
        %3195 = vmatpush.msra.mxu0 0.0
        %3196 = vmatpush.msra.mxu0 0.0
        %3197 = vmatpush.msra.mxu0 0.0
        %3198 = vmatpush.msra.mxu0 0.0
        %3199 = vmatpush.msra.mxu0 0.0
        %3200 = vmatpush.msra.mxu0 0.0
        %3201 = vmatpush.msra.mxu0 0.0
        %3202 = vmatpush.msra.mxu0 0.0
        %3203 = vmatpush.msra.mxu0 0.0
        %3204 = vmatpush.msra.mxu0 %v3185
        %3205 = vmatpush.msra.mxu0 %v3178
        %3206 = vmatpush.msra.mxu0 %v3171
        %3207 = vmatpush.msra.mxu0 %v3164
        %3208 = vmatmul.f32.gmra.mxu0 %v880
        %v3209 = vpop.f32.mrf.mxu0
        %v3210 = vadd.f32 %v810, %v3209
        %3211 = vmatmul.f32.gmra.mxu0 %v883
        %v3212 = vpop.f32.mrf.mxu0
        %v3213 = vadd.f32 %v815, %v3212
        %3214 = vdwg.mxu0
        %3215 = vmatpush.msra.mxu0 0.0
        %3216 = vmatpush.msra.mxu0 0.0
        %3217 = vmatpush.msra.mxu0 0.0
        %3218 = vmatpush.msra.mxu0 0.0
        %3219 = vmatpush.msra.mxu0 0.0
        %3220 = vmatpush.msra.mxu0 0.0
        %3221 = vmatpush.msra.mxu0 0.0
        %3222 = vmatpush.msra.mxu0 0.0
        %3223 = vmatpush.msra.mxu0 0.0
        %3224 = vmatpush.msra.mxu0 0.0
        %3225 = vmatpush.msra.mxu0 0.0
        %3226 = vmatpush.msra.mxu0 0.0
        %3227 = vmatpush.msra.mxu0 %v3186
        %3228 = vmatpush.msra.mxu0 %v3179
        %3229 = vmatpush.msra.mxu0 %v3172
        %3230 = vmatpush.msra.mxu0 %v3165
        %3231 = vmatmul.f32.gmra.mxu0 %v880
        %v3232 = vpop.f32.mrf.mxu0
        %v3233 = vadd.f32 %v810, %v3232
        %3234 = vmatmul.f32.gmra.mxu0 %v883
        %v3235 = vpop.f32.mrf.mxu0
        %v3236 = vadd.f32 %v815, %v3235
        %3237 = vdwg.mxu0
        %3238 = vmatpush.msra.mxu0 0.0
        %3239 = vmatpush.msra.mxu0 0.0
        %3240 = vmatpush.msra.mxu0 0.0
        %3241 = vmatpush.msra.mxu0 0.0
        %3242 = vmatpush.msra.mxu0 0.0
        %3243 = vmatpush.msra.mxu0 0.0
        %3244 = vmatpush.msra.mxu0 0.0
        %3245 = vmatpush.msra.mxu0 0.0
        %3246 = vmatpush.msra.mxu0 0.0
        %3247 = vmatpush.msra.mxu0 0.0
        %3248 = vmatpush.msra.mxu0 0.0
        %3249 = vmatpush.msra.mxu0 0.0
        %3250 = vmatpush.msra.mxu0 %v3187
        %3251 = vmatpush.msra.mxu0 %v3180
        %3252 = vmatpush.msra.mxu0 %v3173
        %3253 = vmatpush.msra.mxu0 %v3166
        %3254 = vmatmul.f32.gmra.mxu0 %v880
        %v3255 = vpop.f32.mrf.mxu0
        %v3256 = vadd.f32 %v810, %v3255
        %3257 = vmatmul.f32.gmra.mxu0 %v883
        %v3258 = vpop.f32.mrf.mxu0
        %v3259 = vadd.f32 %v815, %v3258
        %3260 = vdwg.mxu0
        %3261 = vmatpush.msra.mxu0 0.0
        %3262 = vmatpush.msra.mxu0 0.0
        %3263 = vmatpush.msra.mxu0 0.0
        %3264 = vmatpush.msra.mxu0 0.0
        %3265 = vmatpush.msra.mxu0 0.0
        %3266 = vmatpush.msra.mxu0 0.0
        %3267 = vmatpush.msra.mxu0 0.0
        %3268 = vmatpush.msra.mxu0 0.0
        %3269 = vmatpush.msra.mxu0 0.0
        %3270 = vmatpush.msra.mxu0 0.0
        %3271 = vmatpush.msra.mxu0 0.0
        %3272 = vmatpush.msra.mxu0 0.0
        %3273 = vmatpush.msra.mxu0 %v3188
        %3274 = vmatpush.msra.mxu0 %v3181
        %3275 = vmatpush.msra.mxu0 %v3174
        %3276 = vmatpush.msra.mxu0 %v3167
        %3277 = vmatmul.f32.gmra.mxu0 %v880
        %v3278 = vpop.f32.mrf.mxu0
        %v3279 = vadd.f32 %v810, %v3278
        %3280 = vmatmul.f32.gmra.mxu0 %v883
        %v3281 = vpop.f32.mrf.mxu0
        %v3282 = vadd.f32 %v815, %v3281
        %3283 = vdwg.mxu0
        %3284 = vmatpush.msra.mxu0 0.0
        %3285 = vmatpush.msra.mxu0 0.0
        %3286 = vmatpush.msra.mxu0 0.0
        %3287 = vmatpush.msra.mxu0 0.0
        %3288 = vmatpush.msra.mxu0 0.0
        %3289 = vmatpush.msra.mxu0 0.0
        %3290 = vmatpush.msra.mxu0 0.0
        %3291 = vmatpush.msra.mxu0 0.0
        %3292 = vmatpush.msra.mxu0 0.0
        %3293 = vmatpush.msra.mxu0 0.0
        %3294 = vmatpush.msra.mxu0 0.0
        %3295 = vmatpush.msra.mxu0 0.0
        %3296 = vmatpush.msra.mxu0 %v3189
        %3297 = vmatpush.msra.mxu0 %v3182
        %3298 = vmatpush.msra.mxu0 %v3175
        %3299 = vmatpush.msra.mxu0 %v3168
        %3300 = vmatmul.f32.gmra.mxu0 %v880
        %v3301 = vpop.f32.mrf.mxu0
        %v3302 = vadd.f32 %v810, %v3301
        %3303 = vmatmul.f32.gmra.mxu0 %v883
        %v3304 = vpop.f32.mrf.mxu0
        %v3305 = vadd.f32 %v815, %v3304
        %3306 = vdwg.mxu0
        %3307 = vmatpush.msra.mxu0 0.0
        %3308 = vmatpush.msra.mxu0 0.0
        %3309 = vmatpush.msra.mxu0 0.0
        %3310 = vmatpush.msra.mxu0 0.0
        %3311 = vmatpush.msra.mxu0 0.0
        %3312 = vmatpush.msra.mxu0 0.0
        %3313 = vmatpush.msra.mxu0 0.0
        %3314 = vmatpush.msra.mxu0 0.0
        %3315 = vmatpush.msra.mxu0 0.0
        %3316 = vmatpush.msra.mxu0 0.0
        %3317 = vmatpush.msra.mxu0 0.0
        %3318 = vmatpush.msra.mxu0 0.0
        %3319 = vmatpush.msra.mxu0 %v3190
        %3320 = vmatpush.msra.mxu0 %v3183
        %3321 = vmatpush.msra.mxu0 %v3176
        %3322 = vmatpush.msra.mxu0 %v3169
        %3323 = vmatmul.f32.gmra.mxu0 %v880
        %v3324 = vpop.f32.mrf.mxu0
        %v3325 = vadd.f32 %v810, %v3324
        %3326 = vmatmul.f32.gmra.mxu0 %v883
        %v3327 = vpop.f32.mrf.mxu0
        %v3328 = vadd.f32 %v815, %v3327
        %3329 = vdwg.mxu0
        %3330 = vmatpush.msra.mxu0 0.0
        %3331 = vmatpush.msra.mxu0 0.0
        %3332 = vmatpush.msra.mxu0 0.0
        %3333 = vmatpush.msra.mxu0 0.0
        %3334 = vmatpush.msra.mxu0 0.0
        %3335 = vmatpush.msra.mxu0 0.0
        %3336 = vmatpush.msra.mxu0 0.0
        %3337 = vmatpush.msra.mxu0 0.0
        %3338 = vmatpush.msra.mxu0 0.0
        %3339 = vmatpush.msra.mxu0 0.0
        %3340 = vmatpush.msra.mxu0 0.0
        %3341 = vmatpush.msra.mxu0 0.0
        %3342 = vmatpush.msra.mxu0 %v3191
        %3343 = vmatpush.msra.mxu0 %v3184
        %3344 = vmatpush.msra.mxu0 %v3177
        %3345 = vmatpush.msra.mxu0 %v3170
        %3346 = vmatmul.f32.gmra.mxu0 %v880
        %v3347 = vpop.f32.mrf.mxu0
        %v3348 = vadd.f32 %v810, %v3347
        %3349 = vmatmul.f32.gmra.mxu0 %v883
        %v3350 = vpop.f32.mrf.mxu0
        %v3351 = vadd.f32 %v815, %v3350
        %3352 = vdwg.mxu0
        %v3353 = vmax.f32 %v3210, 0.0
        %v3354 = vmax.f32 %v3233, 0.0
        %v3355 = vmax.f32 %v3256, 0.0
        %v3356 = vmax.f32 %v3279, 0.0
        %v3357 = vmax.f32 %v3302, 0.0
        %v3358 = vmax.f32 %v3325, 0.0
        %v3359 = vmax.f32 %v3348, 0.0
        %v3360 = vmax.f32 %v3213, 0.0
        %v3361 = vmax.f32 %v3236, 0.0
        %v3362 = vmax.f32 %v3259, 0.0
        %v3363 = vmax.f32 %v3282, 0.0
        %v3364 = vmax.f32 %v3305, 0.0
        %v3365 = vmax.f32 %v3328, 0.0
        %v3366 = vmax.f32 %v3351, 0.0
        %3367 = vmatpush.msra.mxu0 0.0
        %3368 = vmatpush.msra.mxu0 0.0
        %3369 = vmatpush.msra.mxu0 0.0
        %3370 = vmatpush.msra.mxu0 0.0
        %3371 = vmatpush.msra.mxu0 0.0
        %3372 = vmatpush.msra.mxu0 0.0
        %3373 = vmatpush.msra.mxu0 0.0
        %3374 = vmatpush.msra.mxu0 0.0
        %3375 = vmatpush.msra.mxu0 0.0
        %3376 = vmatpush.msra.mxu0 0.0
        %3377 = vmatpush.msra.mxu0 0.0
        %3378 = vmatpush.msra.mxu0 0.0
        %3379 = vmatpush.msra.mxu0 0.0
        %3380 = vmatpush.msra.mxu0 0.0
        %3381 = vmatpush.msra.mxu0 %v3360
        %3382 = vmatpush.msra.mxu0 %v3353
        %3383 = vmatmul.f32.gmra.mxu0 %v1061
        %v3384 = vpop.f32.mrf.mxu0
        %v3385 = vadd.f32 %v820, %v3384
        %3386 = vdwg.mxu0
        %3387 = vmatpush.msra.mxu0 0.0
        %3388 = vmatpush.msra.mxu0 0.0
        %3389 = vmatpush.msra.mxu0 0.0
        %3390 = vmatpush.msra.mxu0 0.0
        %3391 = vmatpush.msra.mxu0 0.0
        %3392 = vmatpush.msra.mxu0 0.0
        %3393 = vmatpush.msra.mxu0 0.0
        %3394 = vmatpush.msra.mxu0 0.0
        %3395 = vmatpush.msra.mxu0 0.0
        %3396 = vmatpush.msra.mxu0 0.0
        %3397 = vmatpush.msra.mxu0 0.0
        %3398 = vmatpush.msra.mxu0 0.0
        %3399 = vmatpush.msra.mxu0 0.0
        %3400 = vmatpush.msra.mxu0 0.0
        %3401 = vmatpush.msra.mxu0 %v3361
        %3402 = vmatpush.msra.mxu0 %v3354
        %3403 = vmatmul.f32.gmra.mxu0 %v1061
        %v3404 = vpop.f32.mrf.mxu0
        %v3405 = vadd.f32 %v820, %v3404
        %3406 = vdwg.mxu0
        %3407 = vmatpush.msra.mxu0 0.0
        %3408 = vmatpush.msra.mxu0 0.0
        %3409 = vmatpush.msra.mxu0 0.0
        %3410 = vmatpush.msra.mxu0 0.0
        %3411 = vmatpush.msra.mxu0 0.0
        %3412 = vmatpush.msra.mxu0 0.0
        %3413 = vmatpush.msra.mxu0 0.0
        %3414 = vmatpush.msra.mxu0 0.0
        %3415 = vmatpush.msra.mxu0 0.0
        %3416 = vmatpush.msra.mxu0 0.0
        %3417 = vmatpush.msra.mxu0 0.0
        %3418 = vmatpush.msra.mxu0 0.0
        %3419 = vmatpush.msra.mxu0 0.0
        %3420 = vmatpush.msra.mxu0 0.0
        %3421 = vmatpush.msra.mxu0 %v3362
        %3422 = vmatpush.msra.mxu0 %v3355
        %3423 = vmatmul.f32.gmra.mxu0 %v1061
        %v3424 = vpop.f32.mrf.mxu0
        %v3425 = vadd.f32 %v820, %v3424
        %3426 = vdwg.mxu0
        %3427 = vmatpush.msra.mxu0 0.0
        %3428 = vmatpush.msra.mxu0 0.0
        %3429 = vmatpush.msra.mxu0 0.0
        %3430 = vmatpush.msra.mxu0 0.0
        %3431 = vmatpush.msra.mxu0 0.0
        %3432 = vmatpush.msra.mxu0 0.0
        %3433 = vmatpush.msra.mxu0 0.0
        %3434 = vmatpush.msra.mxu0 0.0
        %3435 = vmatpush.msra.mxu0 0.0
        %3436 = vmatpush.msra.mxu0 0.0
        %3437 = vmatpush.msra.mxu0 0.0
        %3438 = vmatpush.msra.mxu0 0.0
        %3439 = vmatpush.msra.mxu0 0.0
        %3440 = vmatpush.msra.mxu0 0.0
        %3441 = vmatpush.msra.mxu0 %v3363
        %3442 = vmatpush.msra.mxu0 %v3356
        %3443 = vmatmul.f32.gmra.mxu0 %v1061
        %v3444 = vpop.f32.mrf.mxu0
        %v3445 = vadd.f32 %v820, %v3444
        %3446 = vdwg.mxu0
        %3447 = vmatpush.msra.mxu0 0.0
        %3448 = vmatpush.msra.mxu0 0.0
        %3449 = vmatpush.msra.mxu0 0.0
        %3450 = vmatpush.msra.mxu0 0.0
        %3451 = vmatpush.msra.mxu0 0.0
        %3452 = vmatpush.msra.mxu0 0.0
        %3453 = vmatpush.msra.mxu0 0.0
        %3454 = vmatpush.msra.mxu0 0.0
        %3455 = vmatpush.msra.mxu0 0.0
        %3456 = vmatpush.msra.mxu0 0.0
        %3457 = vmatpush.msra.mxu0 0.0
        %3458 = vmatpush.msra.mxu0 0.0
        %3459 = vmatpush.msra.mxu0 0.0
        %3460 = vmatpush.msra.mxu0 0.0
        %3461 = vmatpush.msra.mxu0 %v3364
        %3462 = vmatpush.msra.mxu0 %v3357
        %3463 = vmatmul.f32.gmra.mxu0 %v1061
        %v3464 = vpop.f32.mrf.mxu0
        %v3465 = vadd.f32 %v820, %v3464
        %3466 = vdwg.mxu0
        %3467 = vmatpush.msra.mxu0 0.0
        %3468 = vmatpush.msra.mxu0 0.0
        %3469 = vmatpush.msra.mxu0 0.0
        %3470 = vmatpush.msra.mxu0 0.0
        %3471 = vmatpush.msra.mxu0 0.0
        %3472 = vmatpush.msra.mxu0 0.0
        %3473 = vmatpush.msra.mxu0 0.0
        %3474 = vmatpush.msra.mxu0 0.0
        %3475 = vmatpush.msra.mxu0 0.0
        %3476 = vmatpush.msra.mxu0 0.0
        %3477 = vmatpush.msra.mxu0 0.0
        %3478 = vmatpush.msra.mxu0 0.0
        %3479 = vmatpush.msra.mxu0 0.0
        %3480 = vmatpush.msra.mxu0 0.0
        %3481 = vmatpush.msra.mxu0 %v3365
        %3482 = vmatpush.msra.mxu0 %v3358
        %3483 = vmatmul.f32.gmra.mxu0 %v1061
        %v3484 = vpop.f32.mrf.mxu0
        %v3485 = vadd.f32 %v820, %v3484
        %3486 = vdwg.mxu0
        %3487 = vmatpush.msra.mxu0 0.0
        %3488 = vmatpush.msra.mxu0 0.0
        %3489 = vmatpush.msra.mxu0 0.0
        %3490 = vmatpush.msra.mxu0 0.0
        %3491 = vmatpush.msra.mxu0 0.0
        %3492 = vmatpush.msra.mxu0 0.0
        %3493 = vmatpush.msra.mxu0 0.0
        %3494 = vmatpush.msra.mxu0 0.0
        %3495 = vmatpush.msra.mxu0 0.0
        %3496 = vmatpush.msra.mxu0 0.0
        %3497 = vmatpush.msra.mxu0 0.0
        %3498 = vmatpush.msra.mxu0 0.0
        %3499 = vmatpush.msra.mxu0 0.0
        %3500 = vmatpush.msra.mxu0 0.0
        %3501 = vmatpush.msra.mxu0 %v3366
        %3502 = vmatpush.msra.mxu0 %v3359
        %3503 = vmatmul.f32.gmra.mxu0 %v1061
        %v3504 = vpop.f32.mrf.mxu0
        %v3505 = vadd.f32 %v820, %v3504
        %3506 = vdwg.mxu0
        %v3507 = vmax.f32 %v3385, 0.0
        %v3508 = vmax.f32 %v3405, 0.0
        %v3509 = vmax.f32 %v3425, 0.0
        %v3510 = vmax.f32 %v3445, 0.0
        %v3511 = vmax.f32 %v3465, 0.0
        %v3512 = vmax.f32 %v3485, 0.0
        %v3513 = vmax.f32 %v3505, 0.0
        %v3514 = vadd.f32 %v3507, %v3508
        %v3515 = vadd.f32 %v3514, %v3509
        %v3516 = vadd.f32 %v3515, %v3510
        %v3517 = vadd.f32 %v3516, %v3511
        %v3518 = vadd.f32 %v3517, %v3512
        %v3519 = vadd.f32 %v3518, %v3513
        %v3520 = vadd.f32 %v552, %v593
        %v3521 = vadd.f32 %v552, %v622
        %v3522 = vadd.f32 %v552, %v651
        %v3523 = vadd.f32 %v552, %v680
        %v3524 = vadd.f32 %v552, %v709
        %v3525 = vadd.f32 %v552, %v738
        %v3526 = vadd.f32 %v552, %v767
        %v3527 = vadd.f32 %v555, %v596
        %v3528 = vadd.f32 %v555, %v625
        %v3529 = vadd.f32 %v555, %v654
        %v3530 = vadd.f32 %v555, %v683
        %v3531 = vadd.f32 %v555, %v712
        %v3532 = vadd.f32 %v555, %v741
        %v3533 = vadd.f32 %v555, %v770
        %v3534 = vadd.f32 %v558, %v599
        %v3535 = vadd.f32 %v558, %v628
        %v3536 = vadd.f32 %v558, %v657
        %v3537 = vadd.f32 %v558, %v686
        %v3538 = vadd.f32 %v558, %v715
        %v3539 = vadd.f32 %v558, %v744
        %v3540 = vadd.f32 %v558, %v773
        %v3541 = vadd.f32 %v561, %v602
        %v3542 = vadd.f32 %v561, %v631
        %v3543 = vadd.f32 %v561, %v660
        %v3544 = vadd.f32 %v561, %v689
        %v3545 = vadd.f32 %v561, %v718
        %v3546 = vadd.f32 %v561, %v747
        %v3547 = vadd.f32 %v561, %v776
        %v3548 = vmax.f32 %v3520, 0.0
        %v3549 = vmax.f32 %v3521, 0.0
        %v3550 = vmax.f32 %v3522, 0.0
        %v3551 = vmax.f32 %v3523, 0.0
        %v3552 = vmax.f32 %v3524, 0.0
        %v3553 = vmax.f32 %v3525, 0.0
        %v3554 = vmax.f32 %v3526, 0.0
        %v3555 = vmax.f32 %v3527, 0.0
        %v3556 = vmax.f32 %v3528, 0.0
        %v3557 = vmax.f32 %v3529, 0.0
        %v3558 = vmax.f32 %v3530, 0.0
        %v3559 = vmax.f32 %v3531, 0.0
        %v3560 = vmax.f32 %v3532, 0.0
        %v3561 = vmax.f32 %v3533, 0.0
        %v3562 = vmax.f32 %v3534, 0.0
        %v3563 = vmax.f32 %v3535, 0.0
        %v3564 = vmax.f32 %v3536, 0.0
        %v3565 = vmax.f32 %v3537, 0.0
        %v3566 = vmax.f32 %v3538, 0.0
        %v3567 = vmax.f32 %v3539, 0.0
        %v3568 = vmax.f32 %v3540, 0.0
        %v3569 = vmax.f32 %v3541, 0.0
        %v3570 = vmax.f32 %v3542, 0.0
        %v3571 = vmax.f32 %v3543, 0.0
        %v3572 = vmax.f32 %v3544, 0.0
        %v3573 = vmax.f32 %v3545, 0.0
        %v3574 = vmax.f32 %v3546, 0.0
        %v3575 = vmax.f32 %v3547, 0.0
        %3576 = vmatpush.msra.mxu0 0.0
        %3577 = vmatpush.msra.mxu0 0.0
        %3578 = vmatpush.msra.mxu0 0.0
        %3579 = vmatpush.msra.mxu0 0.0
        %3580 = vmatpush.msra.mxu0 0.0
        %3581 = vmatpush.msra.mxu0 0.0
        %3582 = vmatpush.msra.mxu0 0.0
        %3583 = vmatpush.msra.mxu0 0.0
        %3584 = vmatpush.msra.mxu0 0.0
        %3585 = vmatpush.msra.mxu0 0.0
        %3586 = vmatpush.msra.mxu0 0.0
        %3587 = vmatpush.msra.mxu0 0.0
        %3588 = vmatpush.msra.mxu0 %v3569
        %3589 = vmatpush.msra.mxu0 %v3562
        %3590 = vmatpush.msra.mxu0 %v3555
        %3591 = vmatpush.msra.mxu0 %v3548
        %3592 = vmatmul.f32.gmra.mxu0 %v880
        %v3593 = vpop.f32.mrf.mxu0
        %v3594 = vadd.f32 %v810, %v3593
        %3595 = vmatmul.f32.gmra.mxu0 %v883
        %v3596 = vpop.f32.mrf.mxu0
        %v3597 = vadd.f32 %v815, %v3596
        %3598 = vdwg.mxu0
        %3599 = vmatpush.msra.mxu0 0.0
        %3600 = vmatpush.msra.mxu0 0.0
        %3601 = vmatpush.msra.mxu0 0.0
        %3602 = vmatpush.msra.mxu0 0.0
        %3603 = vmatpush.msra.mxu0 0.0
        %3604 = vmatpush.msra.mxu0 0.0
        %3605 = vmatpush.msra.mxu0 0.0
        %3606 = vmatpush.msra.mxu0 0.0
        %3607 = vmatpush.msra.mxu0 0.0
        %3608 = vmatpush.msra.mxu0 0.0
        %3609 = vmatpush.msra.mxu0 0.0
        %3610 = vmatpush.msra.mxu0 0.0
        %3611 = vmatpush.msra.mxu0 %v3570
        %3612 = vmatpush.msra.mxu0 %v3563
        %3613 = vmatpush.msra.mxu0 %v3556
        %3614 = vmatpush.msra.mxu0 %v3549
        %3615 = vmatmul.f32.gmra.mxu0 %v880
        %v3616 = vpop.f32.mrf.mxu0
        %v3617 = vadd.f32 %v810, %v3616
        %3618 = vmatmul.f32.gmra.mxu0 %v883
        %v3619 = vpop.f32.mrf.mxu0
        %v3620 = vadd.f32 %v815, %v3619
        %3621 = vdwg.mxu0
        %3622 = vmatpush.msra.mxu0 0.0
        %3623 = vmatpush.msra.mxu0 0.0
        %3624 = vmatpush.msra.mxu0 0.0
        %3625 = vmatpush.msra.mxu0 0.0
        %3626 = vmatpush.msra.mxu0 0.0
        %3627 = vmatpush.msra.mxu0 0.0
        %3628 = vmatpush.msra.mxu0 0.0
        %3629 = vmatpush.msra.mxu0 0.0
        %3630 = vmatpush.msra.mxu0 0.0
        %3631 = vmatpush.msra.mxu0 0.0
        %3632 = vmatpush.msra.mxu0 0.0
        %3633 = vmatpush.msra.mxu0 0.0
        %3634 = vmatpush.msra.mxu0 %v3571
        %3635 = vmatpush.msra.mxu0 %v3564
        %3636 = vmatpush.msra.mxu0 %v3557
        %3637 = vmatpush.msra.mxu0 %v3550
        %3638 = vmatmul.f32.gmra.mxu0 %v880
        %v3639 = vpop.f32.mrf.mxu0
        %v3640 = vadd.f32 %v810, %v3639
        %3641 = vmatmul.f32.gmra.mxu0 %v883
        %v3642 = vpop.f32.mrf.mxu0
        %v3643 = vadd.f32 %v815, %v3642
        %3644 = vdwg.mxu0
        %3645 = vmatpush.msra.mxu0 0.0
        %3646 = vmatpush.msra.mxu0 0.0
        %3647 = vmatpush.msra.mxu0 0.0
        %3648 = vmatpush.msra.mxu0 0.0
        %3649 = vmatpush.msra.mxu0 0.0
        %3650 = vmatpush.msra.mxu0 0.0
        %3651 = vmatpush.msra.mxu0 0.0
        %3652 = vmatpush.msra.mxu0 0.0
        %3653 = vmatpush.msra.mxu0 0.0
        %3654 = vmatpush.msra.mxu0 0.0
        %3655 = vmatpush.msra.mxu0 0.0
        %3656 = vmatpush.msra.mxu0 0.0
        %3657 = vmatpush.msra.mxu0 %v3572
        %3658 = vmatpush.msra.mxu0 %v3565
        %3659 = vmatpush.msra.mxu0 %v3558
        %3660 = vmatpush.msra.mxu0 %v3551
        %3661 = vmatmul.f32.gmra.mxu0 %v880
        %v3662 = vpop.f32.mrf.mxu0
        %v3663 = vadd.f32 %v810, %v3662
        %3664 = vmatmul.f32.gmra.mxu0 %v883
        %v3665 = vpop.f32.mrf.mxu0
        %v3666 = vadd.f32 %v815, %v3665
        %3667 = vdwg.mxu0
        %3668 = vmatpush.msra.mxu0 0.0
        %3669 = vmatpush.msra.mxu0 0.0
        %3670 = vmatpush.msra.mxu0 0.0
        %3671 = vmatpush.msra.mxu0 0.0
        %3672 = vmatpush.msra.mxu0 0.0
        %3673 = vmatpush.msra.mxu0 0.0
        %3674 = vmatpush.msra.mxu0 0.0
        %3675 = vmatpush.msra.mxu0 0.0
        %3676 = vmatpush.msra.mxu0 0.0
        %3677 = vmatpush.msra.mxu0 0.0
        %3678 = vmatpush.msra.mxu0 0.0
        %3679 = vmatpush.msra.mxu0 0.0
        %3680 = vmatpush.msra.mxu0 %v3573
        %3681 = vmatpush.msra.mxu0 %v3566
        %3682 = vmatpush.msra.mxu0 %v3559
        %3683 = vmatpush.msra.mxu0 %v3552
        %3684 = vmatmul.f32.gmra.mxu0 %v880
        %v3685 = vpop.f32.mrf.mxu0
        %v3686 = vadd.f32 %v810, %v3685
        %3687 = vmatmul.f32.gmra.mxu0 %v883
        %v3688 = vpop.f32.mrf.mxu0
        %v3689 = vadd.f32 %v815, %v3688
        %3690 = vdwg.mxu0
        %3691 = vmatpush.msra.mxu0 0.0
        %3692 = vmatpush.msra.mxu0 0.0
        %3693 = vmatpush.msra.mxu0 0.0
        %3694 = vmatpush.msra.mxu0 0.0
        %3695 = vmatpush.msra.mxu0 0.0
        %3696 = vmatpush.msra.mxu0 0.0
        %3697 = vmatpush.msra.mxu0 0.0
        %3698 = vmatpush.msra.mxu0 0.0
        %3699 = vmatpush.msra.mxu0 0.0
        %3700 = vmatpush.msra.mxu0 0.0
        %3701 = vmatpush.msra.mxu0 0.0
        %3702 = vmatpush.msra.mxu0 0.0
        %3703 = vmatpush.msra.mxu0 %v3574
        %3704 = vmatpush.msra.mxu0 %v3567
        %3705 = vmatpush.msra.mxu0 %v3560
        %3706 = vmatpush.msra.mxu0 %v3553
        %3707 = vmatmul.f32.gmra.mxu0 %v880
        %v3708 = vpop.f32.mrf.mxu0
        %v3709 = vadd.f32 %v810, %v3708
        %3710 = vmatmul.f32.gmra.mxu0 %v883
        %v3711 = vpop.f32.mrf.mxu0
        %v3712 = vadd.f32 %v815, %v3711
        %3713 = vdwg.mxu0
        %3714 = vmatpush.msra.mxu0 0.0
        %3715 = vmatpush.msra.mxu0 0.0
        %3716 = vmatpush.msra.mxu0 0.0
        %3717 = vmatpush.msra.mxu0 0.0
        %3718 = vmatpush.msra.mxu0 0.0
        %3719 = vmatpush.msra.mxu0 0.0
        %3720 = vmatpush.msra.mxu0 0.0
        %3721 = vmatpush.msra.mxu0 0.0
        %3722 = vmatpush.msra.mxu0 0.0
        %3723 = vmatpush.msra.mxu0 0.0
        %3724 = vmatpush.msra.mxu0 0.0
        %3725 = vmatpush.msra.mxu0 0.0
        %3726 = vmatpush.msra.mxu0 %v3575
        %3727 = vmatpush.msra.mxu0 %v3568
        %3728 = vmatpush.msra.mxu0 %v3561
        %3729 = vmatpush.msra.mxu0 %v3554
        %3730 = vmatmul.f32.gmra.mxu0 %v880
        %v3731 = vpop.f32.mrf.mxu0
        %v3732 = vadd.f32 %v810, %v3731
        %3733 = vmatmul.f32.gmra.mxu0 %v883
        %v3734 = vpop.f32.mrf.mxu0
        %v3735 = vadd.f32 %v815, %v3734
        %3736 = vdwg.mxu0
        %v3737 = vmax.f32 %v3594, 0.0
        %v3738 = vmax.f32 %v3617, 0.0
        %v3739 = vmax.f32 %v3640, 0.0
        %v3740 = vmax.f32 %v3663, 0.0
        %v3741 = vmax.f32 %v3686, 0.0
        %v3742 = vmax.f32 %v3709, 0.0
        %v3743 = vmax.f32 %v3732, 0.0
        %v3744 = vmax.f32 %v3597, 0.0
        %v3745 = vmax.f32 %v3620, 0.0
        %v3746 = vmax.f32 %v3643, 0.0
        %v3747 = vmax.f32 %v3666, 0.0
        %v3748 = vmax.f32 %v3689, 0.0
        %v3749 = vmax.f32 %v3712, 0.0
        %v3750 = vmax.f32 %v3735, 0.0
        %3751 = vmatpush.msra.mxu0 0.0
        %3752 = vmatpush.msra.mxu0 0.0
        %3753 = vmatpush.msra.mxu0 0.0
        %3754 = vmatpush.msra.mxu0 0.0
        %3755 = vmatpush.msra.mxu0 0.0
        %3756 = vmatpush.msra.mxu0 0.0
        %3757 = vmatpush.msra.mxu0 0.0
        %3758 = vmatpush.msra.mxu0 0.0
        %3759 = vmatpush.msra.mxu0 0.0
        %3760 = vmatpush.msra.mxu0 0.0
        %3761 = vmatpush.msra.mxu0 0.0
        %3762 = vmatpush.msra.mxu0 0.0
        %3763 = vmatpush.msra.mxu0 0.0
        %3764 = vmatpush.msra.mxu0 0.0
        %3765 = vmatpush.msra.mxu0 %v3744
        %3766 = vmatpush.msra.mxu0 %v3737
        %3767 = vmatmul.f32.gmra.mxu0 %v1061
        %v3768 = vpop.f32.mrf.mxu0
        %v3769 = vadd.f32 %v820, %v3768
        %3770 = vdwg.mxu0
        %3771 = vmatpush.msra.mxu0 0.0
        %3772 = vmatpush.msra.mxu0 0.0
        %3773 = vmatpush.msra.mxu0 0.0
        %3774 = vmatpush.msra.mxu0 0.0
        %3775 = vmatpush.msra.mxu0 0.0
        %3776 = vmatpush.msra.mxu0 0.0
        %3777 = vmatpush.msra.mxu0 0.0
        %3778 = vmatpush.msra.mxu0 0.0
        %3779 = vmatpush.msra.mxu0 0.0
        %3780 = vmatpush.msra.mxu0 0.0
        %3781 = vmatpush.msra.mxu0 0.0
        %3782 = vmatpush.msra.mxu0 0.0
        %3783 = vmatpush.msra.mxu0 0.0
        %3784 = vmatpush.msra.mxu0 0.0
        %3785 = vmatpush.msra.mxu0 %v3745
        %3786 = vmatpush.msra.mxu0 %v3738
        %3787 = vmatmul.f32.gmra.mxu0 %v1061
        %v3788 = vpop.f32.mrf.mxu0
        %v3789 = vadd.f32 %v820, %v3788
        %3790 = vdwg.mxu0
        %3791 = vmatpush.msra.mxu0 0.0
        %3792 = vmatpush.msra.mxu0 0.0
        %3793 = vmatpush.msra.mxu0 0.0
        %3794 = vmatpush.msra.mxu0 0.0
        %3795 = vmatpush.msra.mxu0 0.0
        %3796 = vmatpush.msra.mxu0 0.0
        %3797 = vmatpush.msra.mxu0 0.0
        %3798 = vmatpush.msra.mxu0 0.0
        %3799 = vmatpush.msra.mxu0 0.0
        %3800 = vmatpush.msra.mxu0 0.0
        %3801 = vmatpush.msra.mxu0 0.0
        %3802 = vmatpush.msra.mxu0 0.0
        %3803 = vmatpush.msra.mxu0 0.0
        %3804 = vmatpush.msra.mxu0 0.0
        %3805 = vmatpush.msra.mxu0 %v3746
        %3806 = vmatpush.msra.mxu0 %v3739
        %3807 = vmatmul.f32.gmra.mxu0 %v1061
        %v3808 = vpop.f32.mrf.mxu0
        %v3809 = vadd.f32 %v820, %v3808
        %3810 = vdwg.mxu0
        %3811 = vmatpush.msra.mxu0 0.0
        %3812 = vmatpush.msra.mxu0 0.0
        %3813 = vmatpush.msra.mxu0 0.0
        %3814 = vmatpush.msra.mxu0 0.0
        %3815 = vmatpush.msra.mxu0 0.0
        %3816 = vmatpush.msra.mxu0 0.0
        %3817 = vmatpush.msra.mxu0 0.0
        %3818 = vmatpush.msra.mxu0 0.0
        %3819 = vmatpush.msra.mxu0 0.0
        %3820 = vmatpush.msra.mxu0 0.0
        %3821 = vmatpush.msra.mxu0 0.0
        %3822 = vmatpush.msra.mxu0 0.0
        %3823 = vmatpush.msra.mxu0 0.0
        %3824 = vmatpush.msra.mxu0 0.0
        %3825 = vmatpush.msra.mxu0 %v3747
        %3826 = vmatpush.msra.mxu0 %v3740
        %3827 = vmatmul.f32.gmra.mxu0 %v1061
        %v3828 = vpop.f32.mrf.mxu0
        %v3829 = vadd.f32 %v820, %v3828
        %3830 = vdwg.mxu0
        %3831 = vmatpush.msra.mxu0 0.0
        %3832 = vmatpush.msra.mxu0 0.0
        %3833 = vmatpush.msra.mxu0 0.0
        %3834 = vmatpush.msra.mxu0 0.0
        %3835 = vmatpush.msra.mxu0 0.0
        %3836 = vmatpush.msra.mxu0 0.0
        %3837 = vmatpush.msra.mxu0 0.0
        %3838 = vmatpush.msra.mxu0 0.0
        %3839 = vmatpush.msra.mxu0 0.0
        %3840 = vmatpush.msra.mxu0 0.0
        %3841 = vmatpush.msra.mxu0 0.0
        %3842 = vmatpush.msra.mxu0 0.0
        %3843 = vmatpush.msra.mxu0 0.0
        %3844 = vmatpush.msra.mxu0 0.0
        %3845 = vmatpush.msra.mxu0 %v3748
        %3846 = vmatpush.msra.mxu0 %v3741
        %3847 = vmatmul.f32.gmra.mxu0 %v1061
        %v3848 = vpop.f32.mrf.mxu0
        %v3849 = vadd.f32 %v820, %v3848
        %3850 = vdwg.mxu0
        %3851 = vmatpush.msra.mxu0 0.0
        %3852 = vmatpush.msra.mxu0 0.0
        %3853 = vmatpush.msra.mxu0 0.0
        %3854 = vmatpush.msra.mxu0 0.0
        %3855 = vmatpush.msra.mxu0 0.0
        %3856 = vmatpush.msra.mxu0 0.0
        %3857 = vmatpush.msra.mxu0 0.0
        %3858 = vmatpush.msra.mxu0 0.0
        %3859 = vmatpush.msra.mxu0 0.0
        %3860 = vmatpush.msra.mxu0 0.0
        %3861 = vmatpush.msra.mxu0 0.0
        %3862 = vmatpush.msra.mxu0 0.0
        %3863 = vmatpush.msra.mxu0 0.0
        %3864 = vmatpush.msra.mxu0 0.0
        %3865 = vmatpush.msra.mxu0 %v3749
        %3866 = vmatpush.msra.mxu0 %v3742
        %3867 = vmatmul.f32.gmra.mxu0 %v1061
        %v3868 = vpop.f32.mrf.mxu0
        %v3869 = vadd.f32 %v820, %v3868
        %3870 = vdwg.mxu0
        %3871 = vmatpush.msra.mxu0 0.0
        %3872 = vmatpush.msra.mxu0 0.0
        %3873 = vmatpush.msra.mxu0 0.0
        %3874 = vmatpush.msra.mxu0 0.0
        %3875 = vmatpush.msra.mxu0 0.0
        %3876 = vmatpush.msra.mxu0 0.0
        %3877 = vmatpush.msra.mxu0 0.0
        %3878 = vmatpush.msra.mxu0 0.0
        %3879 = vmatpush.msra.mxu0 0.0
        %3880 = vmatpush.msra.mxu0 0.0
        %3881 = vmatpush.msra.mxu0 0.0
        %3882 = vmatpush.msra.mxu0 0.0
        %3883 = vmatpush.msra.mxu0 0.0
        %3884 = vmatpush.msra.mxu0 0.0
        %3885 = vmatpush.msra.mxu0 %v3750
        %3886 = vmatpush.msra.mxu0 %v3743
        %3887 = vmatmul.f32.gmra.mxu0 %v1061
        %v3888 = vpop.f32.mrf.mxu0
        %v3889 = vadd.f32 %v820, %v3888
        %3890 = vdwg.mxu0
        %v3891 = vmax.f32 %v3769, 0.0
        %v3892 = vmax.f32 %v3789, 0.0
        %v3893 = vmax.f32 %v3809, 0.0
        %v3894 = vmax.f32 %v3829, 0.0
        %v3895 = vmax.f32 %v3849, 0.0
        %v3896 = vmax.f32 %v3869, 0.0
        %v3897 = vmax.f32 %v3889, 0.0
        %v3898 = vadd.f32 %v3891, %v3892
        %v3899 = vadd.f32 %v3898, %v3893
        %v3900 = vadd.f32 %v3899, %v3894
        %v3901 = vadd.f32 %v3900, %v3895
        %v3902 = vadd.f32 %v3901, %v3896
        %v3903 = vadd.f32 %v3902, %v3897
        %vm3904 = vcmask 23552
        %v3906 = vsel %vm3904, %v227, 0
        %v3909 = vsel %vm3904, %v228, 0
        %v3912 = vsel %vm3904, %v229, 0
        %v3915 = vsel %vm3904, %v230, 0
        %vm3917 = vcmask 1042432
        %v3919 = vsel %vm3917, %v1215, 0
        %v3922 = vsel %vm3917, %v1599, 0
        %v3925 = vsel %vm3917, %v1983, 0
        %v3928 = vsel %vm3917, %v2367, 0
        %v3931 = vsel %vm3917, %v2751, 0
        %v3934 = vsel %vm3917, %v3135, 0
        %v3937 = vsel %vm3917, %v3519, 0
        %v3940 = vsel %vm3917, %v3903, 0
        %3942 = vmatpush.msra.mxu0 0.0
        %3943 = vmatpush.msra.mxu0 0.0
        %3944 = vmatpush.msra.mxu0 0.0
        %3945 = vmatpush.msra.mxu0 0.0
        %3946 = vmatpush.msra.mxu0 0.0
        %3947 = vmatpush.msra.mxu0 0.0
        %3948 = vmatpush.msra.mxu0 0.0
        %3949 = vmatpush.msra.mxu0 0.0
        %3950 = vmatpush.msra.mxu0 0.0
        %3951 = vmatpush.msra.mxu0 0.0
        %3952 = vmatpush.msra.mxu0 0.0
        %3953 = vmatpush.msra.mxu0 0.0
        %3954 = vmatpush.msra.mxu0 0.0
        %3955 = vmatpush.msra.mxu0 0.0
        %3956 = vmatpush.msra.mxu0 0.0
        %3957 = vmatpush.msra.mxu0 %v3919
        %3958 = vmatmul.f32.gmra.mxu0 %v3906
        %v3959 = vpop.f32.mrf.mxu0
        %v3960 = vadd.f32 0.0, %v3959
        %3961 = vmatmul.f32.gmra.mxu0 %v3909
        %v3962 = vpop.f32.mrf.mxu0
        %v3963 = vadd.f32 0.0, %v3962
        %3964 = vmatmul.f32.gmra.mxu0 %v3912
        %v3965 = vpop.f32.mrf.mxu0
        %v3966 = vadd.f32 0.0, %v3965
        %3967 = vmatmul.f32.gmra.mxu0 %v3915
        %v3968 = vpop.f32.mrf.mxu0
        %v3969 = vadd.f32 0.0, %v3968
        %3970 = vdwg.mxu0
        %3971 = vmatpush.msra.mxu0 0.0
        %3972 = vmatpush.msra.mxu0 0.0
        %3973 = vmatpush.msra.mxu0 0.0
        %3974 = vmatpush.msra.mxu0 0.0
        %3975 = vmatpush.msra.mxu0 0.0
        %3976 = vmatpush.msra.mxu0 0.0
        %3977 = vmatpush.msra.mxu0 0.0
        %3978 = vmatpush.msra.mxu0 0.0
        %3979 = vmatpush.msra.mxu0 0.0
        %3980 = vmatpush.msra.mxu0 0.0
        %3981 = vmatpush.msra.mxu0 0.0
        %3982 = vmatpush.msra.mxu0 0.0
        %3983 = vmatpush.msra.mxu0 0.0
        %3984 = vmatpush.msra.mxu0 0.0
        %3985 = vmatpush.msra.mxu0 0.0
        %3986 = vmatpush.msra.mxu0 %v3922
        %3987 = vmatmul.f32.gmra.mxu0 %v3906
        %v3988 = vpop.f32.mrf.mxu0
        %v3989 = vadd.f32 0.0, %v3988
        %3990 = vmatmul.f32.gmra.mxu0 %v3909
        %v3991 = vpop.f32.mrf.mxu0
        %v3992 = vadd.f32 0.0, %v3991
        %3993 = vmatmul.f32.gmra.mxu0 %v3912
        %v3994 = vpop.f32.mrf.mxu0
        %v3995 = vadd.f32 0.0, %v3994
        %3996 = vmatmul.f32.gmra.mxu0 %v3915
        %v3997 = vpop.f32.mrf.mxu0
        %v3998 = vadd.f32 0.0, %v3997
        %3999 = vdwg.mxu0
        %4000 = vmatpush.msra.mxu0 0.0
        %4001 = vmatpush.msra.mxu0 0.0
        %4002 = vmatpush.msra.mxu0 0.0
        %4003 = vmatpush.msra.mxu0 0.0
        %4004 = vmatpush.msra.mxu0 0.0
        %4005 = vmatpush.msra.mxu0 0.0
        %4006 = vmatpush.msra.mxu0 0.0
        %4007 = vmatpush.msra.mxu0 0.0
        %4008 = vmatpush.msra.mxu0 0.0
        %4009 = vmatpush.msra.mxu0 0.0
        %4010 = vmatpush.msra.mxu0 0.0
        %4011 = vmatpush.msra.mxu0 0.0
        %4012 = vmatpush.msra.mxu0 0.0
        %4013 = vmatpush.msra.mxu0 0.0
        %4014 = vmatpush.msra.mxu0 0.0
        %4015 = vmatpush.msra.mxu0 %v3925
        %4016 = vmatmul.f32.gmra.mxu0 %v3906
        %v4017 = vpop.f32.mrf.mxu0
        %v4018 = vadd.f32 0.0, %v4017
        %4019 = vmatmul.f32.gmra.mxu0 %v3909
        %v4020 = vpop.f32.mrf.mxu0
        %v4021 = vadd.f32 0.0, %v4020
        %4022 = vmatmul.f32.gmra.mxu0 %v3912
        %v4023 = vpop.f32.mrf.mxu0
        %v4024 = vadd.f32 0.0, %v4023
        %4025 = vmatmul.f32.gmra.mxu0 %v3915
        %v4026 = vpop.f32.mrf.mxu0
        %v4027 = vadd.f32 0.0, %v4026
        %4028 = vdwg.mxu0
        %4029 = vmatpush.msra.mxu0 0.0
        %4030 = vmatpush.msra.mxu0 0.0
        %4031 = vmatpush.msra.mxu0 0.0
        %4032 = vmatpush.msra.mxu0 0.0
        %4033 = vmatpush.msra.mxu0 0.0
        %4034 = vmatpush.msra.mxu0 0.0
        %4035 = vmatpush.msra.mxu0 0.0
        %4036 = vmatpush.msra.mxu0 0.0
        %4037 = vmatpush.msra.mxu0 0.0
        %4038 = vmatpush.msra.mxu0 0.0
        %4039 = vmatpush.msra.mxu0 0.0
        %4040 = vmatpush.msra.mxu0 0.0
        %4041 = vmatpush.msra.mxu0 0.0
        %4042 = vmatpush.msra.mxu0 0.0
        %4043 = vmatpush.msra.mxu0 0.0
        %4044 = vmatpush.msra.mxu0 %v3928
        %4045 = vmatmul.f32.gmra.mxu0 %v3906
        %v4046 = vpop.f32.mrf.mxu0
        %v4047 = vadd.f32 0.0, %v4046
        %4048 = vmatmul.f32.gmra.mxu0 %v3909
        %v4049 = vpop.f32.mrf.mxu0
        %v4050 = vadd.f32 0.0, %v4049
        %4051 = vmatmul.f32.gmra.mxu0 %v3912
        %v4052 = vpop.f32.mrf.mxu0
        %v4053 = vadd.f32 0.0, %v4052
        %4054 = vmatmul.f32.gmra.mxu0 %v3915
        %v4055 = vpop.f32.mrf.mxu0
        %v4056 = vadd.f32 0.0, %v4055
        %4057 = vdwg.mxu0
        %4058 = vmatpush.msra.mxu0 0.0
        %4059 = vmatpush.msra.mxu0 0.0
        %4060 = vmatpush.msra.mxu0 0.0
        %4061 = vmatpush.msra.mxu0 0.0
        %4062 = vmatpush.msra.mxu0 0.0
        %4063 = vmatpush.msra.mxu0 0.0
        %4064 = vmatpush.msra.mxu0 0.0
        %4065 = vmatpush.msra.mxu0 0.0
        %4066 = vmatpush.msra.mxu0 0.0
        %4067 = vmatpush.msra.mxu0 0.0
        %4068 = vmatpush.msra.mxu0 0.0
        %4069 = vmatpush.msra.mxu0 0.0
        %4070 = vmatpush.msra.mxu0 0.0
        %4071 = vmatpush.msra.mxu0 0.0
        %4072 = vmatpush.msra.mxu0 0.0
        %4073 = vmatpush.msra.mxu0 %v3931
        %4074 = vmatmul.f32.gmra.mxu0 %v3906
        %v4075 = vpop.f32.mrf.mxu0
        %v4076 = vadd.f32 0.0, %v4075
        %4077 = vmatmul.f32.gmra.mxu0 %v3909
        %v4078 = vpop.f32.mrf.mxu0
        %v4079 = vadd.f32 0.0, %v4078
        %4080 = vmatmul.f32.gmra.mxu0 %v3912
        %v4081 = vpop.f32.mrf.mxu0
        %v4082 = vadd.f32 0.0, %v4081
        %4083 = vmatmul.f32.gmra.mxu0 %v3915
        %v4084 = vpop.f32.mrf.mxu0
        %v4085 = vadd.f32 0.0, %v4084
        %4086 = vdwg.mxu0
        %4087 = vmatpush.msra.mxu0 0.0
        %4088 = vmatpush.msra.mxu0 0.0
        %4089 = vmatpush.msra.mxu0 0.0
        %4090 = vmatpush.msra.mxu0 0.0
        %4091 = vmatpush.msra.mxu0 0.0
        %4092 = vmatpush.msra.mxu0 0.0
        %4093 = vmatpush.msra.mxu0 0.0
        %4094 = vmatpush.msra.mxu0 0.0
        %4095 = vmatpush.msra.mxu0 0.0
        %4096 = vmatpush.msra.mxu0 0.0
        %4097 = vmatpush.msra.mxu0 0.0
        %4098 = vmatpush.msra.mxu0 0.0
        %4099 = vmatpush.msra.mxu0 0.0
        %4100 = vmatpush.msra.mxu0 0.0
        %4101 = vmatpush.msra.mxu0 0.0
        %4102 = vmatpush.msra.mxu0 %v3934
        %4103 = vmatmul.f32.gmra.mxu0 %v3906
        %v4104 = vpop.f32.mrf.mxu0
        %v4105 = vadd.f32 0.0, %v4104
        %4106 = vmatmul.f32.gmra.mxu0 %v3909
        %v4107 = vpop.f32.mrf.mxu0
        %v4108 = vadd.f32 0.0, %v4107
        %4109 = vmatmul.f32.gmra.mxu0 %v3912
        %v4110 = vpop.f32.mrf.mxu0
        %v4111 = vadd.f32 0.0, %v4110
        %4112 = vmatmul.f32.gmra.mxu0 %v3915
        %v4113 = vpop.f32.mrf.mxu0
        %v4114 = vadd.f32 0.0, %v4113
        %4115 = vdwg.mxu0
        %4116 = vmatpush.msra.mxu0 0.0
        %4117 = vmatpush.msra.mxu0 0.0
        %4118 = vmatpush.msra.mxu0 0.0
        %4119 = vmatpush.msra.mxu0 0.0
        %4120 = vmatpush.msra.mxu0 0.0
        %4121 = vmatpush.msra.mxu0 0.0
        %4122 = vmatpush.msra.mxu0 0.0
        %4123 = vmatpush.msra.mxu0 0.0
        %4124 = vmatpush.msra.mxu0 0.0
        %4125 = vmatpush.msra.mxu0 0.0
        %4126 = vmatpush.msra.mxu0 0.0
        %4127 = vmatpush.msra.mxu0 0.0
        %4128 = vmatpush.msra.mxu0 0.0
        %4129 = vmatpush.msra.mxu0 0.0
        %4130 = vmatpush.msra.mxu0 0.0
        %4131 = vmatpush.msra.mxu0 %v3937
        %4132 = vmatmul.f32.gmra.mxu0 %v3906
        %v4133 = vpop.f32.mrf.mxu0
        %v4134 = vadd.f32 0.0, %v4133
        %4135 = vmatmul.f32.gmra.mxu0 %v3909
        %v4136 = vpop.f32.mrf.mxu0
        %v4137 = vadd.f32 0.0, %v4136
        %4138 = vmatmul.f32.gmra.mxu0 %v3912
        %v4139 = vpop.f32.mrf.mxu0
        %v4140 = vadd.f32 0.0, %v4139
        %4141 = vmatmul.f32.gmra.mxu0 %v3915
        %v4142 = vpop.f32.mrf.mxu0
        %v4143 = vadd.f32 0.0, %v4142
        %4144 = vdwg.mxu0
        %4145 = vmatpush.msra.mxu0 0.0
        %4146 = vmatpush.msra.mxu0 0.0
        %4147 = vmatpush.msra.mxu0 0.0
        %4148 = vmatpush.msra.mxu0 0.0
        %4149 = vmatpush.msra.mxu0 0.0
        %4150 = vmatpush.msra.mxu0 0.0
        %4151 = vmatpush.msra.mxu0 0.0
        %4152 = vmatpush.msra.mxu0 0.0
        %4153 = vmatpush.msra.mxu0 0.0
        %4154 = vmatpush.msra.mxu0 0.0
        %4155 = vmatpush.msra.mxu0 0.0
        %4156 = vmatpush.msra.mxu0 0.0
        %4157 = vmatpush.msra.mxu0 0.0
        %4158 = vmatpush.msra.mxu0 0.0
        %4159 = vmatpush.msra.mxu0 0.0
        %4160 = vmatpush.msra.mxu0 %v3940
        %4161 = vmatmul.f32.gmra.mxu0 %v3906
        %v4162 = vpop.f32.mrf.mxu0
        %v4163 = vadd.f32 0.0, %v4162
        %4164 = vmatmul.f32.gmra.mxu0 %v3909
        %v4165 = vpop.f32.mrf.mxu0
        %v4166 = vadd.f32 0.0, %v4165
        %4167 = vmatmul.f32.gmra.mxu0 %v3912
        %v4168 = vpop.f32.mrf.mxu0
        %v4169 = vadd.f32 0.0, %v4168
        %4170 = vmatmul.f32.gmra.mxu0 %v3915
        %v4171 = vpop.f32.mrf.mxu0
        %v4172 = vadd.f32 0.0, %v4171
        %4173 = vdwg.mxu0
        %v4175 = vsel %vm318, %v222, 0
        %v4178 = vsel %vm318, %v223, 0
        %v4181 = vsel %vm318, %v224, 0
        %v4184 = vsel %vm318, %v225, 0
        %4186 = vmatpush.msra.mxu0 0.0
        %4187 = vmatpush.msra.mxu0 0.0
        %4188 = vmatpush.msra.mxu0 0.0
        %4189 = vmatpush.msra.mxu0 0.0
        %4190 = vmatpush.msra.mxu0 0.0
        %4191 = vmatpush.msra.mxu0 0.0
        %4192 = vmatpush.msra.mxu0 0.0
        %4193 = vmatpush.msra.mxu0 0.0
        %4194 = vmatpush.msra.mxu0 0.0
        %4195 = vmatpush.msra.mxu0 0.0
        %4196 = vmatpush.msra.mxu0 0.0
        %4197 = vmatpush.msra.mxu0 0.0
        %4198 = vmatpush.msra.mxu0 0.0
        %4199 = vmatpush.msra.mxu0 0.0
        %4200 = vmatpush.msra.mxu0 %v276
        %4201 = vmatpush.msra.mxu0 %v275
        %4202 = vmatmul.f32.gmra.mxu0 %v4175
        %v4203 = vpop.f32.mrf.mxu0
        %v4204 = vadd.f32 %v3960, %v4203
        %4205 = vmatmul.f32.gmra.mxu0 %v4178
        %v4206 = vpop.f32.mrf.mxu0
        %v4207 = vadd.f32 %v3963, %v4206
        %4208 = vmatmul.f32.gmra.mxu0 %v4181
        %v4209 = vpop.f32.mrf.mxu0
        %v4210 = vadd.f32 %v3966, %v4209
        %4211 = vmatmul.f32.gmra.mxu0 %v4184
        %v4212 = vpop.f32.mrf.mxu0
        %v4213 = vadd.f32 %v3969, %v4212
        %4214 = vdwg.mxu0
        %4215 = vmatpush.msra.mxu0 0.0
        %4216 = vmatpush.msra.mxu0 0.0
        %4217 = vmatpush.msra.mxu0 0.0
        %4218 = vmatpush.msra.mxu0 0.0
        %4219 = vmatpush.msra.mxu0 0.0
        %4220 = vmatpush.msra.mxu0 0.0
        %4221 = vmatpush.msra.mxu0 0.0
        %4222 = vmatpush.msra.mxu0 0.0
        %4223 = vmatpush.msra.mxu0 0.0
        %4224 = vmatpush.msra.mxu0 0.0
        %4225 = vmatpush.msra.mxu0 0.0
        %4226 = vmatpush.msra.mxu0 0.0
        %4227 = vmatpush.msra.mxu0 0.0
        %4228 = vmatpush.msra.mxu0 0.0
        %4229 = vmatpush.msra.mxu0 %v279
        %4230 = vmatpush.msra.mxu0 %v278
        %4231 = vmatmul.f32.gmra.mxu0 %v4175
        %v4232 = vpop.f32.mrf.mxu0
        %v4233 = vadd.f32 %v3989, %v4232
        %4234 = vmatmul.f32.gmra.mxu0 %v4178
        %v4235 = vpop.f32.mrf.mxu0
        %v4236 = vadd.f32 %v3992, %v4235
        %4237 = vmatmul.f32.gmra.mxu0 %v4181
        %v4238 = vpop.f32.mrf.mxu0
        %v4239 = vadd.f32 %v3995, %v4238
        %4240 = vmatmul.f32.gmra.mxu0 %v4184
        %v4241 = vpop.f32.mrf.mxu0
        %v4242 = vadd.f32 %v3998, %v4241
        %4243 = vdwg.mxu0
        %4244 = vmatpush.msra.mxu0 0.0
        %4245 = vmatpush.msra.mxu0 0.0
        %4246 = vmatpush.msra.mxu0 0.0
        %4247 = vmatpush.msra.mxu0 0.0
        %4248 = vmatpush.msra.mxu0 0.0
        %4249 = vmatpush.msra.mxu0 0.0
        %4250 = vmatpush.msra.mxu0 0.0
        %4251 = vmatpush.msra.mxu0 0.0
        %4252 = vmatpush.msra.mxu0 0.0
        %4253 = vmatpush.msra.mxu0 0.0
        %4254 = vmatpush.msra.mxu0 0.0
        %4255 = vmatpush.msra.mxu0 0.0
        %4256 = vmatpush.msra.mxu0 0.0
        %4257 = vmatpush.msra.mxu0 0.0
        %4258 = vmatpush.msra.mxu0 %v282
        %4259 = vmatpush.msra.mxu0 %v281
        %4260 = vmatmul.f32.gmra.mxu0 %v4175
        %v4261 = vpop.f32.mrf.mxu0
        %v4262 = vadd.f32 %v4018, %v4261
        %4263 = vmatmul.f32.gmra.mxu0 %v4178
        %v4264 = vpop.f32.mrf.mxu0
        %v4265 = vadd.f32 %v4021, %v4264
        %4266 = vmatmul.f32.gmra.mxu0 %v4181
        %v4267 = vpop.f32.mrf.mxu0
        %v4268 = vadd.f32 %v4024, %v4267
        %4269 = vmatmul.f32.gmra.mxu0 %v4184
        %v4270 = vpop.f32.mrf.mxu0
        %v4271 = vadd.f32 %v4027, %v4270
        %4272 = vdwg.mxu0
        %4273 = vmatpush.msra.mxu0 0.0
        %4274 = vmatpush.msra.mxu0 0.0
        %4275 = vmatpush.msra.mxu0 0.0
        %4276 = vmatpush.msra.mxu0 0.0
        %4277 = vmatpush.msra.mxu0 0.0
        %4278 = vmatpush.msra.mxu0 0.0
        %4279 = vmatpush.msra.mxu0 0.0
        %4280 = vmatpush.msra.mxu0 0.0
        %4281 = vmatpush.msra.mxu0 0.0
        %4282 = vmatpush.msra.mxu0 0.0
        %4283 = vmatpush.msra.mxu0 0.0
        %4284 = vmatpush.msra.mxu0 0.0
        %4285 = vmatpush.msra.mxu0 0.0
        %4286 = vmatpush.msra.mxu0 0.0
        %4287 = vmatpush.msra.mxu0 %v285
        %4288 = vmatpush.msra.mxu0 %v284
        %4289 = vmatmul.f32.gmra.mxu0 %v4175
        %v4290 = vpop.f32.mrf.mxu0
        %v4291 = vadd.f32 %v4047, %v4290
        %4292 = vmatmul.f32.gmra.mxu0 %v4178
        %v4293 = vpop.f32.mrf.mxu0
        %v4294 = vadd.f32 %v4050, %v4293
        %4295 = vmatmul.f32.gmra.mxu0 %v4181
        %v4296 = vpop.f32.mrf.mxu0
        %v4297 = vadd.f32 %v4053, %v4296
        %4298 = vmatmul.f32.gmra.mxu0 %v4184
        %v4299 = vpop.f32.mrf.mxu0
        %v4300 = vadd.f32 %v4056, %v4299
        %4301 = vdwg.mxu0
        %4302 = vmatpush.msra.mxu0 0.0
        %4303 = vmatpush.msra.mxu0 0.0
        %4304 = vmatpush.msra.mxu0 0.0
        %4305 = vmatpush.msra.mxu0 0.0
        %4306 = vmatpush.msra.mxu0 0.0
        %4307 = vmatpush.msra.mxu0 0.0
        %4308 = vmatpush.msra.mxu0 0.0
        %4309 = vmatpush.msra.mxu0 0.0
        %4310 = vmatpush.msra.mxu0 0.0
        %4311 = vmatpush.msra.mxu0 0.0
        %4312 = vmatpush.msra.mxu0 0.0
        %4313 = vmatpush.msra.mxu0 0.0
        %4314 = vmatpush.msra.mxu0 0.0
        %4315 = vmatpush.msra.mxu0 0.0
        %4316 = vmatpush.msra.mxu0 %v288
        %4317 = vmatpush.msra.mxu0 %v287
        %4318 = vmatmul.f32.gmra.mxu0 %v4175
        %v4319 = vpop.f32.mrf.mxu0
        %v4320 = vadd.f32 %v4076, %v4319
        %4321 = vmatmul.f32.gmra.mxu0 %v4178
        %v4322 = vpop.f32.mrf.mxu0
        %v4323 = vadd.f32 %v4079, %v4322
        %4324 = vmatmul.f32.gmra.mxu0 %v4181
        %v4325 = vpop.f32.mrf.mxu0
        %v4326 = vadd.f32 %v4082, %v4325
        %4327 = vmatmul.f32.gmra.mxu0 %v4184
        %v4328 = vpop.f32.mrf.mxu0
        %v4329 = vadd.f32 %v4085, %v4328
        %4330 = vdwg.mxu0
        %4331 = vmatpush.msra.mxu0 0.0
        %4332 = vmatpush.msra.mxu0 0.0
        %4333 = vmatpush.msra.mxu0 0.0
        %4334 = vmatpush.msra.mxu0 0.0
        %4335 = vmatpush.msra.mxu0 0.0
        %4336 = vmatpush.msra.mxu0 0.0
        %4337 = vmatpush.msra.mxu0 0.0
        %4338 = vmatpush.msra.mxu0 0.0
        %4339 = vmatpush.msra.mxu0 0.0
        %4340 = vmatpush.msra.mxu0 0.0
        %4341 = vmatpush.msra.mxu0 0.0
        %4342 = vmatpush.msra.mxu0 0.0
        %4343 = vmatpush.msra.mxu0 0.0
        %4344 = vmatpush.msra.mxu0 0.0
        %4345 = vmatpush.msra.mxu0 %v291
        %4346 = vmatpush.msra.mxu0 %v290
        %4347 = vmatmul.f32.gmra.mxu0 %v4175
        %v4348 = vpop.f32.mrf.mxu0
        %v4349 = vadd.f32 %v4105, %v4348
        %4350 = vmatmul.f32.gmra.mxu0 %v4178
        %v4351 = vpop.f32.mrf.mxu0
        %v4352 = vadd.f32 %v4108, %v4351
        %4353 = vmatmul.f32.gmra.mxu0 %v4181
        %v4354 = vpop.f32.mrf.mxu0
        %v4355 = vadd.f32 %v4111, %v4354
        %4356 = vmatmul.f32.gmra.mxu0 %v4184
        %v4357 = vpop.f32.mrf.mxu0
        %v4358 = vadd.f32 %v4114, %v4357
        %4359 = vdwg.mxu0
        %4360 = vmatpush.msra.mxu0 0.0
        %4361 = vmatpush.msra.mxu0 0.0
        %4362 = vmatpush.msra.mxu0 0.0
        %4363 = vmatpush.msra.mxu0 0.0
        %4364 = vmatpush.msra.mxu0 0.0
        %4365 = vmatpush.msra.mxu0 0.0
        %4366 = vmatpush.msra.mxu0 0.0
        %4367 = vmatpush.msra.mxu0 0.0
        %4368 = vmatpush.msra.mxu0 0.0
        %4369 = vmatpush.msra.mxu0 0.0
        %4370 = vmatpush.msra.mxu0 0.0
        %4371 = vmatpush.msra.mxu0 0.0
        %4372 = vmatpush.msra.mxu0 0.0
        %4373 = vmatpush.msra.mxu0 0.0
        %4374 = vmatpush.msra.mxu0 %v294
        %4375 = vmatpush.msra.mxu0 %v293
        %4376 = vmatmul.f32.gmra.mxu0 %v4175
        %v4377 = vpop.f32.mrf.mxu0
        %v4378 = vadd.f32 %v4134, %v4377
        %4379 = vmatmul.f32.gmra.mxu0 %v4178
        %v4380 = vpop.f32.mrf.mxu0
        %v4381 = vadd.f32 %v4137, %v4380
        %4382 = vmatmul.f32.gmra.mxu0 %v4181
        %v4383 = vpop.f32.mrf.mxu0
        %v4384 = vadd.f32 %v4140, %v4383
        %4385 = vmatmul.f32.gmra.mxu0 %v4184
        %v4386 = vpop.f32.mrf.mxu0
        %v4387 = vadd.f32 %v4143, %v4386
        %4388 = vdwg.mxu0
        %4389 = vmatpush.msra.mxu0 0.0
        %4390 = vmatpush.msra.mxu0 0.0
        %4391 = vmatpush.msra.mxu0 0.0
        %4392 = vmatpush.msra.mxu0 0.0
        %4393 = vmatpush.msra.mxu0 0.0
        %4394 = vmatpush.msra.mxu0 0.0
        %4395 = vmatpush.msra.mxu0 0.0
        %4396 = vmatpush.msra.mxu0 0.0
        %4397 = vmatpush.msra.mxu0 0.0
        %4398 = vmatpush.msra.mxu0 0.0
        %4399 = vmatpush.msra.mxu0 0.0
        %4400 = vmatpush.msra.mxu0 0.0
        %4401 = vmatpush.msra.mxu0 0.0
        %4402 = vmatpush.msra.mxu0 0.0
        %4403 = vmatpush.msra.mxu0 %v297
        %4404 = vmatpush.msra.mxu0 %v296
        %4405 = vmatmul.f32.gmra.mxu0 %v4175
        %v4406 = vpop.f32.mrf.mxu0
        %v4407 = vadd.f32 %v4163, %v4406
        %4408 = vmatmul.f32.gmra.mxu0 %v4178
        %v4409 = vpop.f32.mrf.mxu0
        %v4410 = vadd.f32 %v4166, %v4409
        %4411 = vmatmul.f32.gmra.mxu0 %v4181
        %v4412 = vpop.f32.mrf.mxu0
        %v4413 = vadd.f32 %v4169, %v4412
        %4414 = vmatmul.f32.gmra.mxu0 %v4184
        %v4415 = vpop.f32.mrf.mxu0
        %v4416 = vadd.f32 %v4172, %v4415
        %4417 = vdwg.mxu0
        %4419 = vset.pattern.permute.xlu0 0
        %4420 = vperm.xlu0 %4419, %v256
        %v4421 = vpop.permute.xlu0 %4420
        %4424 = vset.pattern.permute.xlu0 0
        %4425 = vperm.xlu0 %4424, %v257
        %v4426 = vpop.permute.xlu0 %4425
        %4429 = vset.pattern.permute.xlu0 0
        %4430 = vperm.xlu0 %4429, %v258
        %v4431 = vpop.permute.xlu0 %4430
        %4434 = vset.pattern.permute.xlu0 0
        %4435 = vperm.xlu0 %4434, %v259
        %v4436 = vpop.permute.xlu0 %4435
        %v4438 = vadd.f32 %v4204, %v4421
        %v4439 = vadd.f32 %v4233, %v4421
        %v4440 = vadd.f32 %v4262, %v4421
        %v4441 = vadd.f32 %v4291, %v4421
        %v4442 = vadd.f32 %v4320, %v4421
        %v4443 = vadd.f32 %v4349, %v4421
        %v4444 = vadd.f32 %v4378, %v4421
        %v4445 = vadd.f32 %v4407, %v4421
        %v4446 = vadd.f32 %v4207, %v4426
        %v4447 = vadd.f32 %v4236, %v4426
        %v4448 = vadd.f32 %v4265, %v4426
        %v4449 = vadd.f32 %v4294, %v4426
        %v4450 = vadd.f32 %v4323, %v4426
        %v4451 = vadd.f32 %v4352, %v4426
        %v4452 = vadd.f32 %v4381, %v4426
        %v4453 = vadd.f32 %v4410, %v4426
        %v4454 = vadd.f32 %v4210, %v4431
        %v4455 = vadd.f32 %v4239, %v4431
        %v4456 = vadd.f32 %v4268, %v4431
        %v4457 = vadd.f32 %v4297, %v4431
        %v4458 = vadd.f32 %v4326, %v4431
        %v4459 = vadd.f32 %v4355, %v4431
        %v4460 = vadd.f32 %v4384, %v4431
        %v4461 = vadd.f32 %v4413, %v4431
        %v4462 = vadd.f32 %v4213, %v4436
        %v4463 = vadd.f32 %v4242, %v4436
        %v4464 = vadd.f32 %v4271, %v4436
        %v4465 = vadd.f32 %v4300, %v4436
        %v4466 = vadd.f32 %v4329, %v4436
        %v4467 = vadd.f32 %v4358, %v4436
        %v4468 = vadd.f32 %v4387, %v4436
        %v4469 = vadd.f32 %v4416, %v4436
        %v4470 = vmax.f32 %v4438, 0.0
        %v4471 = vmax.f32 %v4439, 0.0
        %v4472 = vmax.f32 %v4440, 0.0
        %v4473 = vmax.f32 %v4441, 0.0
        %v4474 = vmax.f32 %v4442, 0.0
        %v4475 = vmax.f32 %v4443, 0.0
        %v4476 = vmax.f32 %v4444, 0.0
        %v4477 = vmax.f32 %v4445, 0.0
        %v4478 = vmax.f32 %v4446, 0.0
        %v4479 = vmax.f32 %v4447, 0.0
        %v4480 = vmax.f32 %v4448, 0.0
        %v4481 = vmax.f32 %v4449, 0.0
        %v4482 = vmax.f32 %v4450, 0.0
        %v4483 = vmax.f32 %v4451, 0.0
        %v4484 = vmax.f32 %v4452, 0.0
        %v4485 = vmax.f32 %v4453, 0.0
        %v4486 = vmax.f32 %v4454, 0.0
        %v4487 = vmax.f32 %v4455, 0.0
        %v4488 = vmax.f32 %v4456, 0.0
        %v4489 = vmax.f32 %v4457, 0.0
        %v4490 = vmax.f32 %v4458, 0.0
        %v4491 = vmax.f32 %v4459, 0.0
        %v4492 = vmax.f32 %v4460, 0.0
        %v4493 = vmax.f32 %v4461, 0.0
        %v4494 = vmax.f32 %v4462, 0.0
        %v4495 = vmax.f32 %v4463, 0.0
        %v4496 = vmax.f32 %v4464, 0.0
        %v4497 = vmax.f32 %v4465, 0.0
        %v4498 = vmax.f32 %v4466, 0.0
        %v4499 = vmax.f32 %v4467, 0.0
        %v4500 = vmax.f32 %v4468, 0.0
        %v4501 = vmax.f32 %v4469, 0.0
        %4503 = vset.pattern.permute.xlu0 0
        %4504 = vperm.xlu0 %4503, %v261
        %v4505 = vpop.permute.xlu0 %4504
        %4508 = vset.pattern.permute.xlu0 0
        %4509 = vperm.xlu0 %4508, %v262
        %v4510 = vpop.permute.xlu0 %4509
        %v4513 = vsel %vm878, %v232, 0
        %v4516 = vsel %vm878, %v233, 0
        %4518 = vmatpush.msra.mxu0 0.0
        %4519 = vmatpush.msra.mxu0 0.0
        %4520 = vmatpush.msra.mxu0 0.0
        %4521 = vmatpush.msra.mxu0 0.0
        %4522 = vmatpush.msra.mxu0 0.0
        %4523 = vmatpush.msra.mxu0 0.0
        %4524 = vmatpush.msra.mxu0 0.0
        %4525 = vmatpush.msra.mxu0 0.0
        %4526 = vmatpush.msra.mxu0 0.0
        %4527 = vmatpush.msra.mxu0 0.0
        %4528 = vmatpush.msra.mxu0 0.0
        %4529 = vmatpush.msra.mxu0 0.0
        %4530 = vmatpush.msra.mxu0 %v4494
        %4531 = vmatpush.msra.mxu0 %v4486
        %4532 = vmatpush.msra.mxu0 %v4478
        %4533 = vmatpush.msra.mxu0 %v4470
        %4534 = vmatmul.f32.gmra.mxu0 %v4513
        %v4535 = vpop.f32.mrf.mxu0
        %v4536 = vadd.f32 %v4505, %v4535
        %4537 = vmatmul.f32.gmra.mxu0 %v4516
        %v4538 = vpop.f32.mrf.mxu0
        %v4539 = vadd.f32 %v4510, %v4538
        %4540 = vdwg.mxu0
        %4541 = vmatpush.msra.mxu0 0.0
        %4542 = vmatpush.msra.mxu0 0.0
        %4543 = vmatpush.msra.mxu0 0.0
        %4544 = vmatpush.msra.mxu0 0.0
        %4545 = vmatpush.msra.mxu0 0.0
        %4546 = vmatpush.msra.mxu0 0.0
        %4547 = vmatpush.msra.mxu0 0.0
        %4548 = vmatpush.msra.mxu0 0.0
        %4549 = vmatpush.msra.mxu0 0.0
        %4550 = vmatpush.msra.mxu0 0.0
        %4551 = vmatpush.msra.mxu0 0.0
        %4552 = vmatpush.msra.mxu0 0.0
        %4553 = vmatpush.msra.mxu0 %v4495
        %4554 = vmatpush.msra.mxu0 %v4487
        %4555 = vmatpush.msra.mxu0 %v4479
        %4556 = vmatpush.msra.mxu0 %v4471
        %4557 = vmatmul.f32.gmra.mxu0 %v4513
        %v4558 = vpop.f32.mrf.mxu0
        %v4559 = vadd.f32 %v4505, %v4558
        %4560 = vmatmul.f32.gmra.mxu0 %v4516
        %v4561 = vpop.f32.mrf.mxu0
        %v4562 = vadd.f32 %v4510, %v4561
        %4563 = vdwg.mxu0
        %4564 = vmatpush.msra.mxu0 0.0
        %4565 = vmatpush.msra.mxu0 0.0
        %4566 = vmatpush.msra.mxu0 0.0
        %4567 = vmatpush.msra.mxu0 0.0
        %4568 = vmatpush.msra.mxu0 0.0
        %4569 = vmatpush.msra.mxu0 0.0
        %4570 = vmatpush.msra.mxu0 0.0
        %4571 = vmatpush.msra.mxu0 0.0
        %4572 = vmatpush.msra.mxu0 0.0
        %4573 = vmatpush.msra.mxu0 0.0
        %4574 = vmatpush.msra.mxu0 0.0
        %4575 = vmatpush.msra.mxu0 0.0
        %4576 = vmatpush.msra.mxu0 %v4496
        %4577 = vmatpush.msra.mxu0 %v4488
        %4578 = vmatpush.msra.mxu0 %v4480
        %4579 = vmatpush.msra.mxu0 %v4472
        %4580 = vmatmul.f32.gmra.mxu0 %v4513
        %v4581 = vpop.f32.mrf.mxu0
        %v4582 = vadd.f32 %v4505, %v4581
        %4583 = vmatmul.f32.gmra.mxu0 %v4516
        %v4584 = vpop.f32.mrf.mxu0
        %v4585 = vadd.f32 %v4510, %v4584
        %4586 = vdwg.mxu0
        %4587 = vmatpush.msra.mxu0 0.0
        %4588 = vmatpush.msra.mxu0 0.0
        %4589 = vmatpush.msra.mxu0 0.0
        %4590 = vmatpush.msra.mxu0 0.0
        %4591 = vmatpush.msra.mxu0 0.0
        %4592 = vmatpush.msra.mxu0 0.0
        %4593 = vmatpush.msra.mxu0 0.0
        %4594 = vmatpush.msra.mxu0 0.0
        %4595 = vmatpush.msra.mxu0 0.0
        %4596 = vmatpush.msra.mxu0 0.0
        %4597 = vmatpush.msra.mxu0 0.0
        %4598 = vmatpush.msra.mxu0 0.0
        %4599 = vmatpush.msra.mxu0 %v4497
        %4600 = vmatpush.msra.mxu0 %v4489
        %4601 = vmatpush.msra.mxu0 %v4481
        %4602 = vmatpush.msra.mxu0 %v4473
        %4603 = vmatmul.f32.gmra.mxu0 %v4513
        %v4604 = vpop.f32.mrf.mxu0
        %v4605 = vadd.f32 %v4505, %v4604
        %4606 = vmatmul.f32.gmra.mxu0 %v4516
        %v4607 = vpop.f32.mrf.mxu0
        %v4608 = vadd.f32 %v4510, %v4607
        %4609 = vdwg.mxu0
        %4610 = vmatpush.msra.mxu0 0.0
        %4611 = vmatpush.msra.mxu0 0.0
        %4612 = vmatpush.msra.mxu0 0.0
        %4613 = vmatpush.msra.mxu0 0.0
        %4614 = vmatpush.msra.mxu0 0.0
        %4615 = vmatpush.msra.mxu0 0.0
        %4616 = vmatpush.msra.mxu0 0.0
        %4617 = vmatpush.msra.mxu0 0.0
        %4618 = vmatpush.msra.mxu0 0.0
        %4619 = vmatpush.msra.mxu0 0.0
        %4620 = vmatpush.msra.mxu0 0.0
        %4621 = vmatpush.msra.mxu0 0.0
        %4622 = vmatpush.msra.mxu0 %v4498
        %4623 = vmatpush.msra.mxu0 %v4490
        %4624 = vmatpush.msra.mxu0 %v4482
        %4625 = vmatpush.msra.mxu0 %v4474
        %4626 = vmatmul.f32.gmra.mxu0 %v4513
        %v4627 = vpop.f32.mrf.mxu0
        %v4628 = vadd.f32 %v4505, %v4627
        %4629 = vmatmul.f32.gmra.mxu0 %v4516
        %v4630 = vpop.f32.mrf.mxu0
        %v4631 = vadd.f32 %v4510, %v4630
        %4632 = vdwg.mxu0
        %4633 = vmatpush.msra.mxu0 0.0
        %4634 = vmatpush.msra.mxu0 0.0
        %4635 = vmatpush.msra.mxu0 0.0
        %4636 = vmatpush.msra.mxu0 0.0
        %4637 = vmatpush.msra.mxu0 0.0
        %4638 = vmatpush.msra.mxu0 0.0
        %4639 = vmatpush.msra.mxu0 0.0
        %4640 = vmatpush.msra.mxu0 0.0
        %4641 = vmatpush.msra.mxu0 0.0
        %4642 = vmatpush.msra.mxu0 0.0
        %4643 = vmatpush.msra.mxu0 0.0
        %4644 = vmatpush.msra.mxu0 0.0
        %4645 = vmatpush.msra.mxu0 %v4499
        %4646 = vmatpush.msra.mxu0 %v4491
        %4647 = vmatpush.msra.mxu0 %v4483
        %4648 = vmatpush.msra.mxu0 %v4475
        %4649 = vmatmul.f32.gmra.mxu0 %v4513
        %v4650 = vpop.f32.mrf.mxu0
        %v4651 = vadd.f32 %v4505, %v4650
        %4652 = vmatmul.f32.gmra.mxu0 %v4516
        %v4653 = vpop.f32.mrf.mxu0
        %v4654 = vadd.f32 %v4510, %v4653
        %4655 = vdwg.mxu0
        %4656 = vmatpush.msra.mxu0 0.0
        %4657 = vmatpush.msra.mxu0 0.0
        %4658 = vmatpush.msra.mxu0 0.0
        %4659 = vmatpush.msra.mxu0 0.0
        %4660 = vmatpush.msra.mxu0 0.0
        %4661 = vmatpush.msra.mxu0 0.0
        %4662 = vmatpush.msra.mxu0 0.0
        %4663 = vmatpush.msra.mxu0 0.0
        %4664 = vmatpush.msra.mxu0 0.0
        %4665 = vmatpush.msra.mxu0 0.0
        %4666 = vmatpush.msra.mxu0 0.0
        %4667 = vmatpush.msra.mxu0 0.0
        %4668 = vmatpush.msra.mxu0 %v4500
        %4669 = vmatpush.msra.mxu0 %v4492
        %4670 = vmatpush.msra.mxu0 %v4484
        %4671 = vmatpush.msra.mxu0 %v4476
        %4672 = vmatmul.f32.gmra.mxu0 %v4513
        %v4673 = vpop.f32.mrf.mxu0
        %v4674 = vadd.f32 %v4505, %v4673
        %4675 = vmatmul.f32.gmra.mxu0 %v4516
        %v4676 = vpop.f32.mrf.mxu0
        %v4677 = vadd.f32 %v4510, %v4676
        %4678 = vdwg.mxu0
        %4679 = vmatpush.msra.mxu0 0.0
        %4680 = vmatpush.msra.mxu0 0.0
        %4681 = vmatpush.msra.mxu0 0.0
        %4682 = vmatpush.msra.mxu0 0.0
        %4683 = vmatpush.msra.mxu0 0.0
        %4684 = vmatpush.msra.mxu0 0.0
        %4685 = vmatpush.msra.mxu0 0.0
        %4686 = vmatpush.msra.mxu0 0.0
        %4687 = vmatpush.msra.mxu0 0.0
        %4688 = vmatpush.msra.mxu0 0.0
        %4689 = vmatpush.msra.mxu0 0.0
        %4690 = vmatpush.msra.mxu0 0.0
        %4691 = vmatpush.msra.mxu0 %v4501
        %4692 = vmatpush.msra.mxu0 %v4493
        %4693 = vmatpush.msra.mxu0 %v4485
        %4694 = vmatpush.msra.mxu0 %v4477
        %4695 = vmatmul.f32.gmra.mxu0 %v4513
        %v4696 = vpop.f32.mrf.mxu0
        %v4697 = vadd.f32 %v4505, %v4696
        %4698 = vmatmul.f32.gmra.mxu0 %v4516
        %v4699 = vpop.f32.mrf.mxu0
        %v4700 = vadd.f32 %v4510, %v4699
        %4701 = vdwg.mxu0
        %v4702 = vmax.f32 %v4536, 0.0
        %v4703 = vmax.f32 %v4559, 0.0
        %v4704 = vmax.f32 %v4582, 0.0
        %v4705 = vmax.f32 %v4605, 0.0
        %v4706 = vmax.f32 %v4628, 0.0
        %v4707 = vmax.f32 %v4651, 0.0
        %v4708 = vmax.f32 %v4674, 0.0
        %v4709 = vmax.f32 %v4697, 0.0
        %v4710 = vmax.f32 %v4539, 0.0
        %v4711 = vmax.f32 %v4562, 0.0
        %v4712 = vmax.f32 %v4585, 0.0
        %v4713 = vmax.f32 %v4608, 0.0
        %v4714 = vmax.f32 %v4631, 0.0
        %v4715 = vmax.f32 %v4654, 0.0
        %v4716 = vmax.f32 %v4677, 0.0
        %v4717 = vmax.f32 %v4700, 0.0
        %4719 = vset.pattern.permute.xlu0 0
        %4720 = vperm.xlu0 %4719, %v264
        %v4721 = vpop.permute.xlu0 %4720
        %v4724 = vsel %vm318, %v235, 0
        %4726 = vmatpush.msra.mxu0 0.0
        %4727 = vmatpush.msra.mxu0 0.0
        %4728 = vmatpush.msra.mxu0 0.0
        %4729 = vmatpush.msra.mxu0 0.0
        %4730 = vmatpush.msra.mxu0 0.0
        %4731 = vmatpush.msra.mxu0 0.0
        %4732 = vmatpush.msra.mxu0 0.0
        %4733 = vmatpush.msra.mxu0 0.0
        %4734 = vmatpush.msra.mxu0 0.0
        %4735 = vmatpush.msra.mxu0 0.0
        %4736 = vmatpush.msra.mxu0 0.0
        %4737 = vmatpush.msra.mxu0 0.0
        %4738 = vmatpush.msra.mxu0 0.0
        %4739 = vmatpush.msra.mxu0 0.0
        %4740 = vmatpush.msra.mxu0 %v4710
        %4741 = vmatpush.msra.mxu0 %v4702
        %4742 = vmatmul.f32.gmra.mxu0 %v4724
        %v4743 = vpop.f32.mrf.mxu0
        %v4744 = vadd.f32 %v4721, %v4743
        %4745 = vdwg.mxu0
        %4746 = vmatpush.msra.mxu0 0.0
        %4747 = vmatpush.msra.mxu0 0.0
        %4748 = vmatpush.msra.mxu0 0.0
        %4749 = vmatpush.msra.mxu0 0.0
        %4750 = vmatpush.msra.mxu0 0.0
        %4751 = vmatpush.msra.mxu0 0.0
        %4752 = vmatpush.msra.mxu0 0.0
        %4753 = vmatpush.msra.mxu0 0.0
        %4754 = vmatpush.msra.mxu0 0.0
        %4755 = vmatpush.msra.mxu0 0.0
        %4756 = vmatpush.msra.mxu0 0.0
        %4757 = vmatpush.msra.mxu0 0.0
        %4758 = vmatpush.msra.mxu0 0.0
        %4759 = vmatpush.msra.mxu0 0.0
        %4760 = vmatpush.msra.mxu0 %v4711
        %4761 = vmatpush.msra.mxu0 %v4703
        %4762 = vmatmul.f32.gmra.mxu0 %v4724
        %v4763 = vpop.f32.mrf.mxu0
        %v4764 = vadd.f32 %v4721, %v4763
        %4765 = vdwg.mxu0
        %4766 = vmatpush.msra.mxu0 0.0
        %4767 = vmatpush.msra.mxu0 0.0
        %4768 = vmatpush.msra.mxu0 0.0
        %4769 = vmatpush.msra.mxu0 0.0
        %4770 = vmatpush.msra.mxu0 0.0
        %4771 = vmatpush.msra.mxu0 0.0
        %4772 = vmatpush.msra.mxu0 0.0
        %4773 = vmatpush.msra.mxu0 0.0
        %4774 = vmatpush.msra.mxu0 0.0
        %4775 = vmatpush.msra.mxu0 0.0
        %4776 = vmatpush.msra.mxu0 0.0
        %4777 = vmatpush.msra.mxu0 0.0
        %4778 = vmatpush.msra.mxu0 0.0
        %4779 = vmatpush.msra.mxu0 0.0
        %4780 = vmatpush.msra.mxu0 %v4712
        %4781 = vmatpush.msra.mxu0 %v4704
        %4782 = vmatmul.f32.gmra.mxu0 %v4724
        %v4783 = vpop.f32.mrf.mxu0
        %v4784 = vadd.f32 %v4721, %v4783
        %4785 = vdwg.mxu0
        %4786 = vmatpush.msra.mxu0 0.0
        %4787 = vmatpush.msra.mxu0 0.0
        %4788 = vmatpush.msra.mxu0 0.0
        %4789 = vmatpush.msra.mxu0 0.0
        %4790 = vmatpush.msra.mxu0 0.0
        %4791 = vmatpush.msra.mxu0 0.0
        %4792 = vmatpush.msra.mxu0 0.0
        %4793 = vmatpush.msra.mxu0 0.0
        %4794 = vmatpush.msra.mxu0 0.0
        %4795 = vmatpush.msra.mxu0 0.0
        %4796 = vmatpush.msra.mxu0 0.0
        %4797 = vmatpush.msra.mxu0 0.0
        %4798 = vmatpush.msra.mxu0 0.0
        %4799 = vmatpush.msra.mxu0 0.0
        %4800 = vmatpush.msra.mxu0 %v4713
        %4801 = vmatpush.msra.mxu0 %v4705
        %4802 = vmatmul.f32.gmra.mxu0 %v4724
        %v4803 = vpop.f32.mrf.mxu0
        %v4804 = vadd.f32 %v4721, %v4803
        %4805 = vdwg.mxu0
        %4806 = vmatpush.msra.mxu0 0.0
        %4807 = vmatpush.msra.mxu0 0.0
        %4808 = vmatpush.msra.mxu0 0.0
        %4809 = vmatpush.msra.mxu0 0.0
        %4810 = vmatpush.msra.mxu0 0.0
        %4811 = vmatpush.msra.mxu0 0.0
        %4812 = vmatpush.msra.mxu0 0.0
        %4813 = vmatpush.msra.mxu0 0.0
        %4814 = vmatpush.msra.mxu0 0.0
        %4815 = vmatpush.msra.mxu0 0.0
        %4816 = vmatpush.msra.mxu0 0.0
        %4817 = vmatpush.msra.mxu0 0.0
        %4818 = vmatpush.msra.mxu0 0.0
        %4819 = vmatpush.msra.mxu0 0.0
        %4820 = vmatpush.msra.mxu0 %v4714
        %4821 = vmatpush.msra.mxu0 %v4706
        %4822 = vmatmul.f32.gmra.mxu0 %v4724
        %v4823 = vpop.f32.mrf.mxu0
        %v4824 = vadd.f32 %v4721, %v4823
        %4825 = vdwg.mxu0
        %4826 = vmatpush.msra.mxu0 0.0
        %4827 = vmatpush.msra.mxu0 0.0
        %4828 = vmatpush.msra.mxu0 0.0
        %4829 = vmatpush.msra.mxu0 0.0
        %4830 = vmatpush.msra.mxu0 0.0
        %4831 = vmatpush.msra.mxu0 0.0
        %4832 = vmatpush.msra.mxu0 0.0
        %4833 = vmatpush.msra.mxu0 0.0
        %4834 = vmatpush.msra.mxu0 0.0
        %4835 = vmatpush.msra.mxu0 0.0
        %4836 = vmatpush.msra.mxu0 0.0
        %4837 = vmatpush.msra.mxu0 0.0
        %4838 = vmatpush.msra.mxu0 0.0
        %4839 = vmatpush.msra.mxu0 0.0
        %4840 = vmatpush.msra.mxu0 %v4715
        %4841 = vmatpush.msra.mxu0 %v4707
        %4842 = vmatmul.f32.gmra.mxu0 %v4724
        %v4843 = vpop.f32.mrf.mxu0
        %v4844 = vadd.f32 %v4721, %v4843
        %4845 = vdwg.mxu0
        %4846 = vmatpush.msra.mxu0 0.0
        %4847 = vmatpush.msra.mxu0 0.0
        %4848 = vmatpush.msra.mxu0 0.0
        %4849 = vmatpush.msra.mxu0 0.0
        %4850 = vmatpush.msra.mxu0 0.0
        %4851 = vmatpush.msra.mxu0 0.0
        %4852 = vmatpush.msra.mxu0 0.0
        %4853 = vmatpush.msra.mxu0 0.0
        %4854 = vmatpush.msra.mxu0 0.0
        %4855 = vmatpush.msra.mxu0 0.0
        %4856 = vmatpush.msra.mxu0 0.0
        %4857 = vmatpush.msra.mxu0 0.0
        %4858 = vmatpush.msra.mxu0 0.0
        %4859 = vmatpush.msra.mxu0 0.0
        %4860 = vmatpush.msra.mxu0 %v4716
        %4861 = vmatpush.msra.mxu0 %v4708
        %4862 = vmatmul.f32.gmra.mxu0 %v4724
        %v4863 = vpop.f32.mrf.mxu0
        %v4864 = vadd.f32 %v4721, %v4863
        %4865 = vdwg.mxu0
        %4866 = vmatpush.msra.mxu0 0.0
        %4867 = vmatpush.msra.mxu0 0.0
        %4868 = vmatpush.msra.mxu0 0.0
        %4869 = vmatpush.msra.mxu0 0.0
        %4870 = vmatpush.msra.mxu0 0.0
        %4871 = vmatpush.msra.mxu0 0.0
        %4872 = vmatpush.msra.mxu0 0.0
        %4873 = vmatpush.msra.mxu0 0.0
        %4874 = vmatpush.msra.mxu0 0.0
        %4875 = vmatpush.msra.mxu0 0.0
        %4876 = vmatpush.msra.mxu0 0.0
        %4877 = vmatpush.msra.mxu0 0.0
        %4878 = vmatpush.msra.mxu0 0.0
        %4879 = vmatpush.msra.mxu0 0.0
        %4880 = vmatpush.msra.mxu0 %v4717
        %4881 = vmatpush.msra.mxu0 %v4709
        %4882 = vmatmul.f32.gmra.mxu0 %v4724
        %v4883 = vpop.f32.mrf.mxu0
        %v4884 = vadd.f32 %v4721, %v4883
        %4885 = vdwg.mxu0
        %v4886 = vmax.f32 %v4744, 0.0
        %v4887 = vmax.f32 %v4764, 0.0
        %v4888 = vmax.f32 %v4784, 0.0
        %v4889 = vmax.f32 %v4804, 0.0
        %v4890 = vmax.f32 %v4824, 0.0
        %v4891 = vmax.f32 %v4844, 0.0
        %v4892 = vmax.f32 %v4864, 0.0
        %v4893 = vmax.f32 %v4884, 0.0
        %4895 = vset.pattern.permute.xlu0 0
        %4896 = vperm.xlu0 %4895, %v266
        %v4897 = vpop.permute.xlu0 %4896
        %4900 = vset.pattern.permute.xlu0 0
        %4901 = vperm.xlu0 %4900, %v267
        %v4902 = vpop.permute.xlu0 %4901
        %4905 = vset.pattern.permute.xlu0 0
        %4906 = vperm.xlu0 %4905, %v268
        %v4907 = vpop.permute.xlu0 %4906
        %4910 = vset.pattern.permute.xlu0 0
        %4911 = vperm.xlu0 %4910, %v269
        %v4912 = vpop.permute.xlu0 %4911
        %vm4914 = vcmask 523264
        %v4916 = vsel %vm4914, %v237, 0
        %v4919 = vsel %vm4914, %v238, 0
        %v4922 = vsel %vm4914, %v239, 0
        %v4925 = vsel %vm4914, %v240, 0
        %4927 = vmatpush.msra.mxu0 0.0
        %4928 = vmatpush.msra.mxu0 0.0
        %4929 = vmatpush.msra.mxu0 0.0
        %4930 = vmatpush.msra.mxu0 0.0
        %4931 = vmatpush.msra.mxu0 0.0
        %4932 = vmatpush.msra.mxu0 0.0
        %4933 = vmatpush.msra.mxu0 0.0
        %4934 = vmatpush.msra.mxu0 0.0
        %4935 = vmatpush.msra.mxu0 %v4893
        %4936 = vmatpush.msra.mxu0 %v4892
        %4937 = vmatpush.msra.mxu0 %v4891
        %4938 = vmatpush.msra.mxu0 %v4890
        %4939 = vmatpush.msra.mxu0 %v4889
        %4940 = vmatpush.msra.mxu0 %v4888
        %4941 = vmatpush.msra.mxu0 %v4887
        %4942 = vmatpush.msra.mxu0 %v4886
        %4943 = vmatmul.f32.gmra.mxu0 %v4916
        %v4944 = vpop.f32.mrf.mxu0
        %v4945 = vadd.f32 %v4897, %v4944
        %4946 = vmatmul.f32.gmra.mxu0 %v4919
        %v4947 = vpop.f32.mrf.mxu0
        %v4948 = vadd.f32 %v4902, %v4947
        %4949 = vmatmul.f32.gmra.mxu0 %v4922
        %v4950 = vpop.f32.mrf.mxu0
        %v4951 = vadd.f32 %v4907, %v4950
        %4952 = vmatmul.f32.gmra.mxu0 %v4925
        %v4953 = vpop.f32.mrf.mxu0
        %v4954 = vadd.f32 %v4912, %v4953
        %4955 = vdwg.mxu0
        %v4956 = vmax.f32 %v4945, 0.0
        %v4957 = vmax.f32 %v4948, 0.0
        %v4958 = vmax.f32 %v4951, 0.0
        %v4959 = vmax.f32 %v4954, 0.0
        %4961 = vset.pattern.permute.xlu0 0
        %4962 = vperm.xlu0 %4961, %v271
        %v4963 = vpop.permute.xlu0 %4962
        %4966 = vset.pattern.permute.xlu0 0
        %4967 = vperm.xlu0 %4966, %v272
        %v4968 = vpop.permute.xlu0 %4967
        %v4971 = vsel %vm878, %v242, 0
        %v4974 = vsel %vm878, %v243, 0
        %4976 = vmatpush.msra.mxu0 0.0
        %4977 = vmatpush.msra.mxu0 0.0
        %4978 = vmatpush.msra.mxu0 0.0
        %4979 = vmatpush.msra.mxu0 0.0
        %4980 = vmatpush.msra.mxu0 0.0
        %4981 = vmatpush.msra.mxu0 0.0
        %4982 = vmatpush.msra.mxu0 0.0
        %4983 = vmatpush.msra.mxu0 0.0
        %4984 = vmatpush.msra.mxu0 0.0
        %4985 = vmatpush.msra.mxu0 0.0
        %4986 = vmatpush.msra.mxu0 0.0
        %4987 = vmatpush.msra.mxu0 0.0
        %4988 = vmatpush.msra.mxu0 %v4959
        %4989 = vmatpush.msra.mxu0 %v4958
        %4990 = vmatpush.msra.mxu0 %v4957
        %4991 = vmatpush.msra.mxu0 %v4956
        %4992 = vmatmul.f32.gmra.mxu0 %v4971
        %v4993 = vpop.f32.mrf.mxu0
        %v4994 = vadd.f32 %v4963, %v4993
        %4995 = vmatmul.f32.gmra.mxu0 %v4974
        %v4996 = vpop.f32.mrf.mxu0
        %v4997 = vadd.f32 %v4968, %v4996
        %4998 = vdwg.mxu0
        %v4999 = vmax.f32 %v4994, 0.0
        %v5000 = vmax.f32 %v4997, 0.0
        %5002 = vset.pattern.permute.xlu0 0
        %5003 = vperm.xlu0 %5002, %v274
        %v5004 = vpop.permute.xlu0 %5003
        %v5007 = vsel %vm318, %v245, 0
        %5009 = vmatpush.msra.mxu0 0.0
        %5010 = vmatpush.msra.mxu0 0.0
        %5011 = vmatpush.msra.mxu0 0.0
        %5012 = vmatpush.msra.mxu0 0.0
        %5013 = vmatpush.msra.mxu0 0.0
        %5014 = vmatpush.msra.mxu0 0.0
        %5015 = vmatpush.msra.mxu0 0.0
        %5016 = vmatpush.msra.mxu0 0.0
        %5017 = vmatpush.msra.mxu0 0.0
        %5018 = vmatpush.msra.mxu0 0.0
        %5019 = vmatpush.msra.mxu0 0.0
        %5020 = vmatpush.msra.mxu0 0.0
        %5021 = vmatpush.msra.mxu0 0.0
        %5022 = vmatpush.msra.mxu0 0.0
        %5023 = vmatpush.msra.mxu0 %v5000
        %5024 = vmatpush.msra.mxu0 %v4999
        %5025 = vmatmul.f32.gmra.mxu0 %v5007
        %v5026 = vpop.f32.mrf.mxu0
        %v5027 = vadd.f32 %v5004, %v5026
        %5028 = vdwg.mxu0
        %5029 = vst [vmem:[%s206] sm:$0xf] %v5027
        %s5030 = sand.u32 %s97, 1
        %s5031 = scalar_lea.sflag [#allocation4], %s5030
        %s5032 = sand.u32 %s97, 1
        %s5033 = smul.addr %s5032, 4
        %s5034 = scalar_lea.vmem [#allocation7], %s5033
        // Predicated region
        $region41: #{tpu_custom_call.1} parent=31 // pred_check
          %p5035 = pneg %p107
        $region42: #{tpu_custom_call.1} parent=31 // pred_check_branch
          %5037 = sbr.rel (%p5035) target = $region44
        $region43: #{tpu_custom_call.1} parent=31 // pred_region
          %5039 = vsyncadd %s5031, 0
          %s5040 = smul.addr %s21, 4
          %s5041 = scalar_lea.hbm %s3, %s5040
          %s5043 = sshll.u32 %s5034, 4
          %s5044 = int_to_ptr.vmem [resolvable:$true] %s5043
          %s5045 = sshll.u32 %s5041, 4
          %s5046 = int_to_ptr.hbm [resolvable:$true] %s5045
          %5048 = dma.vmem_to_hbm [thread:$0]  %s5044, 64, %s5046, %s5031
        $region44: #{tpu_custom_call.1} parent=31 // pred_fallthru
          _
      $region32: #{tpu_custom_call.1} parent=5 // pred_fallthru
        _
      %p5049 = scmp.le.s32.totalorder 2, %s16
      // Predicated region
      $region45: #{tpu_custom_call.1} parent=5 // pred_check
        %p5050 = pneg %p5049
      $region46: #{tpu_custom_call.1} parent=5 // pred_check_branch
        %5052 = sbr.rel (%p5050) target = $region48
      $region47: #{tpu_custom_call.1} parent=5 // pred_region
        %s5053 = ssub.s32 %s16, 2
        // Predicated region
        $region49: #{tpu_custom_call.1} parent=47 // pred_check
          %p5054 = pneg %p113
        $region50: #{tpu_custom_call.1} parent=47 // pred_check_branch
          %5056 = sbr.rel (%p5054) target = $region52
        $region51: #{tpu_custom_call.1} parent=47 // pred_region
          %s5057 = sand.u32 %s98, 1
          %s5058 = scalar_lea.sflag [#allocation4], %s5057
          %s5059 = sand.u32 %s98, 1
          %s5060 = smul.addr %s5059, 4
          %s5061 = scalar_lea.vmem [#allocation7], %s5060
          %5063 = dma.done %s5058, 64
        $region52: #{tpu_custom_call.1} parent=47 // pred_fallthru
          _
      $region48: #{tpu_custom_call.1} parent=5 // pred_fallthru
        _
    $region6: #{tpu_custom_call.1} parent=1 // loop_footer
      %s20 = sadd.s32 1, %s16
    $region7: #{tpu_custom_call.1} parent=1 // loop_footer_branch
      %15 = sbr.rel target = $region3
    $region8: #{tpu_custom_call.1} parent=1 // loop_exit
      _
    %5064 = vsyncpa [#allocation3], 1
    %s5065 = scalar_lea.sflag [#allocation3], 1
    %5066 = vsyncpa %s5065, 1
    %5067 = vsyncpa [#allocation6], 1
    %5068 = vsyncpa [#allocation4], 1
    %s5069 = scalar_lea.sflag [#allocation4], 1
    %5070 = vsyncpa %s5069, 1

</llo_original>
